<compile_context>
chip_gen: v7x
topology: tpu7x:2x2x1
jax: 0.10.0
libtpu: 0.0.40
codegen_flags: <defaults>
</compile_context>

<pallas_src>
import functools
import math

import jax
import jax.numpy as jnp
from jax.experimental import pallas as pl
from jax.experimental.pallas import tpu as pltpu


def _silu(x):
    return x * jax.nn.sigmoid(x)


def _softplus(x):
    # matches torch.nn.functional.softplus with its default threshold=20
    return jnp.where(x > 20.0, x, jnp.log1p(jnp.exp(x)))


def _mamba_kernel(x_ref, w_inproj_ref, b_inproj_ref, slab_ref, w_xdt_ref,
                  w_xbc_ref, a_t_ref, w_out_ref, b_fc_ref, out_ref,
                  xpad_s, da_s, dbu_s, crep_s, y_s,
                  *, d_inner, d_state, d_conv, pred_len, t_chunk):
    seq_len, B, in_feat = x_ref.shape
    di, ds, K, P = d_inner, d_state, d_conv, pred_len
    M = seq_len * B                    # rows per grid step (time-major)
    R = B * ds                         # scan-state rows: r = b*d_state + s
    t0 = seq_len - P                   # first time step whose y is needed

    def mm(act, w_ref):
        # MXU matmul; activations cast to the (possibly bf16) weight dtype,
        # accumulation stays float32.
        return jnp.dot(act.astype(w_ref.dtype), w_ref[...],
                       preferred_element_type=jnp.float32)

    # ---- fused input_transform + Mamba.in_proj ------------------------------
    x_flat = x_ref[...].reshape(M, in_feat)                  # time-major rows
    xz = mm(x_flat, w_inproj_ref) + b_inproj_ref[...]        # (M, 2*d_inner)
    xm = xz[:, :di]
    z_tail = xz[t0 * B:, di:]                                # gate, last P steps

    # ---- depthwise causal Conv1d + SiLU -------------------------------------
    # Time-major layout: one time step == B rows, so zero rows in a pre-padded
    # VMEM slab handle the causal boundary of every batch row at once (no
    # concatenate of a full activation copy).
    slab = slab_ref[...]                                     # (d_conv+3, d_inner)
    conv_b = slab[K:K + 1, :]
    b_dt = slab[K + 1:K + 2, :]
    d_skip = slab[K + 2:K + 3, :]
    KB = (K - 1) * B
    xpad_s[0:KB, :] = jnp.zeros((KB, di), jnp.float32)
    xpad_s[KB:KB + M, :] = xm
    acc = conv_b
    for k in range(K):                                       # d_conv is tiny (4)
        acc = acc + xpad_s[k * B:k * B + M, :] * slab[k:k + 1, :]
    u = _silu(acc)                                           # (M, d_inner)

    # ---- x_proj --------------------------------------------------------------
    # dt (dt_proj folded in) is kept float32 even on the bf16 path: it feeds
    # exp() inside a length-seq_len recurrence, so bf16 error would compound.
    dt = _softplus(jnp.dot(u, w_xdt_ref[...],
                           preferred_element_type=jnp.float32) + b_dt)  # (M, di)
    bc = mm(u, w_xbc_ref)                                    # (M, 2*d_state)
    du = dt * u                                              # (M, d_inner)
    a_t = a_t_ref[...]                                       # (d_state, d_inner)

    # ---- selective scan ------------------------------------------------------
    # All h-independent terms are precomputed per time chunk (batched VPU/EUP
    # work, off the critical path) and staged in VMEM; the serial loop is a
    # pure FMA plus (for the last pred_len steps) a C-weighted sublane reduce.
    h = jnp.zeros((R, di), jnp.float32)
    n_chunks = -(-seq_len // t_chunk)
    for c in range(n_chunks):                                # static chunk loop
        lo = c * t_chunk
        hi = min(seq_len, lo + t_chunk)
        Tc = hi - lo
        rs, re = lo * B, hi * B

        dt_c = dt[rs:re].reshape(Tc, B, di)
        du_c = du[rs:re].reshape(Tc, B, di)
        b_c = bc[rs:re, :ds].reshape(Tc, B, ds)
        # dA[t, b*ds+s, d] = exp(dt[t,b,d] * A[d,s]);  dBu = dt*u (x) B
        da_s[0:Tc, :, :] = jnp.exp(
            dt_c[:, :, None, :] * a_t[None, None, :, :]).reshape(Tc, R, di)
        dbu_s[0:Tc, :, :] = (
            du_c[:, :, None, :] * b_c[:, :, :, None]).reshape(Tc, R, di)

        # Steps [0, split) in this chunk only update h; steps [split, Tc) also
        # produce y (they fall in the last pred_len time steps).
        split = min(max(t0 - lo, 0), Tc)
        if split < Tc:
            c_c = bc[rs + split * B:re, ds:].reshape(Tc - split, B, ds)
            crep_s[0:Tc - split, :, :] = jnp.broadcast_to(
                c_c[:, :, :, None],
                (Tc - split, B, ds, di)).reshape(Tc - split, R, di)

        def step_noy(i, hh):
            return da_s[i] * hh + dbu_s[i]

        def step_y(i, hh):
            hh = da_s[i] * hh + dbu_s[i]
            yb = jnp.sum((hh * crep_s[i - split]).reshape(B, ds, di), axis=1)
            y_s[lo + i - t0] = yb
            return hh

        if split > 0:
            h = jax.lax.fori_loop(0, split, step_noy, h,
                                  unroll=True if split <= 16 else 8)
        if split < Tc:
            h = jax.lax.fori_loop(split, Tc, step_y, h,
                                  unroll=True if (Tc - split) <= 16 else 8)

    # ---- D skip, SiLU gate, fused out_proj+fc on the last pred_len steps ----
    u_tail = u[t0 * B:, :]
    y_tail = y_s[...].reshape(P * B, di)
    yt = (y_tail + u_tail * d_skip) * _silu(z_tail)
    out = mm(yt, w_out_ref) + b_fc_ref[...]                  # (P*B, c_out)
    out_ref[...] = out.reshape(P, B, out.shape[-1])


def _choose_b_tile(batch, seq_len):
    """batch < 16: one tile (padding/sublane waste negligible).  Otherwise use
    multiple-of-8 sub-batch tiles sized so each grid step has >= ~256 rows for
    the MXU M dimension while still producing >= 2 grid steps, so the
    "parallel" grid axis can feed both v7x TensorCores (on v5e/v6e the extra
    steps just amortize the ~0.35us/step overhead)."""
    if batch < 16:
        return batch
    bt = ((-(-256 // max(1, seq_len)) + 7) // 8) * 8         # rows >= 256
    half = (batch // 2) // 8 * 8                             # guarantee >= 2 tiles
    return max(8, min(bt, half))


def mamba_forecast(x_enc, x_mark_enc, x_dec, x_mark_dec, params, cfg, *,
                   matmul_dtype=jnp.float32, b_tile=None, scan_chunk=None):
    """Pallas forward pass.  matmul_dtype=jnp.bfloat16 runs the fused
    projection matmuls bf16 (MXU-native) with f32 accumulation; the scan,
    softplus/exp/gating and the dt columns of x_proj stay f32."""
    del x_dec, x_mark_dec                        # unused, same as the torch model
    xc = jnp.concatenate([x_enc, x_mark_enc], axis=-1).astype(jnp.float32)
    batch, seq_len, input_size = xc.shape
    pred_len, c_out = cfg['pred_len'], cfg['c_out']
    d_inner, d_state = cfg['d_inner'], cfg['d_state']
    d_conv, dt_rank = cfg['d_conv'], cfg['dt_rank']
    if pred_len > seq_len:
        raise ValueError("pred_len must be <= seq_len")

    if b_tile is None:
        b_tile = _choose_b_tile(batch, seq_len)
    b_tile = min(b_tile, batch)
    n_tiles = pl.cdiv(batch, b_tile)
    batch_p = n_tiles * b_tile
    if n_tiles > 1 and b_tile % 8 != 0:
        raise ValueError("sub-batch tiles must be a multiple of 8 rows")
    if batch_p != batch:
        xc = jnp.pad(xc, ((0, batch_p - batch), (0, 0), (0, 0)))
    x_t = jnp.transpose(xc, (1, 0, 2))           # (seq_len, batch_p, F) time-major

    R = b_tile * d_state
    # Time-chunk the scan precompute so the dA/dBu/C_rep scratch stays ~<=6 MiB
    # (v7x has 64 MiB physical / 32 MiB default-scoped VMEM).
    if scan_chunk is None:
        per_step = 3 * R * d_inner * 4
        scan_chunk = max(1, min(seq_len, (6 << 20) // max(1, per_step)))
    scan_chunk = max(1, min(scan_chunk, seq_len))

    # ---- host-side weight fusion / packing (one-time preprocessing) ---------
    hi = jax.lax.Precision.HIGHEST
    w_inproj_f = jnp.matmul(params['w_in'], params['w_inproj'],
                            precision=hi).astype(matmul_dtype)
    b_inproj_f = jnp.matmul(params['b_in'], params['w_inproj'], precision=hi)
    w_xp = params['w_xproj']
    w_xdt = jnp.matmul(w_xp[:, :dt_rank], params['w_dtproj'], precision=hi)  # f32
    w_xbc = w_xp[:, dt_rank:].astype(matmul_dtype)
    slab = jnp.concatenate([params['conv_w'], params['conv_b'],
                            params['b_dtproj'], params['d_skip']], axis=0)
    a_t = (-jnp.exp(params['a_log'])).T          # (d_state, d_inner)
    w_out_f = jnp.matmul(params['w_outproj'], params['w_fc'],
                         precision=hi).astype(matmul_dtype)
    b_fc = params['b_fc']

    weights = [w_inproj_f, b_inproj_f, slab, w_xdt, w_xbc, a_t, w_out_f, b_fc]

    kernel = functools.partial(
        _mamba_kernel, d_inner=d_inner, d_state=d_state, d_conv=d_conv,
        pred_len=pred_len, t_chunk=scan_chunk)

    in_specs = [pl.BlockSpec((seq_len, b_tile, input_size), lambda g: (0, g, 0))]
    in_specs += [pl.BlockSpec(w.shape, lambda g: (0, 0)) for w in weights]

    M = seq_len * b_tile
    scratch_shapes = [
        pltpu.VMEM(((d_conv - 1) * b_tile + M, d_inner), jnp.float32),    # xpad
        pltpu.VMEM((scan_chunk, R, d_inner), jnp.float32),                # dA
        pltpu.VMEM((scan_chunk, R, d_inner), jnp.float32),                # dBu
        pltpu.VMEM((min(scan_chunk, pred_len), R, d_inner), jnp.float32), # C rep
        pltpu.VMEM((pred_len, b_tile, d_inner), jnp.float32),             # y
    ]

    # Explicit VMEM budget (review item): scratch + double-buffered I/O +
    # resident weights + a rough activation allowance, clamped to [32, 64] MiB.
    def _nbytes(shape, itemsize=4):
        n = 1
        for d in shape:
            n *= int(d)
        return n * itemsize

    scratch_bytes = (_nbytes(((d_conv - 1) * b_tile + M, d_inner))
                     + 2 * _nbytes((scan_chunk, R, d_inner))
                     + _nbytes((min(scan_chunk, pred_len), R, d_inner))
                     + _nbytes((pred_len, b_tile, d_inner)))
    w_bytes = sum(int(w.size) * w.dtype.itemsize for w in weights)
    io_bytes = 2 * (_nbytes((seq_len, b_tile, input_size)) + w_bytes
                    + _nbytes((pred_len, b_tile, c_out)))
    act_bytes = 8 * M * d_inner * 4
    vmem_limit = int(min(max(2 * (scratch_bytes + io_bytes + act_bytes),
                             32 << 20), 64 << 20))

    out = pl.pallas_call(
        kernel,
        out_shape=jax.ShapeDtypeStruct((pred_len, batch_p, c_out), jnp.float32),
        grid_spec=pltpu.PrefetchScalarGridSpec(
            num_scalar_prefetch=0,
            grid=(n_tiles,),
            in_specs=in_specs,
            out_specs=pl.BlockSpec((pred_len, b_tile, c_out),
                                   lambda g: (0, g, 0)),
            scratch_shapes=scratch_shapes),
        compiler_params=pltpu.CompilerParams(
            dimension_semantics=("parallel",),
            vmem_limit_bytes=vmem_limit),
    )(x_t, *weights)

    return jnp.transpose(out, (1, 0, 2))[:batch]     # (batch, pred_len, c_out)


def init_params(key, cfg):
    input_size, d_model = cfg['input_size'], cfg['d_model']
    d_inner, d_state = cfg['d_inner'], cfg['d_state']
    d_conv, dt_rank, c_out = cfg['d_conv'], cfg['dt_rank'], cfg['c_out']
    ks = jax.random.split(key, 10)

    def lin(k, fi, fo):
        return jax.random.normal(k, (fi, fo), jnp.float32) / jnp.sqrt(fi)

    a_log = jnp.log(jnp.tile(jnp.arange(1, d_state + 1, dtype=jnp.float32)[None, :],
                             (d_inner, 1)))
    return {
        'w_in': lin(ks[0], input_size, d_model),
        'b_in': 0.01 * jax.random.normal(ks[1], (1, d_model), jnp.float32),
        'w_inproj': lin(ks[2], d_model, 2 * d_inner),
        'conv_w': jax.random.normal(ks[3], (d_conv, d_inner), jnp.float32) / d_conv,
        'conv_b': 0.01 * jax.random.normal(ks[4], (1, d_inner), jnp.float32),
        'w_xproj': lin(ks[5], d_inner, dt_rank + 2 * d_state),
        'w_dtproj': lin(ks[6], dt_rank, d_inner),
        'b_dtproj': jnp.full((1, d_inner), -4.6, jnp.float32),   # softplus^-1(~0.01)
        'a_log': a_log,
        'd_skip': jnp.ones((1, d_inner), jnp.float32),
        'w_outproj': lin(ks[7], d_inner, d_model),
        'w_fc': lin(ks[8], d_model, c_out),
        'b_fc': 0.01 * jax.random.normal(ks[9], (1, c_out), jnp.float32),
    }


def reference_forward(xc, p, cfg):
    """Pure-JAX reference (same math as torch Model + mamba_ssm slow path)."""
    hi = jax.lax.Precision.HIGHEST
    d_inner, d_state = cfg['d_inner'], cfg['d_state']
    d_conv, dt_rank, pred_len = cfg['d_conv'], cfg['dt_rank'], cfg['pred_len']
    batch, seq_len, _ = xc.shape
    x = jnp.matmul(xc, p['w_in'], precision=hi) + p['b_in']
    xz = jnp.matmul(x, p['w_inproj'], precision=hi)
    xm, z = xz[..., :d_inner], xz[..., d_inner:]
    pad = jnp.zeros((batch, d_conv - 1, d_inner), jnp.float32)
    xpad = jnp.concatenate([pad, xm], axis=1)
    acc = p['conv_b'][None]
    for k in range(d_conv):
        acc = acc + xpad[:, k:k + seq_len, :] * p['conv_w'][k]
    u = _silu(acc)
    x_dbl = jnp.matmul(u, p['w_xproj'], precision=hi)
    dt = _softplus(jnp.matmul(x_dbl[..., :dt_rank], p['w_dtproj'], precision=hi)
                   + p['b_dtproj'])
    b_mat = x_dbl[..., dt_rank:dt_rank + d_state]
    c_mat = x_dbl[..., dt_rank + d_state:]
    a_mat = -jnp.exp(p['a_log'])
    h = jnp.zeros((batch, d_inner, d_state), jnp.float32)
    ys = []
    for i in range(seq_len):
        da = jnp.exp(dt[:, i, :, None] * a_mat)
        dbu = dt[:, i, :, None] * b_mat[:, i, None, :] * u[:, i, :, None]
        h = da * h + dbu
        ys.append(jnp.sum(h * c_mat[:, i, None, :], axis=-1))
    y = jnp.stack(ys, axis=1)
    y = y + u * p['d_skip']
    y = y * _silu(z)
    ym = jnp.matmul(y, p['w_outproj'], precision=hi)
    return jnp.matmul(ym[:, -pred_len:, :], p['w_fc'], precision=hi) + p['b_fc']


if __name__ == "__main__":
    jax.config.update("jax_default_matmul_precision", "highest")

    cfg = dict(enc_in=5, mark_enc_in=4, d_model=32, d_state=16, d_conv=4,
               expand=2, c_out=4, pred_len=4, seq_len=8)
    cfg['input_size'] = cfg['enc_in'] + cfg['mark_enc_in']
    cfg['d_inner'] = cfg['expand'] * cfg['d_model']
    cfg['dt_rank'] = math.ceil(cfg['d_model'] / 16)

    key = jax.random.PRNGKey(0)
    kp, kx1, kx2, kd1, kd2 = jax.random.split(key, 5)
    params = init_params(kp, cfg)

    batch = 2
    x_enc = jax.random.normal(kx1, (batch, cfg['seq_len'], cfg['enc_in']), jnp.float32)
    x_mark_enc = jax.random.normal(kx2, (batch, cfg['seq_len'], cfg['mark_enc_in']),
                                   jnp.float32)
    x_dec = jax.random.normal(kd1, (batch, cfg['pred_len'], cfg['enc_in']), jnp.float32)
    x_mark_dec = jax.random.normal(kd2, (batch, cfg['pred_len'], cfg['mark_enc_in']),
                                   jnp.float32)

    ref = reference_forward(jnp.concatenate([x_enc, x_mark_enc], axis=-1), params, cfg)

    # float32 path: must closely match the pure-JAX (torch-equivalent) reference.
    out_f32 = mamba_forecast(x_enc, x_mark_enc, x_dec, x_mark_dec, params, cfg,
                             matmul_dtype=jnp.float32)
    out_f32 = jax.block_until_ready(out_f32)
    assert out_f32.shape == (batch, cfg['pred_len'], cfg['c_out'])
    if not bool(jnp.allclose(out_f32, ref, atol=1e-2, rtol=1e-2)):
        raise AssertionError("float32 Pallas kernel mismatch vs pure-JAX reference")

    # bfloat16 matmul path (production setting on v5e/v6e/v7x): sanity check.
    out_bf16 = mamba_forecast(x_enc, x_mark_enc, x_dec, x_mark_dec, params, cfg,
                              matmul_dtype=jnp.bfloat16)
    out_bf16 = jax.block_until_ready(out_bf16)
    if not bool(jnp.allclose(out_bf16, ref, atol=2e-1, rtol=2e-1)):
        raise AssertionError("bfloat16 Pallas kernel diverged from reference")

    print("KERNEL_OK")
</pallas_src>

<mosaic_0001>
module attributes {stable_mosaic.version = 11 : i64} {
  func.func @_mamba_kernel(%arg0: i32, %arg1: memref<8x2x9xf32, #tpu.memory_space<vmem>>, %arg2: memref<9x128xf32, #tpu.memory_space<vmem>>, %arg3: memref<1x128xf32, #tpu.memory_space<vmem>>, %arg4: memref<7x64xf32, #tpu.memory_space<vmem>>, %arg5: memref<64x64xf32, #tpu.memory_space<vmem>>, %arg6: memref<64x32xf32, #tpu.memory_space<vmem>>, %arg7: memref<16x64xf32, #tpu.memory_space<vmem>>, %arg8: memref<64x4xf32, #tpu.memory_space<vmem>>, %arg9: memref<1x4xf32, #tpu.memory_space<vmem>>, %arg10: memref<4x2x4xf32, #tpu.memory_space<vmem>>, %arg11: memref<22x64xf32, #tpu.memory_space<vmem>>, %arg12: memref<8x32x64xf32, #tpu.memory_space<vmem>>, %arg13: memref<8x32x64xf32, #tpu.memory_space<vmem>>, %arg14: memref<4x32x64xf32, #tpu.memory_space<vmem>>, %arg15: memref<4x2x64xf32, #tpu.memory_space<vmem>>) attributes {dimension_semantics = [#tpu.dimension_semantics<parallel>], iteration_bounds = array<i64: 1>, scalar_prefetch = 0 : i64, scratch_operands = 5 : i64, tpu.core_type = #tpu.core_type<tc>, window_params = [{transform_indices = @transform_0, window_bounds = array<i64: 8, 2, 9>}, {pipeline_mode = #tpu.pipeline_mode<synchronous>, transform_indices = @transform_1, window_bounds = array<i64: 9, 128>}, {pipeline_mode = #tpu.pipeline_mode<synchronous>, transform_indices = @transform_2, window_bounds = array<i64: 1, 128>}, {pipeline_mode = #tpu.pipeline_mode<synchronous>, transform_indices = @transform_3, window_bounds = array<i64: 7, 64>}, {pipeline_mode = #tpu.pipeline_mode<synchronous>, transform_indices = @transform_4, window_bounds = array<i64: 64, 64>}, {pipeline_mode = #tpu.pipeline_mode<synchronous>, transform_indices = @transform_5, window_bounds = array<i64: 64, 32>}, {pipeline_mode = #tpu.pipeline_mode<synchronous>, transform_indices = @transform_6, window_bounds = array<i64: 16, 64>}, {pipeline_mode = #tpu.pipeline_mode<synchronous>, transform_indices = @transform_7, window_bounds = array<i64: 64, 4>}, {pipeline_mode = #tpu.pipeline_mode<synchronous>, transform_indices = @transform_8, window_bounds = array<i64: 1, 4>}, {transform_indices = @transform_9, window_bounds = array<i64: 4, 2, 4>}]} {
    %c0 = arith.constant 0 : index
    %c0_0 = arith.constant 0 : index
    %c0_1 = arith.constant 0 : index
    %0 = vector.load %arg1[%c0, %c0_0, %c0_1] : memref<8x2x9xf32, #tpu.memory_space<vmem>>, vector<8x2x9xf32>
    %1 = vector.shape_cast %0 : vector<8x2x9xf32> to vector<16x9xf32>
    %c0_2 = arith.constant 0 : index
    %c0_3 = arith.constant 0 : index
    %2 = vector.load %arg2[%c0_2, %c0_3] : memref<9x128xf32, #tpu.memory_space<vmem>>, vector<9x128xf32>
    %cst = arith.constant dense<0.000000e+00> : vector<16x128xf32>
    %3 = tpu.matmul %1, %2, %cst {dimension_numbers = #tpu.dot_dimension_numbers<[1], [0], [0], [1], [0, 0, 1, 1], [], []>, precision = #tpu.contract_precision<fp32>} : vector<16x9xf32>, vector<9x128xf32>, vector<16x128xf32> -> vector<16x128xf32>
    %c0_4 = arith.constant 0 : index
    %c0_5 = arith.constant 0 : index
    %4 = vector.load %arg3[%c0_4, %c0_5] : memref<1x128xf32, #tpu.memory_space<vmem>>, vector<1x128xf32>
    %5 = vector.broadcast %4 : vector<1x128xf32> to vector<16x128xf32>
    %6 = arith.addf %3, %5 : vector<16x128xf32>
    %7 = vector.extract_strided_slice %6 {offsets = [0, 0], sizes = [16, 64], strides = [1, 1]} : vector<16x128xf32> to vector<16x64xf32>
    %8 = vector.extract_strided_slice %6 {offsets = [8, 64], sizes = [8, 64], strides = [1, 1]} : vector<16x128xf32> to vector<8x64xf32>
    %c0_6 = arith.constant 0 : index
    %c0_7 = arith.constant 0 : index
    %9 = vector.load %arg4[%c0_6, %c0_7] : memref<7x64xf32, #tpu.memory_space<vmem>>, vector<7x64xf32>
    %10 = vector.extract_strided_slice %9 {offsets = [4, 0], sizes = [1, 64], strides = [1, 1]} : vector<7x64xf32> to vector<1x64xf32>
    %11 = vector.extract_strided_slice %9 {offsets = [5, 0], sizes = [1, 64], strides = [1, 1]} : vector<7x64xf32> to vector<1x64xf32>
    %12 = vector.extract_strided_slice %9 {offsets = [6, 0], sizes = [1, 64], strides = [1, 1]} : vector<7x64xf32> to vector<1x64xf32>
    %cst_8 = arith.constant 0.000000e+00 : f32
    %13 = vector.broadcast %cst_8 : f32 to vector<6x64xf32>
    %c0_9 = arith.constant 0 : index
    %c0_10 = arith.constant 0 : index
    %14 = vector.load %arg11[%c0_9, %c0_10] : memref<22x64xf32, #tpu.memory_space<vmem>>, vector<6x64xf32>
    tpu.vector_store %arg11[%c0_9, %c0_10], %13 {strides = array<i32>} : memref<22x64xf32, #tpu.memory_space<vmem>>, vector<6x64xf32>,
    %c6 = arith.constant 6 : index
    %c0_11 = arith.constant 0 : index
    %15 = vector.load %arg11[%c6, %c0_11] : memref<22x64xf32, #tpu.memory_space<vmem>>, vector<16x64xf32>
    tpu.vector_store %arg11[%c6, %c0_11], %7 {strides = array<i32>} : memref<22x64xf32, #tpu.memory_space<vmem>>, vector<16x64xf32>,
    %c0_12 = arith.constant 0 : index
    %c0_13 = arith.constant 0 : index
    %16 = vector.load %arg11[%c0_12, %c0_13] : memref<22x64xf32, #tpu.memory_space<vmem>>, vector<16x64xf32>
    %17 = vector.extract_strided_slice %9 {offsets = [0, 0], sizes = [1, 64], strides = [1, 1]} : vector<7x64xf32> to vector<1x64xf32>
    %18 = vector.broadcast %17 : vector<1x64xf32> to vector<16x64xf32>
    %19 = arith.mulf %16, %18 : vector<16x64xf32>
    %20 = vector.broadcast %10 : vector<1x64xf32> to vector<16x64xf32>
    %21 = arith.addf %20, %19 : vector<16x64xf32>
    %c2 = arith.constant 2 : index
    %c0_14 = arith.constant 0 : index
    %22 = vector.load %arg11[%c2, %c0_14] : memref<22x64xf32, #tpu.memory_space<vmem>>, vector<16x64xf32>
    %23 = vector.extract_strided_slice %9 {offsets = [1, 0], sizes = [1, 64], strides = [1, 1]} : vector<7x64xf32> to vector<1x64xf32>
    %24 = vector.broadcast %23 : vector<1x64xf32> to vector<16x64xf32>
    %25 = arith.mulf %22, %24 : vector<16x64xf32>
    %26 = arith.addf %21, %25 : vector<16x64xf32>
    %c4 = arith.constant 4 : index
    %c0_15 = arith.constant 0 : index
    %27 = vector.load %arg11[%c4, %c0_15] : memref<22x64xf32, #tpu.memory_space<vmem>>, vector<16x64xf32>
    %28 = vector.extract_strided_slice %9 {offsets = [2, 0], sizes = [1, 64], strides = [1, 1]} : vector<7x64xf32> to vector<1x64xf32>
    %29 = vector.broadcast %28 : vector<1x64xf32> to vector<16x64xf32>
    %30 = arith.mulf %27, %29 : vector<16x64xf32>
    %31 = arith.addf %26, %30 : vector<16x64xf32>
    %c6_16 = arith.constant 6 : index
    %c0_17 = arith.constant 0 : index
    %32 = vector.load %arg11[%c6_16, %c0_17] : memref<22x64xf32, #tpu.memory_space<vmem>>, vector<16x64xf32>
    %33 = vector.extract_strided_slice %9 {offsets = [3, 0], sizes = [1, 64], strides = [1, 1]} : vector<7x64xf32> to vector<1x64xf32>
    %34 = vector.broadcast %33 : vector<1x64xf32> to vector<16x64xf32>
    %35 = arith.mulf %32, %34 : vector<16x64xf32>
    %36 = arith.addf %31, %35 : vector<16x64xf32>
    %37 = arith.negf %36 : vector<16x64xf32>
    %38 = math.exp %37 : vector<16x64xf32>
    %cst_18 = arith.constant 1.000000e+00 : f32
    %39 = vector.broadcast %cst_18 : f32 to vector<16x64xf32>
    %40 = arith.addf %39, %38 : vector<16x64xf32>
    %41 = arith.divf %39, %40 : vector<16x64xf32>
    %42 = arith.mulf %36, %41 : vector<16x64xf32>
    %c0_19 = arith.constant 0 : index
    %c0_20 = arith.constant 0 : index
    %43 = vector.load %arg5[%c0_19, %c0_20] : memref<64x64xf32, #tpu.memory_space<vmem>>, vector<64x64xf32>
    %cst_21 = arith.constant dense<0.000000e+00> : vector<16x64xf32>
    %44 = tpu.matmul %42, %43, %cst_21 {dimension_numbers = #tpu.dot_dimension_numbers<[1], [0], [0], [1], [0, 0, 1, 1], [], []>, precision = #tpu.contract_precision<fp32>} : vector<16x64xf32>, vector<64x64xf32>, vector<16x64xf32> -> vector<16x64xf32>
    %45 = vector.broadcast %11 : vector<1x64xf32> to vector<16x64xf32>
    %46 = arith.addf %44, %45 : vector<16x64xf32>
    %cst_22 = arith.constant 2.000000e+01 : f32
    %47 = vector.broadcast %cst_22 : f32 to vector<16x64xf32>
    %48 = arith.cmpf ogt, %46, %47 : vector<16x64xf32>
    %49 = math.exp %46 : vector<16x64xf32>
    %50 = math.log1p %49 : vector<16x64xf32>
    %51 = arith.select %48, %46, %50 : vector<16x64xi1>, vector<16x64xf32>
    %c0_23 = arith.constant 0 : index
    %c0_24 = arith.constant 0 : index
    %52 = vector.load %arg6[%c0_23, %c0_24] : memref<64x32xf32, #tpu.memory_space<vmem>>, vector<64x32xf32>
    %cst_25 = arith.constant dense<0.000000e+00> : vector<16x32xf32>
    %53 = tpu.matmul %42, %52, %cst_25 {dimension_numbers = #tpu.dot_dimension_numbers<[1], [0], [0], [1], [0, 0, 1, 1], [], []>, precision = #tpu.contract_precision<fp32>} : vector<16x64xf32>, vector<64x32xf32>, vector<16x32xf32> -> vector<16x32xf32>
    %54 = arith.mulf %51, %42 : vector<16x64xf32>
    %c0_26 = arith.constant 0 : index
    %c0_27 = arith.constant 0 : index
    %55 = vector.load %arg7[%c0_26, %c0_27] : memref<16x64xf32, #tpu.memory_space<vmem>>, vector<16x64xf32>
    %cst_28 = arith.constant 0.000000e+00 : f32
    %56 = vector.broadcast %cst_28 : f32 to vector<32x64xf32>
    %57 = vector.shape_cast %51 : vector<16x64xf32> to vector<8x2x64xf32>
    %58 = vector.shape_cast %54 : vector<16x64xf32> to vector<8x2x64xf32>
    %59 = vector.extract_strided_slice %53 {offsets = [0, 0], sizes = [16, 16], strides = [1, 1]} : vector<16x32xf32> to vector<16x16xf32>
    %60 = vector.shape_cast %59 : vector<16x16xf32> to vector<8x2x16xf32>
    %61 = vector.shape_cast %57 : vector<8x2x64xf32> to vector<8x2x1x64xf32>
    %62 = vector.shape_cast %55 : vector<16x64xf32> to vector<1x1x16x64xf32>
    %63 = vector.broadcast %61 : vector<8x2x1x64xf32> to vector<8x2x16x64xf32>
    %64 = vector.broadcast %62 : vector<1x1x16x64xf32> to vector<8x2x16x64xf32>
    %65 = arith.mulf %63, %64 : vector<8x2x16x64xf32>
    %66 = math.exp %65 : vector<8x2x16x64xf32>
    %67 = vector.shape_cast %66 : vector<8x2x16x64xf32> to vector<8x32x64xf32>
    %c0_29 = arith.constant 0 : index
    %c0_30 = arith.constant 0 : index
    %c0_31 = arith.constant 0 : index
    %68 = vector.load %arg12[%c0_29, %c0_30, %c0_31] : memref<8x32x64xf32, #tpu.memory_space<vmem>>, vector<8x32x64xf32>
    tpu.vector_store %arg12[%c0_29, %c0_30, %c0_31], %67 {strides = array<i32>} : memref<8x32x64xf32, #tpu.memory_space<vmem>>, vector<8x32x64xf32>,
    %69 = vector.shape_cast %58 : vector<8x2x64xf32> to vector<8x2x1x64xf32>
    %70 = vector.shape_cast %60 : vector<8x2x16xf32> to vector<8x2x16x1xf32>
    %71 = vector.broadcast %69 : vector<8x2x1x64xf32> to vector<8x2x16x64xf32>
    %72 = vector.broadcast %70 : vector<8x2x16x1xf32> to vector<8x2x16x64xf32>
    %73 = arith.mulf %71, %72 : vector<8x2x16x64xf32>
    %74 = vector.shape_cast %73 : vector<8x2x16x64xf32> to vector<8x32x64xf32>
    %c0_32 = arith.constant 0 : index
    %c0_33 = arith.constant 0 : index
    %c0_34 = arith.constant 0 : index
    %75 = vector.load %arg13[%c0_32, %c0_33, %c0_34] : memref<8x32x64xf32, #tpu.memory_space<vmem>>, vector<8x32x64xf32>
    tpu.vector_store %arg13[%c0_32, %c0_33, %c0_34], %74 {strides = array<i32>} : memref<8x32x64xf32, #tpu.memory_space<vmem>>, vector<8x32x64xf32>,
    %76 = vector.extract_strided_slice %53 {offsets = [8, 16], sizes = [8, 16], strides = [1, 1]} : vector<16x32xf32> to vector<8x16xf32>
    %77 = vector.shape_cast %76 : vector<8x16xf32> to vector<4x2x16xf32>
    %78 = vector.shape_cast %77 : vector<4x2x16xf32> to vector<4x2x16x1xf32>
    %79 = vector.shape_cast %78 : vector<4x2x16x1xf32> to vector<4x2x16x1xf32>
    %80 = vector.broadcast %79 : vector<4x2x16x1xf32> to vector<4x2x16x64xf32>
    %81 = vector.shape_cast %80 : vector<4x2x16x64xf32> to vector<4x32x64xf32>
    %c0_35 = arith.constant 0 : index
    %c0_36 = arith.constant 0 : index
    %c0_37 = arith.constant 0 : index
    %82 = vector.load %arg14[%c0_35, %c0_36, %c0_37] : memref<4x32x64xf32, #tpu.memory_space<vmem>>, vector<4x32x64xf32>
    tpu.vector_store %arg14[%c0_35, %c0_36, %c0_37], %81 {strides = array<i32>} : memref<4x32x64xf32, #tpu.memory_space<vmem>>, vector<4x32x64xf32>,
    %c0_i32 = arith.constant 0 : i32
    %83 = arith.index_cast %c0_i32 : i32 to index
    %c0_38 = arith.constant 0 : index
    %c0_39 = arith.constant 0 : index
    %84 = vector.load %arg12[%83, %c0_38, %c0_39] : memref<8x32x64xf32, #tpu.memory_space<vmem>>, vector<1x32x64xf32>
    %85 = vector.shape_cast %84 : vector<1x32x64xf32> to vector<32x64xf32>
    %86 = arith.mulf %85, %56 : vector<32x64xf32>
    %87 = arith.index_cast %c0_i32 : i32 to index
    %c0_40 = arith.constant 0 : index
    %c0_41 = arith.constant 0 : index
    %88 = vector.load %arg13[%87, %c0_40, %c0_41] : memref<8x32x64xf32, #tpu.memory_space<vmem>>, vector<1x32x64xf32>
    %89 = vector.shape_cast %88 : vector<1x32x64xf32> to vector<32x64xf32>
    %90 = arith.addf %86, %89 : vector<32x64xf32>
    %c1_i32 = arith.constant 1 : i32
    %91 = arith.index_cast %c1_i32 : i32 to index
    %c0_42 = arith.constant 0 : index
    %c0_43 = arith.constant 0 : index
    %92 = vector.load %arg12[%91, %c0_42, %c0_43] : memref<8x32x64xf32, #tpu.memory_space<vmem>>, vector<1x32x64xf32>
    %93 = vector.shape_cast %92 : vector<1x32x64xf32> to vector<32x64xf32>
    %94 = arith.mulf %93, %90 : vector<32x64xf32>
    %95 = arith.index_cast %c1_i32 : i32 to index
    %c0_44 = arith.constant 0 : index
    %c0_45 = arith.constant 0 : index
    %96 = vector.load %arg13[%95, %c0_44, %c0_45] : memref<8x32x64xf32, #tpu.memory_space<vmem>>, vector<1x32x64xf32>
    %97 = vector.shape_cast %96 : vector<1x32x64xf32> to vector<32x64xf32>
    %98 = arith.addf %94, %97 : vector<32x64xf32>
    %c2_i32 = arith.constant 2 : i32
    %99 = arith.index_cast %c2_i32 : i32 to index
    %c0_46 = arith.constant 0 : index
    %c0_47 = arith.constant 0 : index
    %100 = vector.load %arg12[%99, %c0_46, %c0_47] : memref<8x32x64xf32, #tpu.memory_space<vmem>>, vector<1x32x64xf32>
    %101 = vector.shape_cast %100 : vector<1x32x64xf32> to vector<32x64xf32>
    %102 = arith.mulf %101, %98 : vector<32x64xf32>
    %103 = arith.index_cast %c2_i32 : i32 to index
    %c0_48 = arith.constant 0 : index
    %c0_49 = arith.constant 0 : index
    %104 = vector.load %arg13[%103, %c0_48, %c0_49] : memref<8x32x64xf32, #tpu.memory_space<vmem>>, vector<1x32x64xf32>
    %105 = vector.shape_cast %104 : vector<1x32x64xf32> to vector<32x64xf32>
    %106 = arith.addf %102, %105 : vector<32x64xf32>
    %c3_i32 = arith.constant 3 : i32
    %107 = arith.index_cast %c3_i32 : i32 to index
    %c0_50 = arith.constant 0 : index
    %c0_51 = arith.constant 0 : index
    %108 = vector.load %arg12[%107, %c0_50, %c0_51] : memref<8x32x64xf32, #tpu.memory_space<vmem>>, vector<1x32x64xf32>
    %109 = vector.shape_cast %108 : vector<1x32x64xf32> to vector<32x64xf32>
    %110 = arith.mulf %109, %106 : vector<32x64xf32>
    %111 = arith.index_cast %c3_i32 : i32 to index
    %c0_52 = arith.constant 0 : index
    %c0_53 = arith.constant 0 : index
    %112 = vector.load %arg13[%111, %c0_52, %c0_53] : memref<8x32x64xf32, #tpu.memory_space<vmem>>, vector<1x32x64xf32>
    %113 = vector.shape_cast %112 : vector<1x32x64xf32> to vector<32x64xf32>
    %114 = arith.addf %110, %113 : vector<32x64xf32>
    %c4_i32 = arith.constant 4 : i32
    %c4_i32_54 = arith.constant 4 : i32
    %115 = arith.index_cast %c4_i32_54 : i32 to index
    %c0_55 = arith.constant 0 : index
    %c0_56 = arith.constant 0 : index
    %116 = vector.load %arg12[%115, %c0_55, %c0_56] : memref<8x32x64xf32, #tpu.memory_space<vmem>>, vector<1x32x64xf32>
    %117 = vector.shape_cast %116 : vector<1x32x64xf32> to vector<32x64xf32>
    %118 = arith.mulf %117, %114 : vector<32x64xf32>
    %119 = arith.index_cast %c4_i32_54 : i32 to index
    %c0_57 = arith.constant 0 : index
    %c0_58 = arith.constant 0 : index
    %120 = vector.load %arg13[%119, %c0_57, %c0_58] : memref<8x32x64xf32, #tpu.memory_space<vmem>>, vector<1x32x64xf32>
    %121 = vector.shape_cast %120 : vector<1x32x64xf32> to vector<32x64xf32>
    %122 = arith.addf %118, %121 : vector<32x64xf32>
    %c4_i32_59 = arith.constant 4 : i32
    %123 = arith.subi %c4_i32_54, %c4_i32_59 : i32
    %124 = arith.index_cast %123 : i32 to index
    %c0_60 = arith.constant 0 : index
    %c0_61 = arith.constant 0 : index
    %125 = vector.load %arg14[%124, %c0_60, %c0_61] : memref<4x32x64xf32, #tpu.memory_space<vmem>>, vector<1x32x64xf32>
    %126 = vector.shape_cast %125 : vector<1x32x64xf32> to vector<32x64xf32>
    %127 = arith.mulf %122, %126 : vector<32x64xf32>
    %128 = vector.shape_cast %127 : vector<32x64xf32> to vector<2x16x64xf32>
    %cst_62 = arith.constant dense<0.000000e+00> : vector<2x64xf32>
    %129 = vector.multi_reduction <add>, %128, %cst_62 [1] : vector<2x16x64xf32> to vector<2x64xf32>
    %c0_i32_63 = arith.constant 0 : i32
    %130 = arith.addi %c0_i32_63, %c4_i32_54 : i32
    %c4_i32_64 = arith.constant 4 : i32
    %131 = arith.subi %130, %c4_i32_64 : i32
    %132 = arith.index_cast %131 : i32 to index
    %c0_65 = arith.constant 0 : index
    %c0_66 = arith.constant 0 : index
    %133 = vector.load %arg15[%132, %c0_65, %c0_66] : memref<4x2x64xf32, #tpu.memory_space<vmem>>, vector<1x2x64xf32>
    %134 = vector.shape_cast %133 : vector<1x2x64xf32> to vector<2x64xf32>
    %135 = vector.shape_cast %129 : vector<2x64xf32> to vector<1x2x64xf32>
    tpu.vector_store %arg15[%132, %c0_65, %c0_66], %135 {strides = array<i32>} : memref<4x2x64xf32, #tpu.memory_space<vmem>>, vector<1x2x64xf32>,
    %c5_i32 = arith.constant 5 : i32
    %136 = arith.index_cast %c5_i32 : i32 to index
    %c0_67 = arith.constant 0 : index
    %c0_68 = arith.constant 0 : index
    %137 = vector.load %arg12[%136, %c0_67, %c0_68] : memref<8x32x64xf32, #tpu.memory_space<vmem>>, vector<1x32x64xf32>
    %138 = vector.shape_cast %137 : vector<1x32x64xf32> to vector<32x64xf32>
    %139 = arith.mulf %138, %122 : vector<32x64xf32>
    %140 = arith.index_cast %c5_i32 : i32 to index
    %c0_69 = arith.constant 0 : index
    %c0_70 = arith.constant 0 : index
    %141 = vector.load %arg13[%140, %c0_69, %c0_70] : memref<8x32x64xf32, #tpu.memory_space<vmem>>, vector<1x32x64xf32>
    %142 = vector.shape_cast %141 : vector<1x32x64xf32> to vector<32x64xf32>
    %143 = arith.addf %139, %142 : vector<32x64xf32>
    %c4_i32_71 = arith.constant 4 : i32
    %144 = arith.subi %c5_i32, %c4_i32_71 : i32
    %145 = arith.index_cast %144 : i32 to index
    %c0_72 = arith.constant 0 : index
    %c0_73 = arith.constant 0 : index
    %146 = vector.load %arg14[%145, %c0_72, %c0_73] : memref<4x32x64xf32, #tpu.memory_space<vmem>>, vector<1x32x64xf32>
    %147 = vector.shape_cast %146 : vector<1x32x64xf32> to vector<32x64xf32>
    %148 = arith.mulf %143, %147 : vector<32x64xf32>
    %149 = vector.shape_cast %148 : vector<32x64xf32> to vector<2x16x64xf32>
    %cst_74 = arith.constant dense<0.000000e+00> : vector<2x64xf32>
    %150 = vector.multi_reduction <add>, %149, %cst_74 [1] : vector<2x16x64xf32> to vector<2x64xf32>
    %c0_i32_75 = arith.constant 0 : i32
    %151 = arith.addi %c0_i32_75, %c5_i32 : i32
    %c4_i32_76 = arith.constant 4 : i32
    %152 = arith.subi %151, %c4_i32_76 : i32
    %153 = arith.index_cast %152 : i32 to index
    %c0_77 = arith.constant 0 : index
    %c0_78 = arith.constant 0 : index
    %154 = vector.load %arg15[%153, %c0_77, %c0_78] : memref<4x2x64xf32, #tpu.memory_space<vmem>>, vector<1x2x64xf32>
    %155 = vector.shape_cast %154 : vector<1x2x64xf32> to vector<2x64xf32>
    %156 = vector.shape_cast %150 : vector<2x64xf32> to vector<1x2x64xf32>
    tpu.vector_store %arg15[%153, %c0_77, %c0_78], %156 {strides = array<i32>} : memref<4x2x64xf32, #tpu.memory_space<vmem>>, vector<1x2x64xf32>,
    %c6_i32 = arith.constant 6 : i32
    %157 = arith.index_cast %c6_i32 : i32 to index
    %c0_79 = arith.constant 0 : index
    %c0_80 = arith.constant 0 : index
    %158 = vector.load %arg12[%157, %c0_79, %c0_80] : memref<8x32x64xf32, #tpu.memory_space<vmem>>, vector<1x32x64xf32>
    %159 = vector.shape_cast %158 : vector<1x32x64xf32> to vector<32x64xf32>
    %160 = arith.mulf %159, %143 : vector<32x64xf32>
    %161 = arith.index_cast %c6_i32 : i32 to index
    %c0_81 = arith.constant 0 : index
    %c0_82 = arith.constant 0 : index
    %162 = vector.load %arg13[%161, %c0_81, %c0_82] : memref<8x32x64xf32, #tpu.memory_space<vmem>>, vector<1x32x64xf32>
    %163 = vector.shape_cast %162 : vector<1x32x64xf32> to vector<32x64xf32>
    %164 = arith.addf %160, %163 : vector<32x64xf32>
    %c4_i32_83 = arith.constant 4 : i32
    %165 = arith.subi %c6_i32, %c4_i32_83 : i32
    %166 = arith.index_cast %165 : i32 to index
    %c0_84 = arith.constant 0 : index
    %c0_85 = arith.constant 0 : index
    %167 = vector.load %arg14[%166, %c0_84, %c0_85] : memref<4x32x64xf32, #tpu.memory_space<vmem>>, vector<1x32x64xf32>
    %168 = vector.shape_cast %167 : vector<1x32x64xf32> to vector<32x64xf32>
    %169 = arith.mulf %164, %168 : vector<32x64xf32>
    %170 = vector.shape_cast %169 : vector<32x64xf32> to vector<2x16x64xf32>
    %cst_86 = arith.constant dense<0.000000e+00> : vector<2x64xf32>
    %171 = vector.multi_reduction <add>, %170, %cst_86 [1] : vector<2x16x64xf32> to vector<2x64xf32>
    %c0_i32_87 = arith.constant 0 : i32
    %172 = arith.addi %c0_i32_87, %c6_i32 : i32
    %c4_i32_88 = arith.constant 4 : i32
    %173 = arith.subi %172, %c4_i32_88 : i32
    %174 = arith.index_cast %173 : i32 to index
    %c0_89 = arith.constant 0 : index
    %c0_90 = arith.constant 0 : index
    %175 = vector.load %arg15[%174, %c0_89, %c0_90] : memref<4x2x64xf32, #tpu.memory_space<vmem>>, vector<1x2x64xf32>
    %176 = vector.shape_cast %175 : vector<1x2x64xf32> to vector<2x64xf32>
    %177 = vector.shape_cast %171 : vector<2x64xf32> to vector<1x2x64xf32>
    tpu.vector_store %arg15[%174, %c0_89, %c0_90], %177 {strides = array<i32>} : memref<4x2x64xf32, #tpu.memory_space<vmem>>, vector<1x2x64xf32>,
    %c7_i32 = arith.constant 7 : i32
    %178 = arith.index_cast %c7_i32 : i32 to index
    %c0_91 = arith.constant 0 : index
    %c0_92 = arith.constant 0 : index
    %179 = vector.load %arg12[%178, %c0_91, %c0_92] : memref<8x32x64xf32, #tpu.memory_space<vmem>>, vector<1x32x64xf32>
    %180 = vector.shape_cast %179 : vector<1x32x64xf32> to vector<32x64xf32>
    %181 = arith.mulf %180, %164 : vector<32x64xf32>
    %182 = arith.index_cast %c7_i32 : i32 to index
    %c0_93 = arith.constant 0 : index
    %c0_94 = arith.constant 0 : index
    %183 = vector.load %arg13[%182, %c0_93, %c0_94] : memref<8x32x64xf32, #tpu.memory_space<vmem>>, vector<1x32x64xf32>
    %184 = vector.shape_cast %183 : vector<1x32x64xf32> to vector<32x64xf32>
    %185 = arith.addf %181, %184 : vector<32x64xf32>
    %c4_i32_95 = arith.constant 4 : i32
    %186 = arith.subi %c7_i32, %c4_i32_95 : i32
    %187 = arith.index_cast %186 : i32 to index
    %c0_96 = arith.constant 0 : index
    %c0_97 = arith.constant 0 : index
    %188 = vector.load %arg14[%187, %c0_96, %c0_97] : memref<4x32x64xf32, #tpu.memory_space<vmem>>, vector<1x32x64xf32>
    %189 = vector.shape_cast %188 : vector<1x32x64xf32> to vector<32x64xf32>
    %190 = arith.mulf %185, %189 : vector<32x64xf32>
    %191 = vector.shape_cast %190 : vector<32x64xf32> to vector<2x16x64xf32>
    %cst_98 = arith.constant dense<0.000000e+00> : vector<2x64xf32>
    %192 = vector.multi_reduction <add>, %191, %cst_98 [1] : vector<2x16x64xf32> to vector<2x64xf32>
    %c0_i32_99 = arith.constant 0 : i32
    %193 = arith.addi %c0_i32_99, %c7_i32 : i32
    %c4_i32_100 = arith.constant 4 : i32
    %194 = arith.subi %193, %c4_i32_100 : i32
    %195 = arith.index_cast %194 : i32 to index
    %c0_101 = arith.constant 0 : index
    %c0_102 = arith.constant 0 : index
    %196 = vector.load %arg15[%195, %c0_101, %c0_102] : memref<4x2x64xf32, #tpu.memory_space<vmem>>, vector<1x2x64xf32>
    %197 = vector.shape_cast %196 : vector<1x2x64xf32> to vector<2x64xf32>
    %198 = vector.shape_cast %192 : vector<2x64xf32> to vector<1x2x64xf32>
    tpu.vector_store %arg15[%195, %c0_101, %c0_102], %198 {strides = array<i32>} : memref<4x2x64xf32, #tpu.memory_space<vmem>>, vector<1x2x64xf32>,
    %c4_i32_103 = arith.constant 4 : i32
    %199 = vector.extract_strided_slice %42 {offsets = [8, 0], sizes = [8, 64], strides = [1, 1]} : vector<16x64xf32> to vector<8x64xf32>
    %c0_104 = arith.constant 0 : index
    %c0_105 = arith.constant 0 : index
    %c0_106 = arith.constant 0 : index
    %200 = vector.load %arg15[%c0_104, %c0_105, %c0_106] : memref<4x2x64xf32, #tpu.memory_space<vmem>>, vector<4x2x64xf32>
    %201 = vector.shape_cast %200 : vector<4x2x64xf32> to vector<8x64xf32>
    %202 = vector.broadcast %12 : vector<1x64xf32> to vector<8x64xf32>
    %203 = arith.mulf %199, %202 : vector<8x64xf32>
    %204 = arith.addf %201, %203 : vector<8x64xf32>
    %205 = arith.negf %8 : vector<8x64xf32>
    %206 = math.exp %205 : vector<8x64xf32>
    %cst_107 = arith.constant 1.000000e+00 : f32
    %207 = vector.broadcast %cst_107 : f32 to vector<8x64xf32>
    %208 = arith.addf %207, %206 : vector<8x64xf32>
    %209 = arith.divf %207, %208 : vector<8x64xf32>
    %210 = arith.mulf %8, %209 : vector<8x64xf32>
    %211 = arith.mulf %204, %210 : vector<8x64xf32>
    %c0_108 = arith.constant 0 : index
    %c0_109 = arith.constant 0 : index
    %212 = vector.load %arg8[%c0_108, %c0_109] : memref<64x4xf32, #tpu.memory_space<vmem>>, vector<64x4xf32>
    %cst_110 = arith.constant dense<0.000000e+00> : vector<8x4xf32>
    %213 = tpu.matmul %211, %212, %cst_110 {dimension_numbers = #tpu.dot_dimension_numbers<[1], [0], [0], [1], [0, 0, 1, 1], [], []>, precision = #tpu.contract_precision<fp32>} : vector<8x64xf32>, vector<64x4xf32>, vector<8x4xf32> -> vector<8x4xf32>
    %c0_111 = arith.constant 0 : index
    %c0_112 = arith.constant 0 : index
    %214 = vector.load %arg9[%c0_111, %c0_112] : memref<1x4xf32, #tpu.memory_space<vmem>>, vector<1x4xf32>
    %215 = vector.broadcast %214 : vector<1x4xf32> to vector<8x4xf32>
    %216 = arith.addf %213, %215 : vector<8x4xf32>
    %217 = vector.shape_cast %216 : vector<8x4xf32> to vector<4x2x4xf32>
    %c0_113 = arith.constant 0 : index
    %c0_114 = arith.constant 0 : index
    %c0_115 = arith.constant 0 : index
    %218 = vector.load %arg10[%c0_113, %c0_114, %c0_115] : memref<4x2x4xf32, #tpu.memory_space<vmem>>, vector<4x2x4xf32>
    tpu.vector_store %arg10[%c0_113, %c0_114, %c0_115], %217 {strides = array<i32>} : memref<4x2x4xf32, #tpu.memory_space<vmem>>, vector<4x2x4xf32>,
    return
  }
  func.func @transform_0(%arg0: i32) -> (i32, i32, i32) {
    %c0_i32 = arith.constant 0 : i32
    %c0_i32_0 = arith.constant 0 : i32
    %c0_i32_1 = arith.constant 0 : i32
    return %c0_i32, %arg0, %c0_i32_0 : i32, i32, i32
  }
  func.func @transform_1(%arg0: i32) -> (i32, i32) {
    %c0_i32 = arith.constant 0 : i32
    %c0_i32_0 = arith.constant 0 : i32
    %c0_i32_1 = arith.constant 0 : i32
    return %c0_i32, %c0_i32_0 : i32, i32
  }
  func.func @transform_2(%arg0: i32) -> (i32, i32) {
    %c0_i32 = arith.constant 0 : i32
    %c0_i32_0 = arith.constant 0 : i32
    %c0_i32_1 = arith.constant 0 : i32
    return %c0_i32, %c0_i32_0 : i32, i32
  }
  func.func @transform_3(%arg0: i32) -> (i32, i32) {
    %c0_i32 = arith.constant 0 : i32
    %c0_i32_0 = arith.constant 0 : i32
    %c0_i32_1 = arith.constant 0 : i32
    return %c0_i32, %c0_i32_0 : i32, i32
  }
  func.func @transform_4(%arg0: i32) -> (i32, i32) {
    %c0_i32 = arith.constant 0 : i32
    %c0_i32_0 = arith.constant 0 : i32
    %c0_i32_1 = arith.constant 0 : i32
    return %c0_i32, %c0_i32_0 : i32, i32
  }
  func.func @transform_5(%arg0: i32) -> (i32, i32) {
    %c0_i32 = arith.constant 0 : i32
    %c0_i32_0 = arith.constant 0 : i32
    %c0_i32_1 = arith.constant 0 : i32
    return %c0_i32, %c0_i32_0 : i32, i32
  }
  func.func @transform_6(%arg0: i32) -> (i32, i32) {
    %c0_i32 = arith.constant 0 : i32
    %c0_i32_0 = arith.constant 0 : i32
    %c0_i32_1 = arith.constant 0 : i32
    return %c0_i32, %c0_i32_0 : i32, i32
  }
  func.func @transform_7(%arg0: i32) -> (i32, i32) {
    %c0_i32 = arith.constant 0 : i32
    %c0_i32_0 = arith.constant 0 : i32
    %c0_i32_1 = arith.constant 0 : i32
    return %c0_i32, %c0_i32_0 : i32, i32
  }
  func.func @transform_8(%arg0: i32) -> (i32, i32) {
    %c0_i32 = arith.constant 0 : i32
    %c0_i32_0 = arith.constant 0 : i32
    %c0_i32_1 = arith.constant 0 : i32
    return %c0_i32, %c0_i32_0 : i32, i32
  }
  func.func @transform_9(%arg0: i32) -> (i32, i32, i32) {
    %c0_i32 = arith.constant 0 : i32
    %c0_i32_0 = arith.constant 0 : i32
    %c0_i32_1 = arith.constant 0 : i32
    return %c0_i32, %arg0, %c0_i32_0 : i32, i32, i32
  }
}

</mosaic_0001>

<llo_original>
// kernel: tpu_custom_call.1
$region0: #{tpu_custom_call.1}
  #allocation0 [shape = 'u32[]', space=smem, size = 0x4, offset = 0x4, fixed_abs, tag = 'smem constant byte address 0x4 - core index']
  #allocation1 [shape = 'u32[144,128]{1,0:T(1,128)}', space=vmem, size = 0x12000, scoped, tag = 'internal scratch']
  #allocation2 [shape = 'f32[22,64]{1,0:T(8,128)}', space=vmem, size = 0x3000, scoped, tag = 'scratch operand']
  #allocation3 [shape = 'f32[8,32,64]{2,1,0:T(8,128)}', space=vmem, size = 0x20000, scoped, tag = 'scratch operand']
  #allocation4 [shape = 'f32[8,32,64]{2,1,0:T(8,128)}', space=vmem, size = 0x20000, scoped, tag = 'scratch operand']
  #allocation5 [shape = 'f32[4,32,64]{2,1,0:T(8,128)}', space=vmem, size = 0x10000, scoped, tag = 'scratch operand']
  #allocation6 [shape = 'f32[4,2,64]{2,1,0:T(2,128)}', space=vmem, size = 0x1000, scoped, tag = 'scratch operand']
  %s0 = inlined_call_operand.vmem [shape: f32[8,2,9], index: 0, kind: input, shape index: {}]
  %s1 = inlined_call_operand.vmem [shape: f32[9,128], index: 1, kind: input, shape index: {}]
  %s2 = inlined_call_operand.vmem [shape: f32[1,128], index: 2, kind: input, shape index: {}]
  %s3 = inlined_call_operand.vmem [shape: f32[7,64], index: 3, kind: input, shape index: {}]
  %s4 = inlined_call_operand.vmem [shape: f32[64,64], index: 4, kind: input, shape index: {}]
  %s5 = inlined_call_operand.vmem [shape: f32[64,32], index: 5, kind: input, shape index: {}]
  %s6 = inlined_call_operand.vmem [shape: f32[16,64], index: 6, kind: input, shape index: {}]
  %s7 = inlined_call_operand.vmem [shape: f32[64,4], index: 7, kind: input, shape index: {}]
  %s8 = inlined_call_operand.vmem [shape: f32[1,4], index: 8, kind: input, shape index: {}]
  %s9 = inlined_call_operand.hbm [shape: f32[4,2,4], index: 9, kind: output, shape index: {}]
  %s10 = sld [smem:[#allocation0]]
  $region46: #{tpu_custom_call.1} parent=0
    _
  %s12 = ssub.s32 1, %s10
  %s13 = scalar_select 0, %s12, %s10
  $region1: #{tpu_custom_call.1} parent=0
    #allocation7 [shape = 'u8[4096]{0}', space=vmem, size = 0x1000, scoped, tag = 'output window, operand 0, single buffered']
    #allocation8 [shape = 's32[1]{0}', space=sflag, size = 0x4, scoped, tag = 'scoped memory for tpu_custom_call.1']
    %14 = vsyncpa [#allocation8], 0
    // Predicated region
    $region2: #{tpu_custom_call.1} parent=1 // pred_check
      _
    $region3: #{tpu_custom_call.1} parent=1 // pred_check_branch
      %16 = sbr.rel (0) target = $region5
    $region4: #{tpu_custom_call.1} parent=1 // pred_region
      _
    $region5: #{tpu_custom_call.1} parent=1 // pred_fallthru
      _
    // Predicated region
    $region6: #{tpu_custom_call.1} parent=1 // pred_check
      _
    $region7: #{tpu_custom_call.1} parent=1 // pred_check_branch
      %18 = sbr.rel (0) target = $region9
    $region8: #{tpu_custom_call.1} parent=1 // pred_region
      _
    $region9: #{tpu_custom_call.1} parent=1 // pred_fallthru
      _
    // Predicated region
    $region10: #{tpu_custom_call.1} parent=1 // pred_check
      _
    $region11: #{tpu_custom_call.1} parent=1 // pred_check_branch
      %20 = sbr.rel (0) target = $region13
    $region12: #{tpu_custom_call.1} parent=1 // pred_region
      _
    $region13: #{tpu_custom_call.1} parent=1 // pred_fallthru
      _
    // Predicated region
    $region14: #{tpu_custom_call.1} parent=1 // pred_check
      _
    $region15: #{tpu_custom_call.1} parent=1 // pred_check_branch
      %22 = sbr.rel (0) target = $region17
    $region16: #{tpu_custom_call.1} parent=1 // pred_region
      _
    $region17: #{tpu_custom_call.1} parent=1 // pred_fallthru
      _
    // Predicated region
    $region18: #{tpu_custom_call.1} parent=1 // pred_check
      _
    $region19: #{tpu_custom_call.1} parent=1 // pred_check_branch
      %24 = sbr.rel (0) target = $region21
    $region20: #{tpu_custom_call.1} parent=1 // pred_region
      _
    $region21: #{tpu_custom_call.1} parent=1 // pred_fallthru
      _
    // Predicated region
    $region22: #{tpu_custom_call.1} parent=1 // pred_check
      _
    $region23: #{tpu_custom_call.1} parent=1 // pred_check_branch
      %26 = sbr.rel (0) target = $region25
    $region24: #{tpu_custom_call.1} parent=1 // pred_region
      _
    $region25: #{tpu_custom_call.1} parent=1 // pred_fallthru
      _
    // Predicated region
    $region26: #{tpu_custom_call.1} parent=1 // pred_check
      _
    $region27: #{tpu_custom_call.1} parent=1 // pred_check_branch
      %28 = sbr.rel (0) target = $region29
    $region28: #{tpu_custom_call.1} parent=1 // pred_region
      _
    $region29: #{tpu_custom_call.1} parent=1 // pred_fallthru
      _
    // Predicated region
    $region30: #{tpu_custom_call.1} parent=1 // pred_check
      _
    $region31: #{tpu_custom_call.1} parent=1 // pred_check_branch
      %30 = sbr.rel (0) target = $region33
    $region32: #{tpu_custom_call.1} parent=1 // pred_region
      _
    $region33: #{tpu_custom_call.1} parent=1 // pred_fallthru
      _
    // Predicated region
    $region34: #{tpu_custom_call.1} parent=1 // pred_check
      _
    $region35: #{tpu_custom_call.1} parent=1 // pred_check_branch
      %32 = sbr.rel (0) target = $region37
    $region36: #{tpu_custom_call.1} parent=1 // pred_region
      _
    $region37: #{tpu_custom_call.1} parent=1 // pred_fallthru
      _
    %v33 = vld [vmem:[%s0] sm:$0x3]
    %v34 = vld [vmem:[%s0 + $0x2] sm:$0x3]
    %v35 = vld [vmem:[%s0 + $0x4] sm:$0x3]
    %v36 = vld [vmem:[%s0 + $0x6] sm:$0x3]
    %v37 = vld [vmem:[%s0 + $0x8] sm:$0x3]
    %v38 = vld [vmem:[%s0 + $0xa] sm:$0x3]
    %v39 = vld [vmem:[%s0 + $0xc] sm:$0x3]
    %v40 = vld [vmem:[%s0 + $0xe] sm:$0x3]
    %v41 = vld [vmem:[%s1] sm:$0xff]
    %v42 = vld [vmem:[%s1 + $0x8] sm:$0x1]
    %v43 = vld [vmem:[%s2] sm:$0x1]
    %v45 = vlaneseq
    %v46 = vshrl.u32 %v45, 7
    %v47 = vsub.s32 0, %v46
    %v48 = vrot.slane %v43, %v47
    %v58 = vcombine.low %v33, %v34
    %v59 = vcombine.low %v35, %v36
    %v61 = vunpack.c.l.s4 1983009808
    %v62 = vunpack.c.0.s8 %v61
    %v63 = vlaneseq
    %v64 = vshrl.u32 %v63, 7
    %v65 = vsub.s32 %v62, %v64
    %v66 = vrot.slane %v58, %v65
    %v68 = vunpack.c.l.s4 1983009808
    %v69 = vunpack.c.0.s8 %v68
    %v70 = vlaneseq
    %v71 = vshrl.u32 %v70, 7
    %v72 = vsub.s32 %v69, %v71
    %v73 = vrot.slane %v59, %v72
    %v74 = vcombine.low %v66, %v73
    %v75 = vcombine.low %v37, %v38
    %v76 = vcombine.low %v39, %v40
    %v78 = vunpack.c.l.s4 1983009808
    %v79 = vunpack.c.0.s8 %v78
    %v80 = vlaneseq
    %v81 = vshrl.u32 %v80, 7
    %v82 = vsub.s32 %v79, %v81
    %v83 = vrot.slane %v75, %v82
    %v85 = vunpack.c.l.s4 1983009808
    %v86 = vunpack.c.0.s8 %v85
    %v87 = vlaneseq
    %v88 = vshrl.u32 %v87, 7
    %v89 = vsub.s32 %v86, %v88
    %v90 = vrot.slane %v76, %v89
    %v91 = vcombine.low %v83, %v90
    %vm92 = vcmask 72704
    %v93 = vsel %vm92, %v74, 0
    %v95 = vsel %vm92, %v91, 0
    %vm97 = vcmask 1040384
    %v99 = vsel %vm97, %v42, 0
    %101 = vmatprep.subr.mxu0 0.0
    %v102 = vand.u32 %v41, 4294901760
    %103 = vmatpush1.msra.mxu0 %v102
    %104 = vmatprep.subr.mxu0 0.0
    %v105 = vand.u32 %v99, 4294901760
    %106 = vmatpush1.msra.mxu0 %v105
    %107 = vmatprep.subr.mxu0 0.0
    %108 = vmatpush1.msra.mxu0 0.0
    %109 = vmatprep.subr.mxu0 0.0
    %110 = vmatpush1.msra.mxu0 0.0
    %111 = vmatprep.subr.mxu0 0.0
    %112 = vmatpush1.msra.mxu0 0.0
    %113 = vmatprep.subr.mxu0 0.0
    %114 = vmatpush1.msra.mxu0 0.0
    %115 = vmatprep.subr.mxu0 0.0
    %116 = vmatpush1.msra.mxu0 0.0
    %117 = vmatprep.subr.mxu0 0.0
    %118 = vmatpush1.msra.mxu0 0.0
    %119 = vmatprep.subr.mxu0 0.0
    %120 = vmatpush1.msra.mxu0 0.0
    %121 = vmatprep.subr.mxu0 0.0
    %122 = vmatpush1.msra.mxu0 0.0
    %123 = vmatprep.subr.mxu0 0.0
    %124 = vmatpush1.msra.mxu0 0.0
    %125 = vmatprep.subr.mxu0 0.0
    %126 = vmatpush1.msra.mxu0 0.0
    %127 = vmatprep.subr.mxu0 0.0
    %128 = vmatpush1.msra.mxu0 0.0
    %129 = vmatprep.subr.mxu0 0.0
    %130 = vmatpush1.msra.mxu0 0.0
    %131 = vmatprep.subr.mxu0 0.0
    %132 = vmatpush1.msra.mxu0 0.0
    %133 = vmatprep.subr.mxu0 0.0
    %134 = vmatpush1.msra.mxu0 0.0
    %135 = vmatprep.subr.mxu0 0.0
    %136 = vmatpush1.msra.mxu0 0.0
    %137 = vmatprep.subr.mxu0 0.0
    %138 = vmatpush1.msra.mxu0 0.0
    %139 = vmatprep.subr.mxu0 0.0
    %140 = vmatpush1.msra.mxu0 0.0
    %141 = vmatprep.subr.mxu0 0.0
    %142 = vmatpush1.msra.mxu0 0.0
    %143 = vmatprep.subr.mxu0 0.0
    %144 = vmatpush1.msra.mxu0 0.0
    %145 = vmatprep.subr.mxu0 0.0
    %146 = vmatpush1.msra.mxu0 0.0
    %147 = vmatprep.subr.mxu0 0.0
    %148 = vmatpush1.msra.mxu0 0.0
    %149 = vmatprep.subr.mxu0 0.0
    %150 = vmatpush1.msra.mxu0 0.0
    %151 = vmatprep.subr.mxu0 0.0
    %152 = vmatpush1.msra.mxu0 0.0
    %153 = vmatprep.subr.mxu0 0.0
    %154 = vmatpush1.msra.mxu0 0.0
    %155 = vmatprep.subr.mxu0 0.0
    %156 = vmatpush1.msra.mxu0 0.0
    %157 = vmatprep.subr.mxu0 0.0
    %158 = vmatpush1.msra.mxu0 0.0
    %159 = vmatprep.subr.mxu0 0.0
    %160 = vmatpush1.msra.mxu0 0.0
    %161 = vmatprep.subr.mxu0 0.0
    %162 = vmatpush1.msra.mxu0 0.0
    %163 = vmatprep.subr.mxu0 0.0
    %164 = vmatpush1.msra.mxu0 0.0
    %165 = vmatprep.subr.mxu0 0.0
    %166 = vmatpush1.msra.mxu0 0.0
    %167 = vmatprep.mubr.f32.mxu0 0.0
    %v168 = vand.u32 %v93, 4294901760
    %v169 = vsub.f32 %v93, %v168
    %v170 = vand.u32 %v169, 4294901760
    %v171 = vsub.f32 %v169, %v170
    %v172 = vand.u32 %v171, 4294901760
    %173 = vmatmul.mubr.f32.gmra.mrb[0].mxu0 %v172
    %v174 = vpop.f32.mrb[0].mxu0
    %v175 = vadd.f32 %v48, %v174
    %v176 = vpop.f32.mrb[0].mxu0
    %177 = vmatprep.mubr.f32.mxu0 0.0
    %v178 = vand.u32 %v95, 4294901760
    %v179 = vsub.f32 %v95, %v178
    %v180 = vand.u32 %v179, 4294901760
    %v181 = vsub.f32 %v179, %v180
    %v182 = vand.u32 %v181, 4294901760
    %183 = vmatmul.mubr.f32.gmra.mrb[0].mxu0 %v182
    %v184 = vpop.f32.mrb[0].mxu0
    %v185 = vadd.f32 %v48, %v184
    %v186 = vpop.f32.mrb[0].mxu0
    %187 = vdwg.mxu0
    %188 = vmatprep.subr.mxu0 0.0
    %v189 = vand.u32 %v41, 4294901760
    %v190 = vsub.f32 %v41, %v189
    %v191 = vand.u32 %v190, 4294901760
    %v192 = vsub.f32 %v190, %v191
    %v193 = vand.u32 %v192, 4294901760
    %194 = vmatpush1.msra.mxu0 %v193
    %195 = vmatprep.subr.mxu0 0.0
    %v196 = vand.u32 %v99, 4294901760
    %v197 = vsub.f32 %v99, %v196
    %v198 = vand.u32 %v197, 4294901760
    %v199 = vsub.f32 %v197, %v198
    %v200 = vand.u32 %v199, 4294901760
    %201 = vmatpush1.msra.mxu0 %v200
    %202 = vmatprep.subr.mxu0 0.0
    %203 = vmatpush1.msra.mxu0 0.0
    %204 = vmatprep.subr.mxu0 0.0
    %205 = vmatpush1.msra.mxu0 0.0
    %206 = vmatprep.subr.mxu0 0.0
    %207 = vmatpush1.msra.mxu0 0.0
    %208 = vmatprep.subr.mxu0 0.0
    %209 = vmatpush1.msra.mxu0 0.0
    %210 = vmatprep.subr.mxu0 0.0
    %211 = vmatpush1.msra.mxu0 0.0
    %212 = vmatprep.subr.mxu0 0.0
    %213 = vmatpush1.msra.mxu0 0.0
    %214 = vmatprep.subr.mxu0 0.0
    %215 = vmatpush1.msra.mxu0 0.0
    %216 = vmatprep.subr.mxu0 0.0
    %217 = vmatpush1.msra.mxu0 0.0
    %218 = vmatprep.subr.mxu0 0.0
    %219 = vmatpush1.msra.mxu0 0.0
    %220 = vmatprep.subr.mxu0 0.0
    %221 = vmatpush1.msra.mxu0 0.0
    %222 = vmatprep.subr.mxu0 0.0
    %223 = vmatpush1.msra.mxu0 0.0
    %224 = vmatprep.subr.mxu0 0.0
    %225 = vmatpush1.msra.mxu0 0.0
    %226 = vmatprep.subr.mxu0 0.0
    %227 = vmatpush1.msra.mxu0 0.0
    %228 = vmatprep.subr.mxu0 0.0
    %229 = vmatpush1.msra.mxu0 0.0
    %230 = vmatprep.subr.mxu0 0.0
    %231 = vmatpush1.msra.mxu0 0.0
    %232 = vmatprep.subr.mxu0 0.0
    %233 = vmatpush1.msra.mxu0 0.0
    %234 = vmatprep.subr.mxu0 0.0
    %235 = vmatpush1.msra.mxu0 0.0
    %236 = vmatprep.subr.mxu0 0.0
    %237 = vmatpush1.msra.mxu0 0.0
    %238 = vmatprep.subr.mxu0 0.0
    %239 = vmatpush1.msra.mxu0 0.0
    %240 = vmatprep.subr.mxu0 0.0
    %241 = vmatpush1.msra.mxu0 0.0
    %242 = vmatprep.subr.mxu0 0.0
    %243 = vmatpush1.msra.mxu0 0.0
    %244 = vmatprep.subr.mxu0 0.0
    %245 = vmatpush1.msra.mxu0 0.0
    %246 = vmatprep.subr.mxu0 0.0
    %247 = vmatpush1.msra.mxu0 0.0
    %248 = vmatprep.subr.mxu0 0.0
    %249 = vmatpush1.msra.mxu0 0.0
    %250 = vmatprep.subr.mxu0 0.0
    %251 = vmatpush1.msra.mxu0 0.0
    %252 = vmatprep.subr.mxu0 0.0
    %253 = vmatpush1.msra.mxu0 0.0
    %254 = vmatprep.subr.mxu0 0.0
    %255 = vmatpush1.msra.mxu0 0.0
    %256 = vmatprep.subr.mxu0 0.0
    %257 = vmatpush1.msra.mxu0 0.0
    %258 = vmatprep.subr.mxu0 0.0
    %259 = vmatpush1.msra.mxu0 0.0
    %260 = vmatprep.subr.mxu0 0.0
    %261 = vmatpush1.msra.mxu0 0.0
    %262 = vmatprep.mubr.f32.mxu0 0.0
    %v263 = vand.u32 %v93, 4294901760
    %264 = vmatmul.mubr.f32.gmra.mrb[0].mxu0 %v263
    %v265 = vpop.f32.mrb[0].mxu0
    %v266 = vadd.f32 %v175, %v265
    %v267 = vpop.f32.mrb[0].mxu0
    %268 = vmatprep.mubr.f32.mxu0 0.0
    %v269 = vand.u32 %v95, 4294901760
    %270 = vmatmul.mubr.f32.gmra.mrb[0].mxu0 %v269
    %v271 = vpop.f32.mrb[0].mxu0
    %v272 = vadd.f32 %v185, %v271
    %v273 = vpop.f32.mrb[0].mxu0
    %274 = vdwg.mxu0
    %275 = vmatprep.subr.mxu0 0.0
    %v276 = vand.u32 %v41, 4294901760
    %v277 = vsub.f32 %v41, %v276
    %278 = vmatpush1.msra.mxu0 %v277
    %279 = vmatprep.subr.mxu0 0.0
    %v280 = vand.u32 %v99, 4294901760
    %v281 = vsub.f32 %v99, %v280
    %282 = vmatpush1.msra.mxu0 %v281
    %283 = vmatprep.subr.mxu0 0.0
    %284 = vmatpush1.msra.mxu0 0.0
    %285 = vmatprep.subr.mxu0 0.0
    %286 = vmatpush1.msra.mxu0 0.0
    %287 = vmatprep.subr.mxu0 0.0
    %288 = vmatpush1.msra.mxu0 0.0
    %289 = vmatprep.subr.mxu0 0.0
    %290 = vmatpush1.msra.mxu0 0.0
    %291 = vmatprep.subr.mxu0 0.0
    %292 = vmatpush1.msra.mxu0 0.0
    %293 = vmatprep.subr.mxu0 0.0
    %294 = vmatpush1.msra.mxu0 0.0
    %295 = vmatprep.subr.mxu0 0.0
    %296 = vmatpush1.msra.mxu0 0.0
    %297 = vmatprep.subr.mxu0 0.0
    %298 = vmatpush1.msra.mxu0 0.0
    %299 = vmatprep.subr.mxu0 0.0
    %300 = vmatpush1.msra.mxu0 0.0
    %301 = vmatprep.subr.mxu0 0.0
    %302 = vmatpush1.msra.mxu0 0.0
    %303 = vmatprep.subr.mxu0 0.0
    %304 = vmatpush1.msra.mxu0 0.0
    %305 = vmatprep.subr.mxu0 0.0
    %306 = vmatpush1.msra.mxu0 0.0
    %307 = vmatprep.subr.mxu0 0.0
    %308 = vmatpush1.msra.mxu0 0.0
    %309 = vmatprep.subr.mxu0 0.0
    %310 = vmatpush1.msra.mxu0 0.0
    %311 = vmatprep.subr.mxu0 0.0
    %312 = vmatpush1.msra.mxu0 0.0
    %313 = vmatprep.subr.mxu0 0.0
    %314 = vmatpush1.msra.mxu0 0.0
    %315 = vmatprep.subr.mxu0 0.0
    %316 = vmatpush1.msra.mxu0 0.0
    %317 = vmatprep.subr.mxu0 0.0
    %318 = vmatpush1.msra.mxu0 0.0
    %319 = vmatprep.subr.mxu0 0.0
    %320 = vmatpush1.msra.mxu0 0.0
    %321 = vmatprep.subr.mxu0 0.0
    %322 = vmatpush1.msra.mxu0 0.0
    %323 = vmatprep.subr.mxu0 0.0
    %324 = vmatpush1.msra.mxu0 0.0
    %325 = vmatprep.subr.mxu0 0.0
    %326 = vmatpush1.msra.mxu0 0.0
    %327 = vmatprep.subr.mxu0 0.0
    %328 = vmatpush1.msra.mxu0 0.0
    %329 = vmatprep.subr.mxu0 0.0
    %330 = vmatpush1.msra.mxu0 0.0
    %331 = vmatprep.subr.mxu0 0.0
    %332 = vmatpush1.msra.mxu0 0.0
    %333 = vmatprep.subr.mxu0 0.0
    %334 = vmatpush1.msra.mxu0 0.0
    %335 = vmatprep.subr.mxu0 0.0
    %336 = vmatpush1.msra.mxu0 0.0
    %337 = vmatprep.subr.mxu0 0.0
    %338 = vmatpush1.msra.mxu0 0.0
    %339 = vmatprep.subr.mxu0 0.0
    %340 = vmatpush1.msra.mxu0 0.0
    %341 = vmatprep.subr.mxu0 0.0
    %342 = vmatpush1.msra.mxu0 0.0
    %343 = vmatprep.mubr.f32.mxu0 0.0
    %v344 = vand.u32 %v93, 4294901760
    %v345 = vsub.f32 %v93, %v344
    %346 = vmatmul.mubr.f32.gmra.mrb[0].mxu0 %v345
    %v347 = vpop.f32.mrb[0].mxu0
    %v348 = vadd.f32 %v266, %v347
    %v349 = vpop.f32.mrb[0].mxu0
    %350 = vmatprep.mubr.f32.mxu0 0.0
    %v351 = vand.u32 %v95, 4294901760
    %v352 = vsub.f32 %v95, %v351
    %353 = vmatmul.mubr.f32.gmra.mrb[0].mxu0 %v352
    %v354 = vpop.f32.mrb[0].mxu0
    %v355 = vadd.f32 %v272, %v354
    %v356 = vpop.f32.mrb[0].mxu0
    %357 = vdwg.mxu0
    %358 = vmatprep.subr.mxu0 0.0
    %v359 = vand.u32 %v41, 4294901760
    %360 = vmatpush1.msra.mxu0 %v359
    %361 = vmatprep.subr.mxu0 0.0
    %v362 = vand.u32 %v99, 4294901760
    %363 = vmatpush1.msra.mxu0 %v362
    %364 = vmatprep.subr.mxu0 0.0
    %365 = vmatpush1.msra.mxu0 0.0
    %366 = vmatprep.subr.mxu0 0.0
    %367 = vmatpush1.msra.mxu0 0.0
    %368 = vmatprep.subr.mxu0 0.0
    %369 = vmatpush1.msra.mxu0 0.0
    %370 = vmatprep.subr.mxu0 0.0
    %371 = vmatpush1.msra.mxu0 0.0
    %372 = vmatprep.subr.mxu0 0.0
    %373 = vmatpush1.msra.mxu0 0.0
    %374 = vmatprep.subr.mxu0 0.0
    %375 = vmatpush1.msra.mxu0 0.0
    %376 = vmatprep.subr.mxu0 0.0
    %377 = vmatpush1.msra.mxu0 0.0
    %378 = vmatprep.subr.mxu0 0.0
    %379 = vmatpush1.msra.mxu0 0.0
    %380 = vmatprep.subr.mxu0 0.0
    %381 = vmatpush1.msra.mxu0 0.0
    %382 = vmatprep.subr.mxu0 0.0
    %383 = vmatpush1.msra.mxu0 0.0
    %384 = vmatprep.subr.mxu0 0.0
    %385 = vmatpush1.msra.mxu0 0.0
    %386 = vmatprep.subr.mxu0 0.0
    %387 = vmatpush1.msra.mxu0 0.0
    %388 = vmatprep.subr.mxu0 0.0
    %389 = vmatpush1.msra.mxu0 0.0
    %390 = vmatprep.subr.mxu0 0.0
    %391 = vmatpush1.msra.mxu0 0.0
    %392 = vmatprep.subr.mxu0 0.0
    %393 = vmatpush1.msra.mxu0 0.0
    %394 = vmatprep.subr.mxu0 0.0
    %395 = vmatpush1.msra.mxu0 0.0
    %396 = vmatprep.subr.mxu0 0.0
    %397 = vmatpush1.msra.mxu0 0.0
    %398 = vmatprep.subr.mxu0 0.0
    %399 = vmatpush1.msra.mxu0 0.0
    %400 = vmatprep.subr.mxu0 0.0
    %401 = vmatpush1.msra.mxu0 0.0
    %402 = vmatprep.subr.mxu0 0.0
    %403 = vmatpush1.msra.mxu0 0.0
    %404 = vmatprep.subr.mxu0 0.0
    %405 = vmatpush1.msra.mxu0 0.0
    %406 = vmatprep.subr.mxu0 0.0
    %407 = vmatpush1.msra.mxu0 0.0
    %408 = vmatprep.subr.mxu0 0.0
    %409 = vmatpush1.msra.mxu0 0.0
    %410 = vmatprep.subr.mxu0 0.0
    %411 = vmatpush1.msra.mxu0 0.0
    %412 = vmatprep.subr.mxu0 0.0
    %413 = vmatpush1.msra.mxu0 0.0
    %414 = vmatprep.subr.mxu0 0.0
    %415 = vmatpush1.msra.mxu0 0.0
    %416 = vmatprep.subr.mxu0 0.0
    %417 = vmatpush1.msra.mxu0 0.0
    %418 = vmatprep.subr.mxu0 0.0
    %419 = vmatpush1.msra.mxu0 0.0
    %420 = vmatprep.subr.mxu0 0.0
    %421 = vmatpush1.msra.mxu0 0.0
    %422 = vmatprep.subr.mxu0 0.0
    %423 = vmatpush1.msra.mxu0 0.0
    %424 = vmatprep.mubr.f32.mxu0 0.0
    %v425 = vand.u32 %v93, 4294901760
    %v426 = vsub.f32 %v93, %v425
    %v427 = vand.u32 %v426, 4294901760
    %428 = vmatmul.mubr.f32.gmra.mrb[0].mxu0 %v427
    %v429 = vpop.f32.mrb[0].mxu0
    %v430 = vadd.f32 %v348, %v429
    %v431 = vpop.f32.mrb[0].mxu0
    %432 = vmatprep.mubr.f32.mxu0 0.0
    %v433 = vand.u32 %v95, 4294901760
    %v434 = vsub.f32 %v95, %v433
    %v435 = vand.u32 %v434, 4294901760
    %436 = vmatmul.mubr.f32.gmra.mrb[0].mxu0 %v435
    %v437 = vpop.f32.mrb[0].mxu0
    %v438 = vadd.f32 %v355, %v437
    %v439 = vpop.f32.mrb[0].mxu0
    %440 = vdwg.mxu0
    %441 = vmatprep.subr.mxu0 0.0
    %v442 = vand.u32 %v41, 4294901760
    %v443 = vsub.f32 %v41, %v442
    %v444 = vand.u32 %v443, 4294901760
    %445 = vmatpush1.msra.mxu0 %v444
    %446 = vmatprep.subr.mxu0 0.0
    %v447 = vand.u32 %v99, 4294901760
    %v448 = vsub.f32 %v99, %v447
    %v449 = vand.u32 %v448, 4294901760
    %450 = vmatpush1.msra.mxu0 %v449
    %451 = vmatprep.subr.mxu0 0.0
    %452 = vmatpush1.msra.mxu0 0.0
    %453 = vmatprep.subr.mxu0 0.0
    %454 = vmatpush1.msra.mxu0 0.0
    %455 = vmatprep.subr.mxu0 0.0
    %456 = vmatpush1.msra.mxu0 0.0
    %457 = vmatprep.subr.mxu0 0.0
    %458 = vmatpush1.msra.mxu0 0.0
    %459 = vmatprep.subr.mxu0 0.0
    %460 = vmatpush1.msra.mxu0 0.0
    %461 = vmatprep.subr.mxu0 0.0
    %462 = vmatpush1.msra.mxu0 0.0
    %463 = vmatprep.subr.mxu0 0.0
    %464 = vmatpush1.msra.mxu0 0.0
    %465 = vmatprep.subr.mxu0 0.0
    %466 = vmatpush1.msra.mxu0 0.0
    %467 = vmatprep.subr.mxu0 0.0
    %468 = vmatpush1.msra.mxu0 0.0
    %469 = vmatprep.subr.mxu0 0.0
    %470 = vmatpush1.msra.mxu0 0.0
    %471 = vmatprep.subr.mxu0 0.0
    %472 = vmatpush1.msra.mxu0 0.0
    %473 = vmatprep.subr.mxu0 0.0
    %474 = vmatpush1.msra.mxu0 0.0
    %475 = vmatprep.subr.mxu0 0.0
    %476 = vmatpush1.msra.mxu0 0.0
    %477 = vmatprep.subr.mxu0 0.0
    %478 = vmatpush1.msra.mxu0 0.0
    %479 = vmatprep.subr.mxu0 0.0
    %480 = vmatpush1.msra.mxu0 0.0
    %481 = vmatprep.subr.mxu0 0.0
    %482 = vmatpush1.msra.mxu0 0.0
    %483 = vmatprep.subr.mxu0 0.0
    %484 = vmatpush1.msra.mxu0 0.0
    %485 = vmatprep.subr.mxu0 0.0
    %486 = vmatpush1.msra.mxu0 0.0
    %487 = vmatprep.subr.mxu0 0.0
    %488 = vmatpush1.msra.mxu0 0.0
    %489 = vmatprep.subr.mxu0 0.0
    %490 = vmatpush1.msra.mxu0 0.0
    %491 = vmatprep.subr.mxu0 0.0
    %492 = vmatpush1.msra.mxu0 0.0
    %493 = vmatprep.subr.mxu0 0.0
    %494 = vmatpush1.msra.mxu0 0.0
    %495 = vmatprep.subr.mxu0 0.0
    %496 = vmatpush1.msra.mxu0 0.0
    %497 = vmatprep.subr.mxu0 0.0
    %498 = vmatpush1.msra.mxu0 0.0
    %499 = vmatprep.subr.mxu0 0.0
    %500 = vmatpush1.msra.mxu0 0.0
    %501 = vmatprep.subr.mxu0 0.0
    %502 = vmatpush1.msra.mxu0 0.0
    %503 = vmatprep.subr.mxu0 0.0
    %504 = vmatpush1.msra.mxu0 0.0
    %505 = vmatprep.subr.mxu0 0.0
    %506 = vmatpush1.msra.mxu0 0.0
    %507 = vmatprep.subr.mxu0 0.0
    %508 = vmatpush1.msra.mxu0 0.0
    %509 = vmatprep.subr.mxu0 0.0
    %510 = vmatpush1.msra.mxu0 0.0
    %511 = vmatprep.mubr.f32.mxu0 0.0
    %v512 = vand.u32 %v93, 4294901760
    %513 = vmatmul.mubr.f32.gmra.mrb[0].mxu0 %v512
    %v514 = vpop.f32.mrb[0].mxu0
    %v515 = vadd.f32 %v430, %v514
    %v516 = vpop.f32.mrb[0].mxu0
    %517 = vmatprep.mubr.f32.mxu0 0.0
    %v518 = vand.u32 %v95, 4294901760
    %519 = vmatmul.mubr.f32.gmra.mrb[0].mxu0 %v518
    %v520 = vpop.f32.mrb[0].mxu0
    %v521 = vadd.f32 %v438, %v520
    %v522 = vpop.f32.mrb[0].mxu0
    %523 = vdwg.mxu0
    %524 = vmatprep.subr.mxu0 0.0
    %v525 = vand.u32 %v41, 4294901760
    %526 = vmatpush1.msra.mxu0 %v525
    %527 = vmatprep.subr.mxu0 0.0
    %v528 = vand.u32 %v99, 4294901760
    %529 = vmatpush1.msra.mxu0 %v528
    %530 = vmatprep.subr.mxu0 0.0
    %531 = vmatpush1.msra.mxu0 0.0
    %532 = vmatprep.subr.mxu0 0.0
    %533 = vmatpush1.msra.mxu0 0.0
    %534 = vmatprep.subr.mxu0 0.0
    %535 = vmatpush1.msra.mxu0 0.0
    %536 = vmatprep.subr.mxu0 0.0
    %537 = vmatpush1.msra.mxu0 0.0
    %538 = vmatprep.subr.mxu0 0.0
    %539 = vmatpush1.msra.mxu0 0.0
    %540 = vmatprep.subr.mxu0 0.0
    %541 = vmatpush1.msra.mxu0 0.0
    %542 = vmatprep.subr.mxu0 0.0
    %543 = vmatpush1.msra.mxu0 0.0
    %544 = vmatprep.subr.mxu0 0.0
    %545 = vmatpush1.msra.mxu0 0.0
    %546 = vmatprep.subr.mxu0 0.0
    %547 = vmatpush1.msra.mxu0 0.0
    %548 = vmatprep.subr.mxu0 0.0
    %549 = vmatpush1.msra.mxu0 0.0
    %550 = vmatprep.subr.mxu0 0.0
    %551 = vmatpush1.msra.mxu0 0.0
    %552 = vmatprep.subr.mxu0 0.0
    %553 = vmatpush1.msra.mxu0 0.0
    %554 = vmatprep.subr.mxu0 0.0
    %555 = vmatpush1.msra.mxu0 0.0
    %556 = vmatprep.subr.mxu0 0.0
    %557 = vmatpush1.msra.mxu0 0.0
    %558 = vmatprep.subr.mxu0 0.0
    %559 = vmatpush1.msra.mxu0 0.0
    %560 = vmatprep.subr.mxu0 0.0
    %561 = vmatpush1.msra.mxu0 0.0
    %562 = vmatprep.subr.mxu0 0.0
    %563 = vmatpush1.msra.mxu0 0.0
    %564 = vmatprep.subr.mxu0 0.0
    %565 = vmatpush1.msra.mxu0 0.0
    %566 = vmatprep.subr.mxu0 0.0
    %567 = vmatpush1.msra.mxu0 0.0
    %568 = vmatprep.subr.mxu0 0.0
    %569 = vmatpush1.msra.mxu0 0.0
    %570 = vmatprep.subr.mxu0 0.0
    %571 = vmatpush1.msra.mxu0 0.0
    %572 = vmatprep.subr.mxu0 0.0
    %573 = vmatpush1.msra.mxu0 0.0
    %574 = vmatprep.subr.mxu0 0.0
    %575 = vmatpush1.msra.mxu0 0.0
    %576 = vmatprep.subr.mxu0 0.0
    %577 = vmatpush1.msra.mxu0 0.0
    %578 = vmatprep.subr.mxu0 0.0
    %579 = vmatpush1.msra.mxu0 0.0
    %580 = vmatprep.subr.mxu0 0.0
    %581 = vmatpush1.msra.mxu0 0.0
    %582 = vmatprep.subr.mxu0 0.0
    %583 = vmatpush1.msra.mxu0 0.0
    %584 = vmatprep.subr.mxu0 0.0
    %585 = vmatpush1.msra.mxu0 0.0
    %586 = vmatprep.subr.mxu0 0.0
    %587 = vmatpush1.msra.mxu0 0.0
    %588 = vmatprep.subr.mxu0 0.0
    %589 = vmatpush1.msra.mxu0 0.0
    %590 = vmatprep.mubr.f32.mxu0 0.0
    %v591 = vand.u32 %v93, 4294901760
    %592 = vmatmul.mubr.f32.gmra.mrb[0].mxu0 %v591
    %v593 = vpop.f32.mrb[0].mxu0
    %v594 = vadd.f32 %v515, %v593
    %v595 = vpop.f32.mrb[0].mxu0
    %596 = vmatprep.mubr.f32.mxu0 0.0
    %v597 = vand.u32 %v95, 4294901760
    %598 = vmatmul.mubr.f32.gmra.mrb[0].mxu0 %v597
    %v599 = vpop.f32.mrb[0].mxu0
    %v600 = vadd.f32 %v521, %v599
    %v601 = vpop.f32.mrb[0].mxu0
    %602 = vdwg.mxu0
    %v603 = vld [vmem:[%s3] sm:$0x7f]
    %vm604 = vcmask 521216
    %605 = vst.msk [vmem:[#allocation2] sm:$0x3f] %vm604, 0.0
    %vm606 = vcmask 523264
    %607 = vst.msk [vmem:[#allocation2 + $0x6] sm:$0xff] %vm606, %v594
    %608 = vst.msk [vmem:[#allocation2 + $0xe] sm:$0xff] %vm606, %v600
    %v609 = vld [vmem:[#allocation2] sm:$0xff]
    %v610 = vld [vmem:[#allocation2 + $0x8] sm:$0xff]
    %v611 = vlaneseq
    %v612 = vshrl.u32 %v611, 7
    %v613 = vsub.s32 0, %v612
    %v614 = vrot.slane %v603, %v613
    %v615 = vmul.f32 %v609, %v614
    %v616 = vmul.f32 %v610, %v614
    %v617 = vlaneseq
    %v618 = vshrl.u32 %v617, 7
    %v619 = vsub.s32 4, %v618
    %v620 = vrot.slane %v603, %v619
    %v621 = vadd.f32 %v620, %v615
    %v622 = vadd.f32 %v620, %v616
    %v623 = vld [vmem:[#allocation2 + $0x2] sm:$0xff]
    %v624 = vld [vmem:[#allocation2 + $0xa] sm:$0xff]
    %v625 = vlaneseq
    %v626 = vshrl.u32 %v625, 7
    %v627 = vsub.s32 1, %v626
    %v628 = vrot.slane %v603, %v627
    %v629 = vmul.f32 %v623, %v628
    %v630 = vmul.f32 %v624, %v628
    %v631 = vadd.f32 %v621, %v629
    %v632 = vadd.f32 %v622, %v630
    %v633 = vld [vmem:[#allocation2 + $0x4] sm:$0xff]
    %v634 = vld [vmem:[#allocation2 + $0xc] sm:$0xff]
    %v635 = vlaneseq
    %v636 = vshrl.u32 %v635, 7
    %v637 = vsub.s32 2, %v636
    %v638 = vrot.slane %v603, %v637
    %v639 = vmul.f32 %v633, %v638
    %v640 = vmul.f32 %v634, %v638
    %v641 = vadd.f32 %v631, %v639
    %v642 = vadd.f32 %v632, %v640
    %v643 = vld [vmem:[#allocation2 + $0x6] sm:$0xff]
    %v644 = vld [vmem:[#allocation2 + $0xe] sm:$0xff]
    %v645 = vlaneseq
    %v646 = vshrl.u32 %v645, 7
    %v647 = vsub.s32 3, %v646
    %v648 = vrot.slane %v603, %v647
    %v649 = vmul.f32 %v643, %v648
    %v650 = vmul.f32 %v644, %v648
    %v651 = vadd.f32 %v641, %v649
    %v652 = vadd.f32 %v642, %v650
    %v653 = vxor.u32 %v651, 2147483648
    %v654 = vxor.u32 %v652, 2147483648
    %v655 = vmul.f32 %v653, 1.442695
    %v656 = vpow.pop %v655
    %v657 = vmul.f32 %v654, 1.442695
    %v658 = vpow.pop %v657
    %v659 = vadd.f32 %v656, 1.0
    %v660 = vadd.f32 %v658, 1.0
    %v661 = vrcp.pop %v659
    %v662 = vmul.f32 1.0, %v661
    %v663 = vrcp.pop %v660
    %v664 = vmul.f32 1.0, %v663
    %v665 = vmul.f32 %v651, %v662
    %v666 = vmul.f32 %v652, %v664
    %v667 = vld [vmem:[%s4] sm:$0xff]
    %v668 = vld [vmem:[%s4 + $0x8] sm:$0xff]
    %v669 = vld [vmem:[%s4 + $0x10] sm:$0xff]
    %v670 = vld [vmem:[%s4 + $0x18] sm:$0xff]
    %v671 = vld [vmem:[%s4 + $0x20] sm:$0xff]
    %v672 = vld [vmem:[%s4 + $0x28] sm:$0xff]
    %v673 = vld [vmem:[%s4 + $0x30] sm:$0xff]
    %v674 = vld [vmem:[%s4 + $0x38] sm:$0xff]
    %v675 = vlaneseq
    %v676 = vshrl.u32 %v675, 7
    %v677 = vsub.s32 5, %v676
    %v678 = vrot.slane %v603, %v677
    %v680 = vsel %vm606, %v665, 0
    %v683 = vsel %vm606, %v666, 0
    %685 = vmatprep.subr.mxu0 0.0
    %v686 = vand.u32 %v667, 4294901760
    %687 = vmatpush1.msra.mxu0 %v686
    %688 = vmatprep.subr.mxu0 0.0
    %v689 = vand.u32 %v668, 4294901760
    %690 = vmatpush1.msra.mxu0 %v689
    %691 = vmatprep.subr.mxu0 0.0
    %v692 = vand.u32 %v669, 4294901760
    %693 = vmatpush1.msra.mxu0 %v692
    %694 = vmatprep.subr.mxu0 0.0
    %v695 = vand.u32 %v670, 4294901760
    %696 = vmatpush1.msra.mxu0 %v695
    %697 = vmatprep.subr.mxu0 0.0
    %v698 = vand.u32 %v671, 4294901760
    %699 = vmatpush1.msra.mxu0 %v698
    %700 = vmatprep.subr.mxu0 0.0
    %v701 = vand.u32 %v672, 4294901760
    %702 = vmatpush1.msra.mxu0 %v701
    %703 = vmatprep.subr.mxu0 0.0
    %v704 = vand.u32 %v673, 4294901760
    %705 = vmatpush1.msra.mxu0 %v704
    %706 = vmatprep.subr.mxu0 0.0
    %v707 = vand.u32 %v674, 4294901760
    %708 = vmatpush1.msra.mxu0 %v707
    %709 = vmatprep.subr.mxu0 0.0
    %710 = vmatpush1.msra.mxu0 0.0
    %711 = vmatprep.subr.mxu0 0.0
    %712 = vmatpush1.msra.mxu0 0.0
    %713 = vmatprep.subr.mxu0 0.0
    %714 = vmatpush1.msra.mxu0 0.0
    %715 = vmatprep.subr.mxu0 0.0
    %716 = vmatpush1.msra.mxu0 0.0
    %717 = vmatprep.subr.mxu0 0.0
    %718 = vmatpush1.msra.mxu0 0.0
    %719 = vmatprep.subr.mxu0 0.0
    %720 = vmatpush1.msra.mxu0 0.0
    %721 = vmatprep.subr.mxu0 0.0
    %722 = vmatpush1.msra.mxu0 0.0
    %723 = vmatprep.subr.mxu0 0.0
    %724 = vmatpush1.msra.mxu0 0.0
    %725 = vmatprep.subr.mxu0 0.0
    %726 = vmatpush1.msra.mxu0 0.0
    %727 = vmatprep.subr.mxu0 0.0
    %728 = vmatpush1.msra.mxu0 0.0
    %729 = vmatprep.subr.mxu0 0.0
    %730 = vmatpush1.msra.mxu0 0.0
    %731 = vmatprep.subr.mxu0 0.0
    %732 = vmatpush1.msra.mxu0 0.0
    %733 = vmatprep.subr.mxu0 0.0
    %734 = vmatpush1.msra.mxu0 0.0
    %735 = vmatprep.subr.mxu0 0.0
    %736 = vmatpush1.msra.mxu0 0.0
    %737 = vmatprep.subr.mxu0 0.0
    %738 = vmatpush1.msra.mxu0 0.0
    %739 = vmatprep.subr.mxu0 0.0
    %740 = vmatpush1.msra.mxu0 0.0
    %741 = vmatprep.subr.mxu0 0.0
    %742 = vmatpush1.msra.mxu0 0.0
    %743 = vmatprep.subr.mxu0 0.0
    %744 = vmatpush1.msra.mxu0 0.0
    %745 = vmatprep.subr.mxu0 0.0
    %746 = vmatpush1.msra.mxu0 0.0
    %747 = vmatprep.subr.mxu0 0.0
    %748 = vmatpush1.msra.mxu0 0.0
    %749 = vmatprep.subr.mxu0 0.0
    %750 = vmatpush1.msra.mxu0 0.0
    %751 = vmatprep.subr.mxu0 0.0
    %752 = vmatpush1.msra.mxu0 0.0
    %753 = vmatprep.subr.mxu0 0.0
    %754 = vmatpush1.msra.mxu0 0.0
    %755 = vmatprep.subr.mxu0 0.0
    %756 = vmatpush1.msra.mxu0 0.0
    %757 = vmatprep.mubr.f32.mxu0 0.0
    %v758 = vand.u32 %v680, 4294901760
    %v759 = vsub.f32 %v680, %v758
    %v760 = vand.u32 %v759, 4294901760
    %v761 = vsub.f32 %v759, %v760
    %v762 = vand.u32 %v761, 4294901760
    %763 = vmatmul.mubr.f32.gmra.mrb[0].mxu0 %v762
    %v764 = vpop.f32.mrb[0].mxu0
    %v765 = vadd.f32 %v678, %v764
    %v766 = vpop.f32.mrb[0].mxu0
    %767 = vmatprep.mubr.f32.mxu0 0.0
    %v768 = vand.u32 %v683, 4294901760
    %v769 = vsub.f32 %v683, %v768
    %v770 = vand.u32 %v769, 4294901760
    %v771 = vsub.f32 %v769, %v770
    %v772 = vand.u32 %v771, 4294901760
    %773 = vmatmul.mubr.f32.gmra.mrb[0].mxu0 %v772
    %v774 = vpop.f32.mrb[0].mxu0
    %v775 = vadd.f32 %v678, %v774
    %v776 = vpop.f32.mrb[0].mxu0
    %777 = vdwg.mxu0
    %778 = vmatprep.subr.mxu0 0.0
    %v779 = vand.u32 %v667, 4294901760
    %v780 = vsub.f32 %v667, %v779
    %v781 = vand.u32 %v780, 4294901760
    %v782 = vsub.f32 %v780, %v781
    %v783 = vand.u32 %v782, 4294901760
    %784 = vmatpush1.msra.mxu0 %v783
    %785 = vmatprep.subr.mxu0 0.0
    %v786 = vand.u32 %v668, 4294901760
    %v787 = vsub.f32 %v668, %v786
    %v788 = vand.u32 %v787, 4294901760
    %v789 = vsub.f32 %v787, %v788
    %v790 = vand.u32 %v789, 4294901760
    %791 = vmatpush1.msra.mxu0 %v790
    %792 = vmatprep.subr.mxu0 0.0
    %v793 = vand.u32 %v669, 4294901760
    %v794 = vsub.f32 %v669, %v793
    %v795 = vand.u32 %v794, 4294901760
    %v796 = vsub.f32 %v794, %v795
    %v797 = vand.u32 %v796, 4294901760
    %798 = vmatpush1.msra.mxu0 %v797
    %799 = vmatprep.subr.mxu0 0.0
    %v800 = vand.u32 %v670, 4294901760
    %v801 = vsub.f32 %v670, %v800
    %v802 = vand.u32 %v801, 4294901760
    %v803 = vsub.f32 %v801, %v802
    %v804 = vand.u32 %v803, 4294901760
    %805 = vmatpush1.msra.mxu0 %v804
    %806 = vmatprep.subr.mxu0 0.0
    %v807 = vand.u32 %v671, 4294901760
    %v808 = vsub.f32 %v671, %v807
    %v809 = vand.u32 %v808, 4294901760
    %v810 = vsub.f32 %v808, %v809
    %v811 = vand.u32 %v810, 4294901760
    %812 = vmatpush1.msra.mxu0 %v811
    %813 = vmatprep.subr.mxu0 0.0
    %v814 = vand.u32 %v672, 4294901760
    %v815 = vsub.f32 %v672, %v814
    %v816 = vand.u32 %v815, 4294901760
    %v817 = vsub.f32 %v815, %v816
    %v818 = vand.u32 %v817, 4294901760
    %819 = vmatpush1.msra.mxu0 %v818
    %820 = vmatprep.subr.mxu0 0.0
    %v821 = vand.u32 %v673, 4294901760
    %v822 = vsub.f32 %v673, %v821
    %v823 = vand.u32 %v822, 4294901760
    %v824 = vsub.f32 %v822, %v823
    %v825 = vand.u32 %v824, 4294901760
    %826 = vmatpush1.msra.mxu0 %v825
    %827 = vmatprep.subr.mxu0 0.0
    %v828 = vand.u32 %v674, 4294901760
    %v829 = vsub.f32 %v674, %v828
    %v830 = vand.u32 %v829, 4294901760
    %v831 = vsub.f32 %v829, %v830
    %v832 = vand.u32 %v831, 4294901760
    %833 = vmatpush1.msra.mxu0 %v832
    %834 = vmatprep.subr.mxu0 0.0
    %835 = vmatpush1.msra.mxu0 0.0
    %836 = vmatprep.subr.mxu0 0.0
    %837 = vmatpush1.msra.mxu0 0.0
    %838 = vmatprep.subr.mxu0 0.0
    %839 = vmatpush1.msra.mxu0 0.0
    %840 = vmatprep.subr.mxu0 0.0
    %841 = vmatpush1.msra.mxu0 0.0
    %842 = vmatprep.subr.mxu0 0.0
    %843 = vmatpush1.msra.mxu0 0.0
    %844 = vmatprep.subr.mxu0 0.0
    %845 = vmatpush1.msra.mxu0 0.0
    %846 = vmatprep.subr.mxu0 0.0
    %847 = vmatpush1.msra.mxu0 0.0
    %848 = vmatprep.subr.mxu0 0.0
    %849 = vmatpush1.msra.mxu0 0.0
    %850 = vmatprep.subr.mxu0 0.0
    %851 = vmatpush1.msra.mxu0 0.0
    %852 = vmatprep.subr.mxu0 0.0
    %853 = vmatpush1.msra.mxu0 0.0
    %854 = vmatprep.subr.mxu0 0.0
    %855 = vmatpush1.msra.mxu0 0.0
    %856 = vmatprep.subr.mxu0 0.0
    %857 = vmatpush1.msra.mxu0 0.0
    %858 = vmatprep.subr.mxu0 0.0
    %859 = vmatpush1.msra.mxu0 0.0
    %860 = vmatprep.subr.mxu0 0.0
    %861 = vmatpush1.msra.mxu0 0.0
    %862 = vmatprep.subr.mxu0 0.0
    %863 = vmatpush1.msra.mxu0 0.0
    %864 = vmatprep.subr.mxu0 0.0
    %865 = vmatpush1.msra.mxu0 0.0
    %866 = vmatprep.subr.mxu0 0.0
    %867 = vmatpush1.msra.mxu0 0.0
    %868 = vmatprep.subr.mxu0 0.0
    %869 = vmatpush1.msra.mxu0 0.0
    %870 = vmatprep.subr.mxu0 0.0
    %871 = vmatpush1.msra.mxu0 0.0
    %872 = vmatprep.subr.mxu0 0.0
    %873 = vmatpush1.msra.mxu0 0.0
    %874 = vmatprep.subr.mxu0 0.0
    %875 = vmatpush1.msra.mxu0 0.0
    %876 = vmatprep.subr.mxu0 0.0
    %877 = vmatpush1.msra.mxu0 0.0
    %878 = vmatprep.subr.mxu0 0.0
    %879 = vmatpush1.msra.mxu0 0.0
    %880 = vmatprep.subr.mxu0 0.0
    %881 = vmatpush1.msra.mxu0 0.0
    %882 = vmatprep.mubr.f32.mxu0 0.0
    %v883 = vand.u32 %v680, 4294901760
    %884 = vmatmul.mubr.f32.gmra.mrb[0].mxu0 %v883
    %v885 = vpop.f32.mrb[0].mxu0
    %v886 = vadd.f32 %v765, %v885
    %v887 = vpop.f32.mrb[0].mxu0
    %888 = vmatprep.mubr.f32.mxu0 0.0
    %v889 = vand.u32 %v683, 4294901760
    %890 = vmatmul.mubr.f32.gmra.mrb[0].mxu0 %v889
    %v891 = vpop.f32.mrb[0].mxu0
    %v892 = vadd.f32 %v775, %v891
    %v893 = vpop.f32.mrb[0].mxu0
    %894 = vdwg.mxu0
    %895 = vmatprep.subr.mxu0 0.0
    %v896 = vand.u32 %v667, 4294901760
    %v897 = vsub.f32 %v667, %v896
    %898 = vmatpush1.msra.mxu0 %v897
    %899 = vmatprep.subr.mxu0 0.0
    %v900 = vand.u32 %v668, 4294901760
    %v901 = vsub.f32 %v668, %v900
    %902 = vmatpush1.msra.mxu0 %v901
    %903 = vmatprep.subr.mxu0 0.0
    %v904 = vand.u32 %v669, 4294901760
    %v905 = vsub.f32 %v669, %v904
    %906 = vmatpush1.msra.mxu0 %v905
    %907 = vmatprep.subr.mxu0 0.0
    %v908 = vand.u32 %v670, 4294901760
    %v909 = vsub.f32 %v670, %v908
    %910 = vmatpush1.msra.mxu0 %v909
    %911 = vmatprep.subr.mxu0 0.0
    %v912 = vand.u32 %v671, 4294901760
    %v913 = vsub.f32 %v671, %v912
    %914 = vmatpush1.msra.mxu0 %v913
    %915 = vmatprep.subr.mxu0 0.0
    %v916 = vand.u32 %v672, 4294901760
    %v917 = vsub.f32 %v672, %v916
    %918 = vmatpush1.msra.mxu0 %v917
    %919 = vmatprep.subr.mxu0 0.0
    %v920 = vand.u32 %v673, 4294901760
    %v921 = vsub.f32 %v673, %v920
    %922 = vmatpush1.msra.mxu0 %v921
    %923 = vmatprep.subr.mxu0 0.0
    %v924 = vand.u32 %v674, 4294901760
    %v925 = vsub.f32 %v674, %v924
    %926 = vmatpush1.msra.mxu0 %v925
    %927 = vmatprep.subr.mxu0 0.0
    %928 = vmatpush1.msra.mxu0 0.0
    %929 = vmatprep.subr.mxu0 0.0
    %930 = vmatpush1.msra.mxu0 0.0
    %931 = vmatprep.subr.mxu0 0.0
    %932 = vmatpush1.msra.mxu0 0.0
    %933 = vmatprep.subr.mxu0 0.0
    %934 = vmatpush1.msra.mxu0 0.0
    %935 = vmatprep.subr.mxu0 0.0
    %936 = vmatpush1.msra.mxu0 0.0
    %937 = vmatprep.subr.mxu0 0.0
    %938 = vmatpush1.msra.mxu0 0.0
    %939 = vmatprep.subr.mxu0 0.0
    %940 = vmatpush1.msra.mxu0 0.0
    %941 = vmatprep.subr.mxu0 0.0
    %942 = vmatpush1.msra.mxu0 0.0
    %943 = vmatprep.subr.mxu0 0.0
    %944 = vmatpush1.msra.mxu0 0.0
    %945 = vmatprep.subr.mxu0 0.0
    %946 = vmatpush1.msra.mxu0 0.0
    %947 = vmatprep.subr.mxu0 0.0
    %948 = vmatpush1.msra.mxu0 0.0
    %949 = vmatprep.subr.mxu0 0.0
    %950 = vmatpush1.msra.mxu0 0.0
    %951 = vmatprep.subr.mxu0 0.0
    %952 = vmatpush1.msra.mxu0 0.0
    %953 = vmatprep.subr.mxu0 0.0
    %954 = vmatpush1.msra.mxu0 0.0
    %955 = vmatprep.subr.mxu0 0.0
    %956 = vmatpush1.msra.mxu0 0.0
    %957 = vmatprep.subr.mxu0 0.0
    %958 = vmatpush1.msra.mxu0 0.0
    %959 = vmatprep.subr.mxu0 0.0
    %960 = vmatpush1.msra.mxu0 0.0
    %961 = vmatprep.subr.mxu0 0.0
    %962 = vmatpush1.msra.mxu0 0.0
    %963 = vmatprep.subr.mxu0 0.0
    %964 = vmatpush1.msra.mxu0 0.0
    %965 = vmatprep.subr.mxu0 0.0
    %966 = vmatpush1.msra.mxu0 0.0
    %967 = vmatprep.subr.mxu0 0.0
    %968 = vmatpush1.msra.mxu0 0.0
    %969 = vmatprep.subr.mxu0 0.0
    %970 = vmatpush1.msra.mxu0 0.0
    %971 = vmatprep.subr.mxu0 0.0
    %972 = vmatpush1.msra.mxu0 0.0
    %973 = vmatprep.subr.mxu0 0.0
    %974 = vmatpush1.msra.mxu0 0.0
    %975 = vmatprep.mubr.f32.mxu0 0.0
    %v976 = vand.u32 %v680, 4294901760
    %v977 = vsub.f32 %v680, %v976
    %978 = vmatmul.mubr.f32.gmra.mrb[0].mxu0 %v977
    %v979 = vpop.f32.mrb[0].mxu0
    %v980 = vadd.f32 %v886, %v979
    %v981 = vpop.f32.mrb[0].mxu0
    %982 = vmatprep.mubr.f32.mxu0 0.0
    %v983 = vand.u32 %v683, 4294901760
    %v984 = vsub.f32 %v683, %v983
    %985 = vmatmul.mubr.f32.gmra.mrb[0].mxu0 %v984
    %v986 = vpop.f32.mrb[0].mxu0
    %v987 = vadd.f32 %v892, %v986
    %v988 = vpop.f32.mrb[0].mxu0
    %989 = vdwg.mxu0
    %990 = vmatprep.subr.mxu0 0.0
    %v991 = vand.u32 %v667, 4294901760
    %992 = vmatpush1.msra.mxu0 %v991
    %993 = vmatprep.subr.mxu0 0.0
    %v994 = vand.u32 %v668, 4294901760
    %995 = vmatpush1.msra.mxu0 %v994
    %996 = vmatprep.subr.mxu0 0.0
    %v997 = vand.u32 %v669, 4294901760
    %998 = vmatpush1.msra.mxu0 %v997
    %999 = vmatprep.subr.mxu0 0.0
    %v1000 = vand.u32 %v670, 4294901760
    %1001 = vmatpush1.msra.mxu0 %v1000
    %1002 = vmatprep.subr.mxu0 0.0
    %v1003 = vand.u32 %v671, 4294901760
    %1004 = vmatpush1.msra.mxu0 %v1003
    %1005 = vmatprep.subr.mxu0 0.0
    %v1006 = vand.u32 %v672, 4294901760
    %1007 = vmatpush1.msra.mxu0 %v1006
    %1008 = vmatprep.subr.mxu0 0.0
    %v1009 = vand.u32 %v673, 4294901760
    %1010 = vmatpush1.msra.mxu0 %v1009
    %1011 = vmatprep.subr.mxu0 0.0
    %v1012 = vand.u32 %v674, 4294901760
    %1013 = vmatpush1.msra.mxu0 %v1012
    %1014 = vmatprep.subr.mxu0 0.0
    %1015 = vmatpush1.msra.mxu0 0.0
    %1016 = vmatprep.subr.mxu0 0.0
    %1017 = vmatpush1.msra.mxu0 0.0
    %1018 = vmatprep.subr.mxu0 0.0
    %1019 = vmatpush1.msra.mxu0 0.0
    %1020 = vmatprep.subr.mxu0 0.0
    %1021 = vmatpush1.msra.mxu0 0.0
    %1022 = vmatprep.subr.mxu0 0.0
    %1023 = vmatpush1.msra.mxu0 0.0
    %1024 = vmatprep.subr.mxu0 0.0
    %1025 = vmatpush1.msra.mxu0 0.0
    %1026 = vmatprep.subr.mxu0 0.0
    %1027 = vmatpush1.msra.mxu0 0.0
    %1028 = vmatprep.subr.mxu0 0.0
    %1029 = vmatpush1.msra.mxu0 0.0
    %1030 = vmatprep.subr.mxu0 0.0
    %1031 = vmatpush1.msra.mxu0 0.0
    %1032 = vmatprep.subr.mxu0 0.0
    %1033 = vmatpush1.msra.mxu0 0.0
    %1034 = vmatprep.subr.mxu0 0.0
    %1035 = vmatpush1.msra.mxu0 0.0
    %1036 = vmatprep.subr.mxu0 0.0
    %1037 = vmatpush1.msra.mxu0 0.0
    %1038 = vmatprep.subr.mxu0 0.0
    %1039 = vmatpush1.msra.mxu0 0.0
    %1040 = vmatprep.subr.mxu0 0.0
    %1041 = vmatpush1.msra.mxu0 0.0
    %1042 = vmatprep.subr.mxu0 0.0
    %1043 = vmatpush1.msra.mxu0 0.0
    %1044 = vmatprep.subr.mxu0 0.0
    %1045 = vmatpush1.msra.mxu0 0.0
    %1046 = vmatprep.subr.mxu0 0.0
    %1047 = vmatpush1.msra.mxu0 0.0
    %1048 = vmatprep.subr.mxu0 0.0
    %1049 = vmatpush1.msra.mxu0 0.0
    %1050 = vmatprep.subr.mxu0 0.0
    %1051 = vmatpush1.msra.mxu0 0.0
    %1052 = vmatprep.subr.mxu0 0.0
    %1053 = vmatpush1.msra.mxu0 0.0
    %1054 = vmatprep.subr.mxu0 0.0
    %1055 = vmatpush1.msra.mxu0 0.0
    %1056 = vmatprep.subr.mxu0 0.0
    %1057 = vmatpush1.msra.mxu0 0.0
    %1058 = vmatprep.subr.mxu0 0.0
    %1059 = vmatpush1.msra.mxu0 0.0
    %1060 = vmatprep.subr.mxu0 0.0
    %1061 = vmatpush1.msra.mxu0 0.0
    %1062 = vmatprep.mubr.f32.mxu0 0.0
    %v1063 = vand.u32 %v680, 4294901760
    %v1064 = vsub.f32 %v680, %v1063
    %v1065 = vand.u32 %v1064, 4294901760
    %1066 = vmatmul.mubr.f32.gmra.mrb[0].mxu0 %v1065
    %v1067 = vpop.f32.mrb[0].mxu0
    %v1068 = vadd.f32 %v980, %v1067
    %v1069 = vpop.f32.mrb[0].mxu0
    %1070 = vmatprep.mubr.f32.mxu0 0.0
    %v1071 = vand.u32 %v683, 4294901760
    %v1072 = vsub.f32 %v683, %v1071
    %v1073 = vand.u32 %v1072, 4294901760
    %1074 = vmatmul.mubr.f32.gmra.mrb[0].mxu0 %v1073
    %v1075 = vpop.f32.mrb[0].mxu0
    %v1076 = vadd.f32 %v987, %v1075
    %v1077 = vpop.f32.mrb[0].mxu0
    %1078 = vdwg.mxu0
    %1079 = vmatprep.subr.mxu0 0.0
    %v1080 = vand.u32 %v667, 4294901760
    %v1081 = vsub.f32 %v667, %v1080
    %v1082 = vand.u32 %v1081, 4294901760
    %1083 = vmatpush1.msra.mxu0 %v1082
    %1084 = vmatprep.subr.mxu0 0.0
    %v1085 = vand.u32 %v668, 4294901760
    %v1086 = vsub.f32 %v668, %v1085
    %v1087 = vand.u32 %v1086, 4294901760
    %1088 = vmatpush1.msra.mxu0 %v1087
    %1089 = vmatprep.subr.mxu0 0.0
    %v1090 = vand.u32 %v669, 4294901760
    %v1091 = vsub.f32 %v669, %v1090
    %v1092 = vand.u32 %v1091, 4294901760
    %1093 = vmatpush1.msra.mxu0 %v1092
    %1094 = vmatprep.subr.mxu0 0.0
    %v1095 = vand.u32 %v670, 4294901760
    %v1096 = vsub.f32 %v670, %v1095
    %v1097 = vand.u32 %v1096, 4294901760
    %1098 = vmatpush1.msra.mxu0 %v1097
    %1099 = vmatprep.subr.mxu0 0.0
    %v1100 = vand.u32 %v671, 4294901760
    %v1101 = vsub.f32 %v671, %v1100
    %v1102 = vand.u32 %v1101, 4294901760
    %1103 = vmatpush1.msra.mxu0 %v1102
    %1104 = vmatprep.subr.mxu0 0.0
    %v1105 = vand.u32 %v672, 4294901760
    %v1106 = vsub.f32 %v672, %v1105
    %v1107 = vand.u32 %v1106, 4294901760
    %1108 = vmatpush1.msra.mxu0 %v1107
    %1109 = vmatprep.subr.mxu0 0.0
    %v1110 = vand.u32 %v673, 4294901760
    %v1111 = vsub.f32 %v673, %v1110
    %v1112 = vand.u32 %v1111, 4294901760
    %1113 = vmatpush1.msra.mxu0 %v1112
    %1114 = vmatprep.subr.mxu0 0.0
    %v1115 = vand.u32 %v674, 4294901760
    %v1116 = vsub.f32 %v674, %v1115
    %v1117 = vand.u32 %v1116, 4294901760
    %1118 = vmatpush1.msra.mxu0 %v1117
    %1119 = vmatprep.subr.mxu0 0.0
    %1120 = vmatpush1.msra.mxu0 0.0
    %1121 = vmatprep.subr.mxu0 0.0
    %1122 = vmatpush1.msra.mxu0 0.0
    %1123 = vmatprep.subr.mxu0 0.0
    %1124 = vmatpush1.msra.mxu0 0.0
    %1125 = vmatprep.subr.mxu0 0.0
    %1126 = vmatpush1.msra.mxu0 0.0
    %1127 = vmatprep.subr.mxu0 0.0
    %1128 = vmatpush1.msra.mxu0 0.0
    %1129 = vmatprep.subr.mxu0 0.0
    %1130 = vmatpush1.msra.mxu0 0.0
    %1131 = vmatprep.subr.mxu0 0.0
    %1132 = vmatpush1.msra.mxu0 0.0
    %1133 = vmatprep.subr.mxu0 0.0
    %1134 = vmatpush1.msra.mxu0 0.0
    %1135 = vmatprep.subr.mxu0 0.0
    %1136 = vmatpush1.msra.mxu0 0.0
    %1137 = vmatprep.subr.mxu0 0.0
    %1138 = vmatpush1.msra.mxu0 0.0
    %1139 = vmatprep.subr.mxu0 0.0
    %1140 = vmatpush1.msra.mxu0 0.0
    %1141 = vmatprep.subr.mxu0 0.0
    %1142 = vmatpush1.msra.mxu0 0.0
    %1143 = vmatprep.subr.mxu0 0.0
    %1144 = vmatpush1.msra.mxu0 0.0
    %1145 = vmatprep.subr.mxu0 0.0
    %1146 = vmatpush1.msra.mxu0 0.0
    %1147 = vmatprep.subr.mxu0 0.0
    %1148 = vmatpush1.msra.mxu0 0.0
    %1149 = vmatprep.subr.mxu0 0.0
    %1150 = vmatpush1.msra.mxu0 0.0
    %1151 = vmatprep.subr.mxu0 0.0
    %1152 = vmatpush1.msra.mxu0 0.0
    %1153 = vmatprep.subr.mxu0 0.0
    %1154 = vmatpush1.msra.mxu0 0.0
    %1155 = vmatprep.subr.mxu0 0.0
    %1156 = vmatpush1.msra.mxu0 0.0
    %1157 = vmatprep.subr.mxu0 0.0
    %1158 = vmatpush1.msra.mxu0 0.0
    %1159 = vmatprep.subr.mxu0 0.0
    %1160 = vmatpush1.msra.mxu0 0.0
    %1161 = vmatprep.subr.mxu0 0.0
    %1162 = vmatpush1.msra.mxu0 0.0
    %1163 = vmatprep.subr.mxu0 0.0
    %1164 = vmatpush1.msra.mxu0 0.0
    %1165 = vmatprep.subr.mxu0 0.0
    %1166 = vmatpush1.msra.mxu0 0.0
    %1167 = vmatprep.mubr.f32.mxu0 0.0
    %v1168 = vand.u32 %v680, 4294901760
    %1169 = vmatmul.mubr.f32.gmra.mrb[0].mxu0 %v1168
    %v1170 = vpop.f32.mrb[0].mxu0
    %v1171 = vadd.f32 %v1068, %v1170
    %v1172 = vpop.f32.mrb[0].mxu0
    %1173 = vmatprep.mubr.f32.mxu0 0.0
    %v1174 = vand.u32 %v683, 4294901760
    %1175 = vmatmul.mubr.f32.gmra.mrb[0].mxu0 %v1174
    %v1176 = vpop.f32.mrb[0].mxu0
    %v1177 = vadd.f32 %v1076, %v1176
    %v1178 = vpop.f32.mrb[0].mxu0
    %1179 = vdwg.mxu0
    %1180 = vmatprep.subr.mxu0 0.0
    %v1181 = vand.u32 %v667, 4294901760
    %1182 = vmatpush1.msra.mxu0 %v1181
    %1183 = vmatprep.subr.mxu0 0.0
    %v1184 = vand.u32 %v668, 4294901760
    %1185 = vmatpush1.msra.mxu0 %v1184
    %1186 = vmatprep.subr.mxu0 0.0
    %v1187 = vand.u32 %v669, 4294901760
    %1188 = vmatpush1.msra.mxu0 %v1187
    %1189 = vmatprep.subr.mxu0 0.0
    %v1190 = vand.u32 %v670, 4294901760
    %1191 = vmatpush1.msra.mxu0 %v1190
    %1192 = vmatprep.subr.mxu0 0.0
    %v1193 = vand.u32 %v671, 4294901760
    %1194 = vmatpush1.msra.mxu0 %v1193
    %1195 = vmatprep.subr.mxu0 0.0
    %v1196 = vand.u32 %v672, 4294901760
    %1197 = vmatpush1.msra.mxu0 %v1196
    %1198 = vmatprep.subr.mxu0 0.0
    %v1199 = vand.u32 %v673, 4294901760
    %1200 = vmatpush1.msra.mxu0 %v1199
    %1201 = vmatprep.subr.mxu0 0.0
    %v1202 = vand.u32 %v674, 4294901760
    %1203 = vmatpush1.msra.mxu0 %v1202
    %1204 = vmatprep.subr.mxu0 0.0
    %1205 = vmatpush1.msra.mxu0 0.0
    %1206 = vmatprep.subr.mxu0 0.0
    %1207 = vmatpush1.msra.mxu0 0.0
    %1208 = vmatprep.subr.mxu0 0.0
    %1209 = vmatpush1.msra.mxu0 0.0
    %1210 = vmatprep.subr.mxu0 0.0
    %1211 = vmatpush1.msra.mxu0 0.0
    %1212 = vmatprep.subr.mxu0 0.0
    %1213 = vmatpush1.msra.mxu0 0.0
    %1214 = vmatprep.subr.mxu0 0.0
    %1215 = vmatpush1.msra.mxu0 0.0
    %1216 = vmatprep.subr.mxu0 0.0
    %1217 = vmatpush1.msra.mxu0 0.0
    %1218 = vmatprep.subr.mxu0 0.0
    %1219 = vmatpush1.msra.mxu0 0.0
    %1220 = vmatprep.subr.mxu0 0.0
    %1221 = vmatpush1.msra.mxu0 0.0
    %1222 = vmatprep.subr.mxu0 0.0
    %1223 = vmatpush1.msra.mxu0 0.0
    %1224 = vmatprep.subr.mxu0 0.0
    %1225 = vmatpush1.msra.mxu0 0.0
    %1226 = vmatprep.subr.mxu0 0.0
    %1227 = vmatpush1.msra.mxu0 0.0
    %1228 = vmatprep.subr.mxu0 0.0
    %1229 = vmatpush1.msra.mxu0 0.0
    %1230 = vmatprep.subr.mxu0 0.0
    %1231 = vmatpush1.msra.mxu0 0.0
    %1232 = vmatprep.subr.mxu0 0.0
    %1233 = vmatpush1.msra.mxu0 0.0
    %1234 = vmatprep.subr.mxu0 0.0
    %1235 = vmatpush1.msra.mxu0 0.0
    %1236 = vmatprep.subr.mxu0 0.0
    %1237 = vmatpush1.msra.mxu0 0.0
    %1238 = vmatprep.subr.mxu0 0.0
    %1239 = vmatpush1.msra.mxu0 0.0
    %1240 = vmatprep.subr.mxu0 0.0
    %1241 = vmatpush1.msra.mxu0 0.0
    %1242 = vmatprep.subr.mxu0 0.0
    %1243 = vmatpush1.msra.mxu0 0.0
    %1244 = vmatprep.subr.mxu0 0.0
    %1245 = vmatpush1.msra.mxu0 0.0
    %1246 = vmatprep.subr.mxu0 0.0
    %1247 = vmatpush1.msra.mxu0 0.0
    %1248 = vmatprep.subr.mxu0 0.0
    %1249 = vmatpush1.msra.mxu0 0.0
    %1250 = vmatprep.subr.mxu0 0.0
    %1251 = vmatpush1.msra.mxu0 0.0
    %1252 = vmatprep.mubr.f32.mxu0 0.0
    %v1253 = vand.u32 %v680, 4294901760
    %1254 = vmatmul.mubr.f32.gmra.mrb[0].mxu0 %v1253
    %v1255 = vpop.f32.mrb[0].mxu0
    %v1256 = vadd.f32 %v1171, %v1255
    %v1257 = vpop.f32.mrb[0].mxu0
    %1258 = vmatprep.mubr.f32.mxu0 0.0
    %v1259 = vand.u32 %v683, 4294901760
    %1260 = vmatmul.mubr.f32.gmra.mrb[0].mxu0 %v1259
    %v1261 = vpop.f32.mrb[0].mxu0
    %v1262 = vadd.f32 %v1177, %v1261
    %v1263 = vpop.f32.mrb[0].mxu0
    %1264 = vdwg.mxu0
    %vm1265 = vcmp.gt.f32.partialorder %v1256, 20.0
    %vm1266 = vcmp.gt.f32.partialorder %v1262, 20.0
    %v1267 = vmul.f32 %v1256, 1.442695
    %v1268 = vpow.pop %v1267
    %v1269 = vmul.f32 %v1262, 1.442695
    %v1270 = vpow.pop %v1269
    %v1271 = vadd.f32 %v1268, 1.0
    %v1272 = vlog2.pop %v1271
    %v1273 = vmul.f32 %v1272, 0.6931472
    %v1274 = vmul.f32 -0.5, %v1268
    %v1275 = vadd.f32 %v1274, 1.0
    %v1276 = vmul.f32 %v1275, %v1268
    %v1277 = vand.u32 2147483647, %v1268
    %vm1278 = vcmp.lt.f32.partialorder %v1277, 0.0004427343
    %v1279 = vsel %vm1278, %v1276, %v1273
    %v1280 = vadd.f32 %v1270, 1.0
    %v1281 = vlog2.pop %v1280
    %v1282 = vmul.f32 %v1281, 0.6931472
    %v1283 = vmul.f32 -0.5, %v1270
    %v1284 = vadd.f32 %v1283, 1.0
    %v1285 = vmul.f32 %v1284, %v1270
    %v1286 = vand.u32 2147483647, %v1270
    %vm1287 = vcmp.lt.f32.partialorder %v1286, 0.0004427343
    %v1288 = vsel %vm1287, %v1285, %v1282
    %v1289 = vsel %vm1265, %v1256, %v1279
    %v1290 = vsel %vm1266, %v1262, %v1288
    %v1291 = vld [vmem:[%s5] sm:$0xff]
    %v1292 = vld [vmem:[%s5 + $0x8] sm:$0xff]
    %v1293 = vld [vmem:[%s5 + $0x10] sm:$0xff]
    %v1294 = vld [vmem:[%s5 + $0x18] sm:$0xff]
    %v1295 = vld [vmem:[%s5 + $0x20] sm:$0xff]
    %v1296 = vld [vmem:[%s5 + $0x28] sm:$0xff]
    %v1297 = vld [vmem:[%s5 + $0x30] sm:$0xff]
    %v1298 = vld [vmem:[%s5 + $0x38] sm:$0xff]
    %1299 = vmatprep.subr.mxu0 0.0
    %v1300 = vand.u32 %v1291, 4294901760
    %1301 = vmatpush1.msra.mxu0 %v1300
    %1302 = vmatprep.subr.mxu0 0.0
    %v1303 = vand.u32 %v1292, 4294901760
    %1304 = vmatpush1.msra.mxu0 %v1303
    %1305 = vmatprep.subr.mxu0 0.0
    %v1306 = vand.u32 %v1293, 4294901760
    %1307 = vmatpush1.msra.mxu0 %v1306
    %1308 = vmatprep.subr.mxu0 0.0
    %v1309 = vand.u32 %v1294, 4294901760
    %1310 = vmatpush1.msra.mxu0 %v1309
    %1311 = vmatprep.subr.mxu0 0.0
    %v1312 = vand.u32 %v1295, 4294901760
    %1313 = vmatpush1.msra.mxu0 %v1312
    %1314 = vmatprep.subr.mxu0 0.0
    %v1315 = vand.u32 %v1296, 4294901760
    %1316 = vmatpush1.msra.mxu0 %v1315
    %1317 = vmatprep.subr.mxu0 0.0
    %v1318 = vand.u32 %v1297, 4294901760
    %1319 = vmatpush1.msra.mxu0 %v1318
    %1320 = vmatprep.subr.mxu0 0.0
    %v1321 = vand.u32 %v1298, 4294901760
    %1322 = vmatpush1.msra.mxu0 %v1321
    %1323 = vmatprep.subr.mxu0 0.0
    %1324 = vmatpush1.msra.mxu0 0.0
    %1325 = vmatprep.subr.mxu0 0.0
    %1326 = vmatpush1.msra.mxu0 0.0
    %1327 = vmatprep.subr.mxu0 0.0
    %1328 = vmatpush1.msra.mxu0 0.0
    %1329 = vmatprep.subr.mxu0 0.0
    %1330 = vmatpush1.msra.mxu0 0.0
    %1331 = vmatprep.subr.mxu0 0.0
    %1332 = vmatpush1.msra.mxu0 0.0
    %1333 = vmatprep.subr.mxu0 0.0
    %1334 = vmatpush1.msra.mxu0 0.0
    %1335 = vmatprep.subr.mxu0 0.0
    %1336 = vmatpush1.msra.mxu0 0.0
    %1337 = vmatprep.subr.mxu0 0.0
    %1338 = vmatpush1.msra.mxu0 0.0
    %1339 = vmatprep.subr.mxu0 0.0
    %1340 = vmatpush1.msra.mxu0 0.0
    %1341 = vmatprep.subr.mxu0 0.0
    %1342 = vmatpush1.msra.mxu0 0.0
    %1343 = vmatprep.subr.mxu0 0.0
    %1344 = vmatpush1.msra.mxu0 0.0
    %1345 = vmatprep.subr.mxu0 0.0
    %1346 = vmatpush1.msra.mxu0 0.0
    %1347 = vmatprep.subr.mxu0 0.0
    %1348 = vmatpush1.msra.mxu0 0.0
    %1349 = vmatprep.subr.mxu0 0.0
    %1350 = vmatpush1.msra.mxu0 0.0
    %1351 = vmatprep.subr.mxu0 0.0
    %1352 = vmatpush1.msra.mxu0 0.0
    %1353 = vmatprep.subr.mxu0 0.0
    %1354 = vmatpush1.msra.mxu0 0.0
    %1355 = vmatprep.subr.mxu0 0.0
    %1356 = vmatpush1.msra.mxu0 0.0
    %1357 = vmatprep.subr.mxu0 0.0
    %1358 = vmatpush1.msra.mxu0 0.0
    %1359 = vmatprep.subr.mxu0 0.0
    %1360 = vmatpush1.msra.mxu0 0.0
    %1361 = vmatprep.subr.mxu0 0.0
    %1362 = vmatpush1.msra.mxu0 0.0
    %1363 = vmatprep.subr.mxu0 0.0
    %1364 = vmatpush1.msra.mxu0 0.0
    %1365 = vmatprep.subr.mxu0 0.0
    %1366 = vmatpush1.msra.mxu0 0.0
    %1367 = vmatprep.subr.mxu0 0.0
    %1368 = vmatpush1.msra.mxu0 0.0
    %1369 = vmatprep.subr.mxu0 0.0
    %1370 = vmatpush1.msra.mxu0 0.0
    %1371 = vmatprep.mubr.f32.mxu0 0.0
    %v1372 = vand.u32 %v680, 4294901760
    %v1373 = vsub.f32 %v680, %v1372
    %v1374 = vand.u32 %v1373, 4294901760
    %v1375 = vsub.f32 %v1373, %v1374
    %v1376 = vand.u32 %v1375, 4294901760
    %1377 = vmatmul.mubr.f32.gmra.mrb[0].mxu0 %v1376
    %v1378 = vpop.f32.mrb[0].mxu0
    %v1379 = vadd.f32 0.0, %v1378
    %v1380 = vpop.f32.mrb[0].mxu0
    %1381 = vmatprep.mubr.f32.mxu0 0.0
    %v1382 = vand.u32 %v683, 4294901760
    %v1383 = vsub.f32 %v683, %v1382
    %v1384 = vand.u32 %v1383, 4294901760
    %v1385 = vsub.f32 %v1383, %v1384
    %v1386 = vand.u32 %v1385, 4294901760
    %1387 = vmatmul.mubr.f32.gmra.mrb[0].mxu0 %v1386
    %v1388 = vpop.f32.mrb[0].mxu0
    %v1389 = vadd.f32 0.0, %v1388
    %v1390 = vpop.f32.mrb[0].mxu0
    %1391 = vdwg.mxu0
    %1392 = vmatprep.subr.mxu0 0.0
    %v1393 = vand.u32 %v1291, 4294901760
    %v1394 = vsub.f32 %v1291, %v1393
    %v1395 = vand.u32 %v1394, 4294901760
    %v1396 = vsub.f32 %v1394, %v1395
    %v1397 = vand.u32 %v1396, 4294901760
    %1398 = vmatpush1.msra.mxu0 %v1397
    %1399 = vmatprep.subr.mxu0 0.0
    %v1400 = vand.u32 %v1292, 4294901760
    %v1401 = vsub.f32 %v1292, %v1400
    %v1402 = vand.u32 %v1401, 4294901760
    %v1403 = vsub.f32 %v1401, %v1402
    %v1404 = vand.u32 %v1403, 4294901760
    %1405 = vmatpush1.msra.mxu0 %v1404
    %1406 = vmatprep.subr.mxu0 0.0
    %v1407 = vand.u32 %v1293, 4294901760
    %v1408 = vsub.f32 %v1293, %v1407
    %v1409 = vand.u32 %v1408, 4294901760
    %v1410 = vsub.f32 %v1408, %v1409
    %v1411 = vand.u32 %v1410, 4294901760
    %1412 = vmatpush1.msra.mxu0 %v1411
    %1413 = vmatprep.subr.mxu0 0.0
    %v1414 = vand.u32 %v1294, 4294901760
    %v1415 = vsub.f32 %v1294, %v1414
    %v1416 = vand.u32 %v1415, 4294901760
    %v1417 = vsub.f32 %v1415, %v1416
    %v1418 = vand.u32 %v1417, 4294901760
    %1419 = vmatpush1.msra.mxu0 %v1418
    %1420 = vmatprep.subr.mxu0 0.0
    %v1421 = vand.u32 %v1295, 4294901760
    %v1422 = vsub.f32 %v1295, %v1421
    %v1423 = vand.u32 %v1422, 4294901760
    %v1424 = vsub.f32 %v1422, %v1423
    %v1425 = vand.u32 %v1424, 4294901760
    %1426 = vmatpush1.msra.mxu0 %v1425
    %1427 = vmatprep.subr.mxu0 0.0
    %v1428 = vand.u32 %v1296, 4294901760
    %v1429 = vsub.f32 %v1296, %v1428
    %v1430 = vand.u32 %v1429, 4294901760
    %v1431 = vsub.f32 %v1429, %v1430
    %v1432 = vand.u32 %v1431, 4294901760
    %1433 = vmatpush1.msra.mxu0 %v1432
    %1434 = vmatprep.subr.mxu0 0.0
    %v1435 = vand.u32 %v1297, 4294901760
    %v1436 = vsub.f32 %v1297, %v1435
    %v1437 = vand.u32 %v1436, 4294901760
    %v1438 = vsub.f32 %v1436, %v1437
    %v1439 = vand.u32 %v1438, 4294901760
    %1440 = vmatpush1.msra.mxu0 %v1439
    %1441 = vmatprep.subr.mxu0 0.0
    %v1442 = vand.u32 %v1298, 4294901760
    %v1443 = vsub.f32 %v1298, %v1442
    %v1444 = vand.u32 %v1443, 4294901760
    %v1445 = vsub.f32 %v1443, %v1444
    %v1446 = vand.u32 %v1445, 4294901760
    %1447 = vmatpush1.msra.mxu0 %v1446
    %1448 = vmatprep.subr.mxu0 0.0
    %1449 = vmatpush1.msra.mxu0 0.0
    %1450 = vmatprep.subr.mxu0 0.0
    %1451 = vmatpush1.msra.mxu0 0.0
    %1452 = vmatprep.subr.mxu0 0.0
    %1453 = vmatpush1.msra.mxu0 0.0
    %1454 = vmatprep.subr.mxu0 0.0
    %1455 = vmatpush1.msra.mxu0 0.0
    %1456 = vmatprep.subr.mxu0 0.0
    %1457 = vmatpush1.msra.mxu0 0.0
    %1458 = vmatprep.subr.mxu0 0.0
    %1459 = vmatpush1.msra.mxu0 0.0
    %1460 = vmatprep.subr.mxu0 0.0
    %1461 = vmatpush1.msra.mxu0 0.0
    %1462 = vmatprep.subr.mxu0 0.0
    %1463 = vmatpush1.msra.mxu0 0.0
    %1464 = vmatprep.subr.mxu0 0.0
    %1465 = vmatpush1.msra.mxu0 0.0
    %1466 = vmatprep.subr.mxu0 0.0
    %1467 = vmatpush1.msra.mxu0 0.0
    %1468 = vmatprep.subr.mxu0 0.0
    %1469 = vmatpush1.msra.mxu0 0.0
    %1470 = vmatprep.subr.mxu0 0.0
    %1471 = vmatpush1.msra.mxu0 0.0
    %1472 = vmatprep.subr.mxu0 0.0
    %1473 = vmatpush1.msra.mxu0 0.0
    %1474 = vmatprep.subr.mxu0 0.0
    %1475 = vmatpush1.msra.mxu0 0.0
    %1476 = vmatprep.subr.mxu0 0.0
    %1477 = vmatpush1.msra.mxu0 0.0
    %1478 = vmatprep.subr.mxu0 0.0
    %1479 = vmatpush1.msra.mxu0 0.0
    %1480 = vmatprep.subr.mxu0 0.0
    %1481 = vmatpush1.msra.mxu0 0.0
    %1482 = vmatprep.subr.mxu0 0.0
    %1483 = vmatpush1.msra.mxu0 0.0
    %1484 = vmatprep.subr.mxu0 0.0
    %1485 = vmatpush1.msra.mxu0 0.0
    %1486 = vmatprep.subr.mxu0 0.0
    %1487 = vmatpush1.msra.mxu0 0.0
    %1488 = vmatprep.subr.mxu0 0.0
    %1489 = vmatpush1.msra.mxu0 0.0
    %1490 = vmatprep.subr.mxu0 0.0
    %1491 = vmatpush1.msra.mxu0 0.0
    %1492 = vmatprep.subr.mxu0 0.0
    %1493 = vmatpush1.msra.mxu0 0.0
    %1494 = vmatprep.subr.mxu0 0.0
    %1495 = vmatpush1.msra.mxu0 0.0
    %1496 = vmatprep.mubr.f32.mxu0 0.0
    %v1497 = vand.u32 %v680, 4294901760
    %1498 = vmatmul.mubr.f32.gmra.mrb[0].mxu0 %v1497
    %v1499 = vpop.f32.mrb[0].mxu0
    %v1500 = vadd.f32 %v1379, %v1499
    %v1501 = vpop.f32.mrb[0].mxu0
    %1502 = vmatprep.mubr.f32.mxu0 0.0
    %v1503 = vand.u32 %v683, 4294901760
    %1504 = vmatmul.mubr.f32.gmra.mrb[0].mxu0 %v1503
    %v1505 = vpop.f32.mrb[0].mxu0
    %v1506 = vadd.f32 %v1389, %v1505
    %v1507 = vpop.f32.mrb[0].mxu0
    %1508 = vdwg.mxu0
    %1509 = vmatprep.subr.mxu0 0.0
    %v1510 = vand.u32 %v1291, 4294901760
    %v1511 = vsub.f32 %v1291, %v1510
    %1512 = vmatpush1.msra.mxu0 %v1511
    %1513 = vmatprep.subr.mxu0 0.0
    %v1514 = vand.u32 %v1292, 4294901760
    %v1515 = vsub.f32 %v1292, %v1514
    %1516 = vmatpush1.msra.mxu0 %v1515
    %1517 = vmatprep.subr.mxu0 0.0
    %v1518 = vand.u32 %v1293, 4294901760
    %v1519 = vsub.f32 %v1293, %v1518
    %1520 = vmatpush1.msra.mxu0 %v1519
    %1521 = vmatprep.subr.mxu0 0.0
    %v1522 = vand.u32 %v1294, 4294901760
    %v1523 = vsub.f32 %v1294, %v1522
    %1524 = vmatpush1.msra.mxu0 %v1523
    %1525 = vmatprep.subr.mxu0 0.0
    %v1526 = vand.u32 %v1295, 4294901760
    %v1527 = vsub.f32 %v1295, %v1526
    %1528 = vmatpush1.msra.mxu0 %v1527
    %1529 = vmatprep.subr.mxu0 0.0
    %v1530 = vand.u32 %v1296, 4294901760
    %v1531 = vsub.f32 %v1296, %v1530
    %1532 = vmatpush1.msra.mxu0 %v1531
    %1533 = vmatprep.subr.mxu0 0.0
    %v1534 = vand.u32 %v1297, 4294901760
    %v1535 = vsub.f32 %v1297, %v1534
    %1536 = vmatpush1.msra.mxu0 %v1535
    %1537 = vmatprep.subr.mxu0 0.0
    %v1538 = vand.u32 %v1298, 4294901760
    %v1539 = vsub.f32 %v1298, %v1538
    %1540 = vmatpush1.msra.mxu0 %v1539
    %1541 = vmatprep.subr.mxu0 0.0
    %1542 = vmatpush1.msra.mxu0 0.0
    %1543 = vmatprep.subr.mxu0 0.0
    %1544 = vmatpush1.msra.mxu0 0.0
    %1545 = vmatprep.subr.mxu0 0.0
    %1546 = vmatpush1.msra.mxu0 0.0
    %1547 = vmatprep.subr.mxu0 0.0
    %1548 = vmatpush1.msra.mxu0 0.0
    %1549 = vmatprep.subr.mxu0 0.0
    %1550 = vmatpush1.msra.mxu0 0.0
    %1551 = vmatprep.subr.mxu0 0.0
    %1552 = vmatpush1.msra.mxu0 0.0
    %1553 = vmatprep.subr.mxu0 0.0
    %1554 = vmatpush1.msra.mxu0 0.0
    %1555 = vmatprep.subr.mxu0 0.0
    %1556 = vmatpush1.msra.mxu0 0.0
    %1557 = vmatprep.subr.mxu0 0.0
    %1558 = vmatpush1.msra.mxu0 0.0
    %1559 = vmatprep.subr.mxu0 0.0
    %1560 = vmatpush1.msra.mxu0 0.0
    %1561 = vmatprep.subr.mxu0 0.0
    %1562 = vmatpush1.msra.mxu0 0.0
    %1563 = vmatprep.subr.mxu0 0.0
    %1564 = vmatpush1.msra.mxu0 0.0
    %1565 = vmatprep.subr.mxu0 0.0
    %1566 = vmatpush1.msra.mxu0 0.0
    %1567 = vmatprep.subr.mxu0 0.0
    %1568 = vmatpush1.msra.mxu0 0.0
    %1569 = vmatprep.subr.mxu0 0.0
    %1570 = vmatpush1.msra.mxu0 0.0
    %1571 = vmatprep.subr.mxu0 0.0
    %1572 = vmatpush1.msra.mxu0 0.0
    %1573 = vmatprep.subr.mxu0 0.0
    %1574 = vmatpush1.msra.mxu0 0.0
    %1575 = vmatprep.subr.mxu0 0.0
    %1576 = vmatpush1.msra.mxu0 0.0
    %1577 = vmatprep.subr.mxu0 0.0
    %1578 = vmatpush1.msra.mxu0 0.0
    %1579 = vmatprep.subr.mxu0 0.0
    %1580 = vmatpush1.msra.mxu0 0.0
    %1581 = vmatprep.subr.mxu0 0.0
    %1582 = vmatpush1.msra.mxu0 0.0
    %1583 = vmatprep.subr.mxu0 0.0
    %1584 = vmatpush1.msra.mxu0 0.0
    %1585 = vmatprep.subr.mxu0 0.0
    %1586 = vmatpush1.msra.mxu0 0.0
    %1587 = vmatprep.subr.mxu0 0.0
    %1588 = vmatpush1.msra.mxu0 0.0
    %1589 = vmatprep.mubr.f32.mxu0 0.0
    %v1590 = vand.u32 %v680, 4294901760
    %v1591 = vsub.f32 %v680, %v1590
    %1592 = vmatmul.mubr.f32.gmra.mrb[0].mxu0 %v1591
    %v1593 = vpop.f32.mrb[0].mxu0
    %v1594 = vadd.f32 %v1500, %v1593
    %v1595 = vpop.f32.mrb[0].mxu0
    %1596 = vmatprep.mubr.f32.mxu0 0.0
    %v1597 = vand.u32 %v683, 4294901760
    %v1598 = vsub.f32 %v683, %v1597
    %1599 = vmatmul.mubr.f32.gmra.mrb[0].mxu0 %v1598
    %v1600 = vpop.f32.mrb[0].mxu0
    %v1601 = vadd.f32 %v1506, %v1600
    %v1602 = vpop.f32.mrb[0].mxu0
    %1603 = vdwg.mxu0
    %1604 = vmatprep.subr.mxu0 0.0
    %v1605 = vand.u32 %v1291, 4294901760
    %1606 = vmatpush1.msra.mxu0 %v1605
    %1607 = vmatprep.subr.mxu0 0.0
    %v1608 = vand.u32 %v1292, 4294901760
    %1609 = vmatpush1.msra.mxu0 %v1608
    %1610 = vmatprep.subr.mxu0 0.0
    %v1611 = vand.u32 %v1293, 4294901760
    %1612 = vmatpush1.msra.mxu0 %v1611
    %1613 = vmatprep.subr.mxu0 0.0
    %v1614 = vand.u32 %v1294, 4294901760
    %1615 = vmatpush1.msra.mxu0 %v1614
    %1616 = vmatprep.subr.mxu0 0.0
    %v1617 = vand.u32 %v1295, 4294901760
    %1618 = vmatpush1.msra.mxu0 %v1617
    %1619 = vmatprep.subr.mxu0 0.0
    %v1620 = vand.u32 %v1296, 4294901760
    %1621 = vmatpush1.msra.mxu0 %v1620
    %1622 = vmatprep.subr.mxu0 0.0
    %v1623 = vand.u32 %v1297, 4294901760
    %1624 = vmatpush1.msra.mxu0 %v1623
    %1625 = vmatprep.subr.mxu0 0.0
    %v1626 = vand.u32 %v1298, 4294901760
    %1627 = vmatpush1.msra.mxu0 %v1626
    %1628 = vmatprep.subr.mxu0 0.0
    %1629 = vmatpush1.msra.mxu0 0.0
    %1630 = vmatprep.subr.mxu0 0.0
    %1631 = vmatpush1.msra.mxu0 0.0
    %1632 = vmatprep.subr.mxu0 0.0
    %1633 = vmatpush1.msra.mxu0 0.0
    %1634 = vmatprep.subr.mxu0 0.0
    %1635 = vmatpush1.msra.mxu0 0.0
    %1636 = vmatprep.subr.mxu0 0.0
    %1637 = vmatpush1.msra.mxu0 0.0
    %1638 = vmatprep.subr.mxu0 0.0
    %1639 = vmatpush1.msra.mxu0 0.0
    %1640 = vmatprep.subr.mxu0 0.0
    %1641 = vmatpush1.msra.mxu0 0.0
    %1642 = vmatprep.subr.mxu0 0.0
    %1643 = vmatpush1.msra.mxu0 0.0
    %1644 = vmatprep.subr.mxu0 0.0
    %1645 = vmatpush1.msra.mxu0 0.0
    %1646 = vmatprep.subr.mxu0 0.0
    %1647 = vmatpush1.msra.mxu0 0.0
    %1648 = vmatprep.subr.mxu0 0.0
    %1649 = vmatpush1.msra.mxu0 0.0
    %1650 = vmatprep.subr.mxu0 0.0
    %1651 = vmatpush1.msra.mxu0 0.0
    %1652 = vmatprep.subr.mxu0 0.0
    %1653 = vmatpush1.msra.mxu0 0.0
    %1654 = vmatprep.subr.mxu0 0.0
    %1655 = vmatpush1.msra.mxu0 0.0
    %1656 = vmatprep.subr.mxu0 0.0
    %1657 = vmatpush1.msra.mxu0 0.0
    %1658 = vmatprep.subr.mxu0 0.0
    %1659 = vmatpush1.msra.mxu0 0.0
    %1660 = vmatprep.subr.mxu0 0.0
    %1661 = vmatpush1.msra.mxu0 0.0
    %1662 = vmatprep.subr.mxu0 0.0
    %1663 = vmatpush1.msra.mxu0 0.0
    %1664 = vmatprep.subr.mxu0 0.0
    %1665 = vmatpush1.msra.mxu0 0.0
    %1666 = vmatprep.subr.mxu0 0.0
    %1667 = vmatpush1.msra.mxu0 0.0
    %1668 = vmatprep.subr.mxu0 0.0
    %1669 = vmatpush1.msra.mxu0 0.0
    %1670 = vmatprep.subr.mxu0 0.0
    %1671 = vmatpush1.msra.mxu0 0.0
    %1672 = vmatprep.subr.mxu0 0.0
    %1673 = vmatpush1.msra.mxu0 0.0
    %1674 = vmatprep.subr.mxu0 0.0
    %1675 = vmatpush1.msra.mxu0 0.0
    %1676 = vmatprep.mubr.f32.mxu0 0.0
    %v1677 = vand.u32 %v680, 4294901760
    %v1678 = vsub.f32 %v680, %v1677
    %v1679 = vand.u32 %v1678, 4294901760
    %1680 = vmatmul.mubr.f32.gmra.mrb[0].mxu0 %v1679
    %v1681 = vpop.f32.mrb[0].mxu0
    %v1682 = vadd.f32 %v1594, %v1681
    %v1683 = vpop.f32.mrb[0].mxu0
    %1684 = vmatprep.mubr.f32.mxu0 0.0
    %v1685 = vand.u32 %v683, 4294901760
    %v1686 = vsub.f32 %v683, %v1685
    %v1687 = vand.u32 %v1686, 4294901760
    %1688 = vmatmul.mubr.f32.gmra.mrb[0].mxu0 %v1687
    %v1689 = vpop.f32.mrb[0].mxu0
    %v1690 = vadd.f32 %v1601, %v1689
    %v1691 = vpop.f32.mrb[0].mxu0
    %1692 = vdwg.mxu0
    %1693 = vmatprep.subr.mxu0 0.0
    %v1694 = vand.u32 %v1291, 4294901760
    %v1695 = vsub.f32 %v1291, %v1694
    %v1696 = vand.u32 %v1695, 4294901760
    %1697 = vmatpush1.msra.mxu0 %v1696
    %1698 = vmatprep.subr.mxu0 0.0
    %v1699 = vand.u32 %v1292, 4294901760
    %v1700 = vsub.f32 %v1292, %v1699
    %v1701 = vand.u32 %v1700, 4294901760
    %1702 = vmatpush1.msra.mxu0 %v1701
    %1703 = vmatprep.subr.mxu0 0.0
    %v1704 = vand.u32 %v1293, 4294901760
    %v1705 = vsub.f32 %v1293, %v1704
    %v1706 = vand.u32 %v1705, 4294901760
    %1707 = vmatpush1.msra.mxu0 %v1706
    %1708 = vmatprep.subr.mxu0 0.0
    %v1709 = vand.u32 %v1294, 4294901760
    %v1710 = vsub.f32 %v1294, %v1709
    %v1711 = vand.u32 %v1710, 4294901760
    %1712 = vmatpush1.msra.mxu0 %v1711
    %1713 = vmatprep.subr.mxu0 0.0
    %v1714 = vand.u32 %v1295, 4294901760
    %v1715 = vsub.f32 %v1295, %v1714
    %v1716 = vand.u32 %v1715, 4294901760
    %1717 = vmatpush1.msra.mxu0 %v1716
    %1718 = vmatprep.subr.mxu0 0.0
    %v1719 = vand.u32 %v1296, 4294901760
    %v1720 = vsub.f32 %v1296, %v1719
    %v1721 = vand.u32 %v1720, 4294901760
    %1722 = vmatpush1.msra.mxu0 %v1721
    %1723 = vmatprep.subr.mxu0 0.0
    %v1724 = vand.u32 %v1297, 4294901760
    %v1725 = vsub.f32 %v1297, %v1724
    %v1726 = vand.u32 %v1725, 4294901760
    %1727 = vmatpush1.msra.mxu0 %v1726
    %1728 = vmatprep.subr.mxu0 0.0
    %v1729 = vand.u32 %v1298, 4294901760
    %v1730 = vsub.f32 %v1298, %v1729
    %v1731 = vand.u32 %v1730, 4294901760
    %1732 = vmatpush1.msra.mxu0 %v1731
    %1733 = vmatprep.subr.mxu0 0.0
    %1734 = vmatpush1.msra.mxu0 0.0
    %1735 = vmatprep.subr.mxu0 0.0
    %1736 = vmatpush1.msra.mxu0 0.0
    %1737 = vmatprep.subr.mxu0 0.0
    %1738 = vmatpush1.msra.mxu0 0.0
    %1739 = vmatprep.subr.mxu0 0.0
    %1740 = vmatpush1.msra.mxu0 0.0
    %1741 = vmatprep.subr.mxu0 0.0
    %1742 = vmatpush1.msra.mxu0 0.0
    %1743 = vmatprep.subr.mxu0 0.0
    %1744 = vmatpush1.msra.mxu0 0.0
    %1745 = vmatprep.subr.mxu0 0.0
    %1746 = vmatpush1.msra.mxu0 0.0
    %1747 = vmatprep.subr.mxu0 0.0
    %1748 = vmatpush1.msra.mxu0 0.0
    %1749 = vmatprep.subr.mxu0 0.0
    %1750 = vmatpush1.msra.mxu0 0.0
    %1751 = vmatprep.subr.mxu0 0.0
    %1752 = vmatpush1.msra.mxu0 0.0
    %1753 = vmatprep.subr.mxu0 0.0
    %1754 = vmatpush1.msra.mxu0 0.0
    %1755 = vmatprep.subr.mxu0 0.0
    %1756 = vmatpush1.msra.mxu0 0.0
    %1757 = vmatprep.subr.mxu0 0.0
    %1758 = vmatpush1.msra.mxu0 0.0
    %1759 = vmatprep.subr.mxu0 0.0
    %1760 = vmatpush1.msra.mxu0 0.0
    %1761 = vmatprep.subr.mxu0 0.0
    %1762 = vmatpush1.msra.mxu0 0.0
    %1763 = vmatprep.subr.mxu0 0.0
    %1764 = vmatpush1.msra.mxu0 0.0
    %1765 = vmatprep.subr.mxu0 0.0
    %1766 = vmatpush1.msra.mxu0 0.0
    %1767 = vmatprep.subr.mxu0 0.0
    %1768 = vmatpush1.msra.mxu0 0.0
    %1769 = vmatprep.subr.mxu0 0.0
    %1770 = vmatpush1.msra.mxu0 0.0
    %1771 = vmatprep.subr.mxu0 0.0
    %1772 = vmatpush1.msra.mxu0 0.0
    %1773 = vmatprep.subr.mxu0 0.0
    %1774 = vmatpush1.msra.mxu0 0.0
    %1775 = vmatprep.subr.mxu0 0.0
    %1776 = vmatpush1.msra.mxu0 0.0
    %1777 = vmatprep.subr.mxu0 0.0
    %1778 = vmatpush1.msra.mxu0 0.0
    %1779 = vmatprep.subr.mxu0 0.0
    %1780 = vmatpush1.msra.mxu0 0.0
    %1781 = vmatprep.mubr.f32.mxu0 0.0
    %v1782 = vand.u32 %v680, 4294901760
    %1783 = vmatmul.mubr.f32.gmra.mrb[0].mxu0 %v1782
    %v1784 = vpop.f32.mrb[0].mxu0
    %v1785 = vadd.f32 %v1682, %v1784
    %v1786 = vpop.f32.mrb[0].mxu0
    %1787 = vmatprep.mubr.f32.mxu0 0.0
    %v1788 = vand.u32 %v683, 4294901760
    %1789 = vmatmul.mubr.f32.gmra.mrb[0].mxu0 %v1788
    %v1790 = vpop.f32.mrb[0].mxu0
    %v1791 = vadd.f32 %v1690, %v1790
    %v1792 = vpop.f32.mrb[0].mxu0
    %1793 = vdwg.mxu0
    %1794 = vmatprep.subr.mxu0 0.0
    %v1795 = vand.u32 %v1291, 4294901760
    %1796 = vmatpush1.msra.mxu0 %v1795
    %1797 = vmatprep.subr.mxu0 0.0
    %v1798 = vand.u32 %v1292, 4294901760
    %1799 = vmatpush1.msra.mxu0 %v1798
    %1800 = vmatprep.subr.mxu0 0.0
    %v1801 = vand.u32 %v1293, 4294901760
    %1802 = vmatpush1.msra.mxu0 %v1801
    %1803 = vmatprep.subr.mxu0 0.0
    %v1804 = vand.u32 %v1294, 4294901760
    %1805 = vmatpush1.msra.mxu0 %v1804
    %1806 = vmatprep.subr.mxu0 0.0
    %v1807 = vand.u32 %v1295, 4294901760
    %1808 = vmatpush1.msra.mxu0 %v1807
    %1809 = vmatprep.subr.mxu0 0.0
    %v1810 = vand.u32 %v1296, 4294901760
    %1811 = vmatpush1.msra.mxu0 %v1810
    %1812 = vmatprep.subr.mxu0 0.0
    %v1813 = vand.u32 %v1297, 4294901760
    %1814 = vmatpush1.msra.mxu0 %v1813
    %1815 = vmatprep.subr.mxu0 0.0
    %v1816 = vand.u32 %v1298, 4294901760
    %1817 = vmatpush1.msra.mxu0 %v1816
    %1818 = vmatprep.subr.mxu0 0.0
    %1819 = vmatpush1.msra.mxu0 0.0
    %1820 = vmatprep.subr.mxu0 0.0
    %1821 = vmatpush1.msra.mxu0 0.0
    %1822 = vmatprep.subr.mxu0 0.0
    %1823 = vmatpush1.msra.mxu0 0.0
    %1824 = vmatprep.subr.mxu0 0.0
    %1825 = vmatpush1.msra.mxu0 0.0
    %1826 = vmatprep.subr.mxu0 0.0
    %1827 = vmatpush1.msra.mxu0 0.0
    %1828 = vmatprep.subr.mxu0 0.0
    %1829 = vmatpush1.msra.mxu0 0.0
    %1830 = vmatprep.subr.mxu0 0.0
    %1831 = vmatpush1.msra.mxu0 0.0
    %1832 = vmatprep.subr.mxu0 0.0
    %1833 = vmatpush1.msra.mxu0 0.0
    %1834 = vmatprep.subr.mxu0 0.0
    %1835 = vmatpush1.msra.mxu0 0.0
    %1836 = vmatprep.subr.mxu0 0.0
    %1837 = vmatpush1.msra.mxu0 0.0
    %1838 = vmatprep.subr.mxu0 0.0
    %1839 = vmatpush1.msra.mxu0 0.0
    %1840 = vmatprep.subr.mxu0 0.0
    %1841 = vmatpush1.msra.mxu0 0.0
    %1842 = vmatprep.subr.mxu0 0.0
    %1843 = vmatpush1.msra.mxu0 0.0
    %1844 = vmatprep.subr.mxu0 0.0
    %1845 = vmatpush1.msra.mxu0 0.0
    %1846 = vmatprep.subr.mxu0 0.0
    %1847 = vmatpush1.msra.mxu0 0.0
    %1848 = vmatprep.subr.mxu0 0.0
    %1849 = vmatpush1.msra.mxu0 0.0
    %1850 = vmatprep.subr.mxu0 0.0
    %1851 = vmatpush1.msra.mxu0 0.0
    %1852 = vmatprep.subr.mxu0 0.0
    %1853 = vmatpush1.msra.mxu0 0.0
    %1854 = vmatprep.subr.mxu0 0.0
    %1855 = vmatpush1.msra.mxu0 0.0
    %1856 = vmatprep.subr.mxu0 0.0
    %1857 = vmatpush1.msra.mxu0 0.0
    %1858 = vmatprep.subr.mxu0 0.0
    %1859 = vmatpush1.msra.mxu0 0.0
    %1860 = vmatprep.subr.mxu0 0.0
    %1861 = vmatpush1.msra.mxu0 0.0
    %1862 = vmatprep.subr.mxu0 0.0
    %1863 = vmatpush1.msra.mxu0 0.0
    %1864 = vmatprep.subr.mxu0 0.0
    %1865 = vmatpush1.msra.mxu0 0.0
    %1866 = vmatprep.mubr.f32.mxu0 0.0
    %v1867 = vand.u32 %v680, 4294901760
    %1868 = vmatmul.mubr.f32.gmra.mrb[0].mxu0 %v1867
    %v1869 = vpop.f32.mrb[0].mxu0
    %v1870 = vadd.f32 %v1785, %v1869
    %v1871 = vpop.f32.mrb[0].mxu0
    %1872 = vmatprep.mubr.f32.mxu0 0.0
    %v1873 = vand.u32 %v683, 4294901760
    %1874 = vmatmul.mubr.f32.gmra.mrb[0].mxu0 %v1873
    %v1875 = vpop.f32.mrb[0].mxu0
    %v1876 = vadd.f32 %v1791, %v1875
    %v1877 = vpop.f32.mrb[0].mxu0
    %1878 = vdwg.mxu0
    %v1879 = vmul.f32 %v1289, %v665
    %v1880 = vmul.f32 %v1290, %v666
    %v1881 = vld [vmem:[%s6] sm:$0xff]
    %v1882 = vld [vmem:[%s6 + $0x8] sm:$0xff]
    %v1885 = vcombine.high %v1289, %v1289
    %v1887 = vunpack.c.l.s4 1966171168
    %v1888 = vunpack.c.0.s8 %v1887
    %v1889 = vlaneseq
    %v1890 = vshrl.u32 %v1889, 7
    %v1891 = vsub.s32 %v1888, %v1890
    %v1892 = vrot.slane %v1289, %v1891
    %v1894 = vunpack.c.l.s4 1966171168
    %v1895 = vunpack.c.0.s8 %v1894
    %v1896 = vlaneseq
    %v1897 = vshrl.u32 %v1896, 7
    %v1898 = vsub.s32 %v1895, %v1897
    %v1899 = vrot.slane %v1885, %v1898
    %v1900 = vcombine.high %v1892, %v1892
    %v1901 = vcombine.high %v1899, %v1899
    %v1903 = vunpack.c.l.s4 1966171168
    %v1904 = vunpack.c.0.s8 %v1903
    %v1905 = vlaneseq
    %v1906 = vshrl.u32 %v1905, 7
    %v1907 = vsub.s32 %v1904, %v1906
    %v1908 = vrot.slane %v1892, %v1907
    %v1910 = vunpack.c.l.s4 1966171168
    %v1911 = vunpack.c.0.s8 %v1910
    %v1912 = vlaneseq
    %v1913 = vshrl.u32 %v1912, 7
    %v1914 = vsub.s32 %v1911, %v1913
    %v1915 = vrot.slane %v1899, %v1914
    %v1917 = vunpack.c.l.s4 1966171168
    %v1918 = vunpack.c.0.s8 %v1917
    %v1919 = vlaneseq
    %v1920 = vshrl.u32 %v1919, 7
    %v1921 = vsub.s32 %v1918, %v1920
    %v1922 = vrot.slane %v1900, %v1921
    %v1924 = vunpack.c.l.s4 1966171168
    %v1925 = vunpack.c.0.s8 %v1924
    %v1926 = vlaneseq
    %v1927 = vshrl.u32 %v1926, 7
    %v1928 = vsub.s32 %v1925, %v1927
    %v1929 = vrot.slane %v1901, %v1928
    %v1930 = vcombine.high %v1908, %v1908
    %v1931 = vcombine.high %v1915, %v1915
    %v1932 = vcombine.high %v1922, %v1922
    %v1933 = vcombine.high %v1929, %v1929
    %v1934 = vcombine.high %v1290, %v1290
    %v1936 = vunpack.c.l.s4 1966171168
    %v1937 = vunpack.c.0.s8 %v1936
    %v1938 = vlaneseq
    %v1939 = vshrl.u32 %v1938, 7
    %v1940 = vsub.s32 %v1937, %v1939
    %v1941 = vrot.slane %v1290, %v1940
    %v1943 = vunpack.c.l.s4 1966171168
    %v1944 = vunpack.c.0.s8 %v1943
    %v1945 = vlaneseq
    %v1946 = vshrl.u32 %v1945, 7
    %v1947 = vsub.s32 %v1944, %v1946
    %v1948 = vrot.slane %v1934, %v1947
    %v1949 = vcombine.high %v1941, %v1941
    %v1950 = vcombine.high %v1948, %v1948
    %v1952 = vunpack.c.l.s4 1966171168
    %v1953 = vunpack.c.0.s8 %v1952
    %v1954 = vlaneseq
    %v1955 = vshrl.u32 %v1954, 7
    %v1956 = vsub.s32 %v1953, %v1955
    %v1957 = vrot.slane %v1941, %v1956
    %v1959 = vunpack.c.l.s4 1966171168
    %v1960 = vunpack.c.0.s8 %v1959
    %v1961 = vlaneseq
    %v1962 = vshrl.u32 %v1961, 7
    %v1963 = vsub.s32 %v1960, %v1962
    %v1964 = vrot.slane %v1948, %v1963
    %v1966 = vunpack.c.l.s4 1966171168
    %v1967 = vunpack.c.0.s8 %v1966
    %v1968 = vlaneseq
    %v1969 = vshrl.u32 %v1968, 7
    %v1970 = vsub.s32 %v1967, %v1969
    %v1971 = vrot.slane %v1949, %v1970
    %v1973 = vunpack.c.l.s4 1966171168
    %v1974 = vunpack.c.0.s8 %v1973
    %v1975 = vlaneseq
    %v1976 = vshrl.u32 %v1975, 7
    %v1977 = vsub.s32 %v1974, %v1976
    %v1978 = vrot.slane %v1950, %v1977
    %v1979 = vcombine.high %v1957, %v1957
    %v1980 = vcombine.high %v1964, %v1964
    %v1981 = vcombine.high %v1971, %v1971
    %v1982 = vcombine.high %v1978, %v1978
    %v1983 = vlaneseq
    %v1984 = vshrl.u32 %v1983, 7
    %v1985 = vsub.s32 0, %v1984
    %v1986 = vrot.slane %v1908, %v1985
    %v1987 = vlaneseq
    %v1988 = vshrl.u32 %v1987, 7
    %v1989 = vsub.s32 0, %v1988
    %v1990 = vrot.slane %v1922, %v1989
    %v1991 = vlaneseq
    %v1992 = vshrl.u32 %v1991, 7
    %v1993 = vsub.s32 0, %v1992
    %v1994 = vrot.slane %v1930, %v1993
    %v1995 = vlaneseq
    %v1996 = vshrl.u32 %v1995, 7
    %v1997 = vsub.s32 0, %v1996
    %v1998 = vrot.slane %v1932, %v1997
    %v1999 = vlaneseq
    %v2000 = vshrl.u32 %v1999, 7
    %v2001 = vsub.s32 0, %v2000
    %v2002 = vrot.slane %v1915, %v2001
    %v2003 = vlaneseq
    %v2004 = vshrl.u32 %v2003, 7
    %v2005 = vsub.s32 0, %v2004
    %v2006 = vrot.slane %v1929, %v2005
    %v2007 = vlaneseq
    %v2008 = vshrl.u32 %v2007, 7
    %v2009 = vsub.s32 0, %v2008
    %v2010 = vrot.slane %v1931, %v2009
    %v2011 = vlaneseq
    %v2012 = vshrl.u32 %v2011, 7
    %v2013 = vsub.s32 0, %v2012
    %v2014 = vrot.slane %v1933, %v2013
    %v2015 = vlaneseq
    %v2016 = vshrl.u32 %v2015, 7
    %v2017 = vsub.s32 0, %v2016
    %v2018 = vrot.slane %v1957, %v2017
    %v2019 = vlaneseq
    %v2020 = vshrl.u32 %v2019, 7
    %v2021 = vsub.s32 0, %v2020
    %v2022 = vrot.slane %v1971, %v2021
    %v2023 = vlaneseq
    %v2024 = vshrl.u32 %v2023, 7
    %v2025 = vsub.s32 0, %v2024
    %v2026 = vrot.slane %v1979, %v2025
    %v2027 = vlaneseq
    %v2028 = vshrl.u32 %v2027, 7
    %v2029 = vsub.s32 0, %v2028
    %v2030 = vrot.slane %v1981, %v2029
    %v2031 = vlaneseq
    %v2032 = vshrl.u32 %v2031, 7
    %v2033 = vsub.s32 0, %v2032
    %v2034 = vrot.slane %v1964, %v2033
    %v2035 = vlaneseq
    %v2036 = vshrl.u32 %v2035, 7
    %v2037 = vsub.s32 0, %v2036
    %v2038 = vrot.slane %v1978, %v2037
    %v2039 = vlaneseq
    %v2040 = vshrl.u32 %v2039, 7
    %v2041 = vsub.s32 0, %v2040
    %v2042 = vrot.slane %v1980, %v2041
    %v2043 = vlaneseq
    %v2044 = vshrl.u32 %v2043, 7
    %v2045 = vsub.s32 0, %v2044
    %v2046 = vrot.slane %v1982, %v2045
    %v2063 = vmul.f32 %v1986, %v1881
    %v2064 = vmul.f32 %v1986, %v1882
    %v2065 = vmul.f32 %v1990, %v1881
    %v2066 = vmul.f32 %v1990, %v1882
    %v2067 = vmul.f32 %v1994, %v1881
    %v2068 = vmul.f32 %v1994, %v1882
    %v2069 = vmul.f32 %v1998, %v1881
    %v2070 = vmul.f32 %v1998, %v1882
    %v2071 = vmul.f32 %v2002, %v1881
    %v2072 = vmul.f32 %v2002, %v1882
    %v2073 = vmul.f32 %v2006, %v1881
    %v2074 = vmul.f32 %v2006, %v1882
    %v2075 = vmul.f32 %v2010, %v1881
    %v2076 = vmul.f32 %v2010, %v1882
    %v2077 = vmul.f32 %v2014, %v1881
    %v2078 = vmul.f32 %v2014, %v1882
    %v2079 = vmul.f32 %v2018, %v1881
    %v2080 = vmul.f32 %v2018, %v1882
    %v2081 = vmul.f32 %v2022, %v1881
    %v2082 = vmul.f32 %v2022, %v1882
    %v2083 = vmul.f32 %v2026, %v1881
    %v2084 = vmul.f32 %v2026, %v1882
    %v2085 = vmul.f32 %v2030, %v1881
    %v2086 = vmul.f32 %v2030, %v1882
    %v2087 = vmul.f32 %v2034, %v1881
    %v2088 = vmul.f32 %v2034, %v1882
    %v2089 = vmul.f32 %v2038, %v1881
    %v2090 = vmul.f32 %v2038, %v1882
    %v2091 = vmul.f32 %v2042, %v1881
    %v2092 = vmul.f32 %v2042, %v1882
    %v2093 = vmul.f32 %v2046, %v1881
    %v2094 = vmul.f32 %v2046, %v1882
    %v2095 = vmul.f32 %v2063, 1.442695
    %v2096 = vpow.pop %v2095
    %v2097 = vmul.f32 %v2064, 1.442695
    %v2098 = vpow.pop %v2097
    %v2099 = vmul.f32 %v2065, 1.442695
    %v2100 = vpow.pop %v2099
    %v2101 = vmul.f32 %v2066, 1.442695
    %v2102 = vpow.pop %v2101
    %v2103 = vmul.f32 %v2067, 1.442695
    %v2104 = vpow.pop %v2103
    %v2105 = vmul.f32 %v2068, 1.442695
    %v2106 = vpow.pop %v2105
    %v2107 = vmul.f32 %v2069, 1.442695
    %v2108 = vpow.pop %v2107
    %v2109 = vmul.f32 %v2070, 1.442695
    %v2110 = vpow.pop %v2109
    %v2111 = vmul.f32 %v2071, 1.442695
    %v2112 = vpow.pop %v2111
    %v2113 = vmul.f32 %v2072, 1.442695
    %v2114 = vpow.pop %v2113
    %v2115 = vmul.f32 %v2073, 1.442695
    %v2116 = vpow.pop %v2115
    %v2117 = vmul.f32 %v2074, 1.442695
    %v2118 = vpow.pop %v2117
    %v2119 = vmul.f32 %v2075, 1.442695
    %v2120 = vpow.pop %v2119
    %v2121 = vmul.f32 %v2076, 1.442695
    %v2122 = vpow.pop %v2121
    %v2123 = vmul.f32 %v2077, 1.442695
    %v2124 = vpow.pop %v2123
    %v2125 = vmul.f32 %v2078, 1.442695
    %v2126 = vpow.pop %v2125
    %v2127 = vmul.f32 %v2079, 1.442695
    %v2128 = vpow.pop %v2127
    %v2129 = vmul.f32 %v2080, 1.442695
    %v2130 = vpow.pop %v2129
    %v2131 = vmul.f32 %v2081, 1.442695
    %v2132 = vpow.pop %v2131
    %v2133 = vmul.f32 %v2082, 1.442695
    %v2134 = vpow.pop %v2133
    %v2135 = vmul.f32 %v2083, 1.442695
    %v2136 = vpow.pop %v2135
    %v2137 = vmul.f32 %v2084, 1.442695
    %v2138 = vpow.pop %v2137
    %v2139 = vmul.f32 %v2085, 1.442695
    %v2140 = vpow.pop %v2139
    %v2141 = vmul.f32 %v2086, 1.442695
    %v2142 = vpow.pop %v2141
    %v2143 = vmul.f32 %v2087, 1.442695
    %v2144 = vpow.pop %v2143
    %v2145 = vmul.f32 %v2088, 1.442695
    %v2146 = vpow.pop %v2145
    %v2147 = vmul.f32 %v2089, 1.442695
    %v2148 = vpow.pop %v2147
    %v2149 = vmul.f32 %v2090, 1.442695
    %v2150 = vpow.pop %v2149
    %v2151 = vmul.f32 %v2091, 1.442695
    %v2152 = vpow.pop %v2151
    %v2153 = vmul.f32 %v2092, 1.442695
    %v2154 = vpow.pop %v2153
    %v2155 = vmul.f32 %v2093, 1.442695
    %v2156 = vpow.pop %v2155
    %v2157 = vmul.f32 %v2094, 1.442695
    %v2158 = vpow.pop %v2157
    %2159 = vst.msk [vmem:[#allocation3] sm:$0xff] %vm606, %v2096
    %2160 = vst.msk [vmem:[#allocation3 + $0x8] sm:$0xff] %vm606, %v2098
    %2161 = vst.msk [vmem:[#allocation3 + $0x10] sm:$0xff] %vm606, %v2100
    %2162 = vst.msk [vmem:[#allocation3 + $0x18] sm:$0xff] %vm606, %v2102
    %2163 = vst.msk [vmem:[#allocation3 + $0x20] sm:$0xff] %vm606, %v2104
    %2164 = vst.msk [vmem:[#allocation3 + $0x28] sm:$0xff] %vm606, %v2106
    %2165 = vst.msk [vmem:[#allocation3 + $0x30] sm:$0xff] %vm606, %v2108
    %2166 = vst.msk [vmem:[#allocation3 + $0x38] sm:$0xff] %vm606, %v2110
    %2167 = vst.msk [vmem:[#allocation3 + $0x40] sm:$0xff] %vm606, %v2112
    %2168 = vst.msk [vmem:[#allocation3 + $0x48] sm:$0xff] %vm606, %v2114
    %2169 = vst.msk [vmem:[#allocation3 + $0x50] sm:$0xff] %vm606, %v2116
    %2170 = vst.msk [vmem:[#allocation3 + $0x58] sm:$0xff] %vm606, %v2118
    %2171 = vst.msk [vmem:[#allocation3 + $0x60] sm:$0xff] %vm606, %v2120
    %2172 = vst.msk [vmem:[#allocation3 + $0x68] sm:$0xff] %vm606, %v2122
    %2173 = vst.msk [vmem:[#allocation3 + $0x70] sm:$0xff] %vm606, %v2124
    %2174 = vst.msk [vmem:[#allocation3 + $0x78] sm:$0xff] %vm606, %v2126
    %2175 = vst.msk [vmem:[#allocation3 + $0x80] sm:$0xff] %vm606, %v2128
    %2176 = vst.msk [vmem:[#allocation3 + $0x88] sm:$0xff] %vm606, %v2130
    %2177 = vst.msk [vmem:[#allocation3 + $0x90] sm:$0xff] %vm606, %v2132
    %2178 = vst.msk [vmem:[#allocation3 + $0x98] sm:$0xff] %vm606, %v2134
    %2179 = vst.msk [vmem:[#allocation3 + $0xa0] sm:$0xff] %vm606, %v2136
    %2180 = vst.msk [vmem:[#allocation3 + $0xa8] sm:$0xff] %vm606, %v2138
    %2181 = vst.msk [vmem:[#allocation3 + $0xb0] sm:$0xff] %vm606, %v2140
    %2182 = vst.msk [vmem:[#allocation3 + $0xb8] sm:$0xff] %vm606, %v2142
    %2183 = vst.msk [vmem:[#allocation3 + $0xc0] sm:$0xff] %vm606, %v2144
    %2184 = vst.msk [vmem:[#allocation3 + $0xc8] sm:$0xff] %vm606, %v2146
    %2185 = vst.msk [vmem:[#allocation3 + $0xd0] sm:$0xff] %vm606, %v2148
    %2186 = vst.msk [vmem:[#allocation3 + $0xd8] sm:$0xff] %vm606, %v2150
    %2187 = vst.msk [vmem:[#allocation3 + $0xe0] sm:$0xff] %vm606, %v2152
    %2188 = vst.msk [vmem:[#allocation3 + $0xe8] sm:$0xff] %vm606, %v2154
    %2189 = vst.msk [vmem:[#allocation3 + $0xf0] sm:$0xff] %vm606, %v2156
    %2190 = vst.msk [vmem:[#allocation3 + $0xf8] sm:$0xff] %vm606, %v2158
    %v2193 = vcombine.high %v1879, %v1879
    %v2195 = vunpack.c.l.s4 1966171168
    %v2196 = vunpack.c.0.s8 %v2195
    %v2197 = vlaneseq
    %v2198 = vshrl.u32 %v2197, 7
    %v2199 = vsub.s32 %v2196, %v2198
    %v2200 = vrot.slane %v1879, %v2199
    %v2202 = vunpack.c.l.s4 1966171168
    %v2203 = vunpack.c.0.s8 %v2202
    %v2204 = vlaneseq
    %v2205 = vshrl.u32 %v2204, 7
    %v2206 = vsub.s32 %v2203, %v2205
    %v2207 = vrot.slane %v2193, %v2206
    %v2208 = vcombine.high %v2200, %v2200
    %v2209 = vcombine.high %v2207, %v2207
    %v2211 = vunpack.c.l.s4 1966171168
    %v2212 = vunpack.c.0.s8 %v2211
    %v2213 = vlaneseq
    %v2214 = vshrl.u32 %v2213, 7
    %v2215 = vsub.s32 %v2212, %v2214
    %v2216 = vrot.slane %v2200, %v2215
    %v2218 = vunpack.c.l.s4 1966171168
    %v2219 = vunpack.c.0.s8 %v2218
    %v2220 = vlaneseq
    %v2221 = vshrl.u32 %v2220, 7
    %v2222 = vsub.s32 %v2219, %v2221
    %v2223 = vrot.slane %v2207, %v2222
    %v2225 = vunpack.c.l.s4 1966171168
    %v2226 = vunpack.c.0.s8 %v2225
    %v2227 = vlaneseq
    %v2228 = vshrl.u32 %v2227, 7
    %v2229 = vsub.s32 %v2226, %v2228
    %v2230 = vrot.slane %v2208, %v2229
    %v2232 = vunpack.c.l.s4 1966171168
    %v2233 = vunpack.c.0.s8 %v2232
    %v2234 = vlaneseq
    %v2235 = vshrl.u32 %v2234, 7
    %v2236 = vsub.s32 %v2233, %v2235
    %v2237 = vrot.slane %v2209, %v2236
    %v2238 = vcombine.high %v2216, %v2216
    %v2239 = vcombine.high %v2223, %v2223
    %v2240 = vcombine.high %v2230, %v2230
    %v2241 = vcombine.high %v2237, %v2237
    %v2242 = vcombine.high %v1880, %v1880
    %v2244 = vunpack.c.l.s4 1966171168
    %v2245 = vunpack.c.0.s8 %v2244
    %v2246 = vlaneseq
    %v2247 = vshrl.u32 %v2246, 7
    %v2248 = vsub.s32 %v2245, %v2247
    %v2249 = vrot.slane %v1880, %v2248
    %v2251 = vunpack.c.l.s4 1966171168
    %v2252 = vunpack.c.0.s8 %v2251
    %v2253 = vlaneseq
    %v2254 = vshrl.u32 %v2253, 7
    %v2255 = vsub.s32 %v2252, %v2254
    %v2256 = vrot.slane %v2242, %v2255
    %v2257 = vcombine.high %v2249, %v2249
    %v2258 = vcombine.high %v2256, %v2256
    %v2260 = vunpack.c.l.s4 1966171168
    %v2261 = vunpack.c.0.s8 %v2260
    %v2262 = vlaneseq
    %v2263 = vshrl.u32 %v2262, 7
    %v2264 = vsub.s32 %v2261, %v2263
    %v2265 = vrot.slane %v2249, %v2264
    %v2267 = vunpack.c.l.s4 1966171168
    %v2268 = vunpack.c.0.s8 %v2267
    %v2269 = vlaneseq
    %v2270 = vshrl.u32 %v2269, 7
    %v2271 = vsub.s32 %v2268, %v2270
    %v2272 = vrot.slane %v2256, %v2271
    %v2274 = vunpack.c.l.s4 1966171168
    %v2275 = vunpack.c.0.s8 %v2274
    %v2276 = vlaneseq
    %v2277 = vshrl.u32 %v2276, 7
    %v2278 = vsub.s32 %v2275, %v2277
    %v2279 = vrot.slane %v2257, %v2278
    %v2281 = vunpack.c.l.s4 1966171168
    %v2282 = vunpack.c.0.s8 %v2281
    %v2283 = vlaneseq
    %v2284 = vshrl.u32 %v2283, 7
    %v2285 = vsub.s32 %v2282, %v2284
    %v2286 = vrot.slane %v2258, %v2285
    %v2287 = vcombine.high %v2265, %v2265
    %v2288 = vcombine.high %v2272, %v2272
    %v2289 = vcombine.high %v2279, %v2279
    %v2290 = vcombine.high %v2286, %v2286
    %v2291 = vlaneseq
    %v2292 = vshrl.u32 %v2291, 7
    %v2293 = vsub.s32 0, %v2292
    %v2294 = vrot.slane %v1870, %v2293
    %2296 = vbcast.lane.b32.xlu0 %v2294, 256
    %v2297 = vpop.permute.xlu0 %2296
    %s2299 = sor.u32 256, 8
    %2300 = vbcast.lane.b32.xlu0 %v2294, %s2299
    %v2301 = vpop.permute.xlu0 %2300
    %v2302 = vlaneseq
    %v2303 = vshrl.u32 %v2302, 7
    %v2304 = vsub.s32 1, %v2303
    %v2305 = vrot.slane %v1870, %v2304
    %2307 = vbcast.lane.b32.xlu0 %v2305, 256
    %v2308 = vpop.permute.xlu0 %2307
    %s2310 = sor.u32 256, 8
    %2311 = vbcast.lane.b32.xlu0 %v2305, %s2310
    %v2312 = vpop.permute.xlu0 %2311
    %v2313 = vlaneseq
    %v2314 = vshrl.u32 %v2313, 7
    %v2315 = vsub.s32 2, %v2314
    %v2316 = vrot.slane %v1870, %v2315
    %2318 = vbcast.lane.b32.xlu0 %v2316, 256
    %v2319 = vpop.permute.xlu0 %2318
    %s2321 = sor.u32 256, 8
    %2322 = vbcast.lane.b32.xlu0 %v2316, %s2321
    %v2323 = vpop.permute.xlu0 %2322
    %v2324 = vlaneseq
    %v2325 = vshrl.u32 %v2324, 7
    %v2326 = vsub.s32 3, %v2325
    %v2327 = vrot.slane %v1870, %v2326
    %2329 = vbcast.lane.b32.xlu0 %v2327, 256
    %v2330 = vpop.permute.xlu0 %2329
    %s2332 = sor.u32 256, 8
    %2333 = vbcast.lane.b32.xlu0 %v2327, %s2332
    %v2334 = vpop.permute.xlu0 %2333
    %v2335 = vlaneseq
    %v2336 = vshrl.u32 %v2335, 7
    %v2337 = vsub.s32 4, %v2336
    %v2338 = vrot.slane %v1870, %v2337
    %2340 = vbcast.lane.b32.xlu0 %v2338, 256
    %v2341 = vpop.permute.xlu0 %2340
    %s2343 = sor.u32 256, 8
    %2344 = vbcast.lane.b32.xlu0 %v2338, %s2343
    %v2345 = vpop.permute.xlu0 %2344
    %v2346 = vlaneseq
    %v2347 = vshrl.u32 %v2346, 7
    %v2348 = vsub.s32 5, %v2347
    %v2349 = vrot.slane %v1870, %v2348
    %2351 = vbcast.lane.b32.xlu0 %v2349, 256
    %v2352 = vpop.permute.xlu0 %2351
    %s2354 = sor.u32 256, 8
    %2355 = vbcast.lane.b32.xlu0 %v2349, %s2354
    %v2356 = vpop.permute.xlu0 %2355
    %v2357 = vlaneseq
    %v2358 = vshrl.u32 %v2357, 7
    %v2359 = vsub.s32 6, %v2358
    %v2360 = vrot.slane %v1870, %v2359
    %2362 = vbcast.lane.b32.xlu0 %v2360, 256
    %v2363 = vpop.permute.xlu0 %2362
    %s2365 = sor.u32 256, 8
    %2366 = vbcast.lane.b32.xlu0 %v2360, %s2365
    %v2367 = vpop.permute.xlu0 %2366
    %v2368 = vlaneseq
    %v2369 = vshrl.u32 %v2368, 7
    %v2370 = vsub.s32 7, %v2369
    %v2371 = vrot.slane %v1870, %v2370
    %2373 = vbcast.lane.b32.xlu0 %v2371, 256
    %v2374 = vpop.permute.xlu0 %2373
    %s2376 = sor.u32 256, 8
    %2377 = vbcast.lane.b32.xlu0 %v2371, %s2376
    %v2378 = vpop.permute.xlu0 %2377
    %v2379 = vlaneseq
    %v2380 = vshrl.u32 %v2379, 7
    %v2381 = vsub.s32 0, %v2380
    %v2382 = vrot.slane %v1876, %v2381
    %2384 = vbcast.lane.b32.xlu0 %v2382, 256
    %v2385 = vpop.permute.xlu0 %2384
    %s2387 = sor.u32 256, 8
    %2388 = vbcast.lane.b32.xlu0 %v2382, %s2387
    %v2389 = vpop.permute.xlu0 %2388
    %v2390 = vlaneseq
    %v2391 = vshrl.u32 %v2390, 7
    %v2392 = vsub.s32 1, %v2391
    %v2393 = vrot.slane %v1876, %v2392
    %2395 = vbcast.lane.b32.xlu0 %v2393, 256
    %v2396 = vpop.permute.xlu0 %2395
    %s2398 = sor.u32 256, 8
    %2399 = vbcast.lane.b32.xlu0 %v2393, %s2398
    %v2400 = vpop.permute.xlu0 %2399
    %v2401 = vlaneseq
    %v2402 = vshrl.u32 %v2401, 7
    %v2403 = vsub.s32 2, %v2402
    %v2404 = vrot.slane %v1876, %v2403
    %2406 = vbcast.lane.b32.xlu0 %v2404, 256
    %v2407 = vpop.permute.xlu0 %2406
    %s2409 = sor.u32 256, 8
    %2410 = vbcast.lane.b32.xlu0 %v2404, %s2409
    %v2411 = vpop.permute.xlu0 %2410
    %v2412 = vlaneseq
    %v2413 = vshrl.u32 %v2412, 7
    %v2414 = vsub.s32 3, %v2413
    %v2415 = vrot.slane %v1876, %v2414
    %2417 = vbcast.lane.b32.xlu0 %v2415, 256
    %v2418 = vpop.permute.xlu0 %2417
    %s2420 = sor.u32 256, 8
    %2421 = vbcast.lane.b32.xlu0 %v2415, %s2420
    %v2422 = vpop.permute.xlu0 %2421
    %v2423 = vlaneseq
    %v2424 = vshrl.u32 %v2423, 7
    %v2425 = vsub.s32 4, %v2424
    %v2426 = vrot.slane %v1876, %v2425
    %2428 = vbcast.lane.b32.xlu0 %v2426, 256
    %v2429 = vpop.permute.xlu0 %2428
    %s2431 = sor.u32 256, 8
    %2432 = vbcast.lane.b32.xlu0 %v2426, %s2431
    %v2433 = vpop.permute.xlu0 %2432
    %v2434 = vlaneseq
    %v2435 = vshrl.u32 %v2434, 7
    %v2436 = vsub.s32 5, %v2435
    %v2437 = vrot.slane %v1876, %v2436
    %2439 = vbcast.lane.b32.xlu0 %v2437, 256
    %v2440 = vpop.permute.xlu0 %2439
    %s2442 = sor.u32 256, 8
    %2443 = vbcast.lane.b32.xlu0 %v2437, %s2442
    %v2444 = vpop.permute.xlu0 %2443
    %v2445 = vlaneseq
    %v2446 = vshrl.u32 %v2445, 7
    %v2447 = vsub.s32 6, %v2446
    %v2448 = vrot.slane %v1876, %v2447
    %2450 = vbcast.lane.b32.xlu0 %v2448, 256
    %v2451 = vpop.permute.xlu0 %2450
    %s2453 = sor.u32 256, 8
    %2454 = vbcast.lane.b32.xlu0 %v2448, %s2453
    %v2455 = vpop.permute.xlu0 %2454
    %v2456 = vlaneseq
    %v2457 = vshrl.u32 %v2456, 7
    %v2458 = vsub.s32 7, %v2457
    %v2459 = vrot.slane %v1876, %v2458
    %2461 = vbcast.lane.b32.xlu0 %v2459, 256
    %v2462 = vpop.permute.xlu0 %2461
    %s2464 = sor.u32 256, 8
    %2465 = vbcast.lane.b32.xlu0 %v2459, %s2464
    %v2466 = vpop.permute.xlu0 %2465
    %v2467 = vlaneseq
    %v2468 = vshrl.u32 %v2467, 7
    %v2469 = vsub.s32 0, %v2468
    %v2470 = vrot.slane %v2216, %v2469
    %v2471 = vlaneseq
    %v2472 = vshrl.u32 %v2471, 7
    %v2473 = vsub.s32 0, %v2472
    %v2474 = vrot.slane %v2230, %v2473
    %v2475 = vlaneseq
    %v2476 = vshrl.u32 %v2475, 7
    %v2477 = vsub.s32 0, %v2476
    %v2478 = vrot.slane %v2238, %v2477
    %v2479 = vlaneseq
    %v2480 = vshrl.u32 %v2479, 7
    %v2481 = vsub.s32 0, %v2480
    %v2482 = vrot.slane %v2240, %v2481
    %v2483 = vlaneseq
    %v2484 = vshrl.u32 %v2483, 7
    %v2485 = vsub.s32 0, %v2484
    %v2486 = vrot.slane %v2223, %v2485
    %v2487 = vlaneseq
    %v2488 = vshrl.u32 %v2487, 7
    %v2489 = vsub.s32 0, %v2488
    %v2490 = vrot.slane %v2237, %v2489
    %v2491 = vlaneseq
    %v2492 = vshrl.u32 %v2491, 7
    %v2493 = vsub.s32 0, %v2492
    %v2494 = vrot.slane %v2239, %v2493
    %v2495 = vlaneseq
    %v2496 = vshrl.u32 %v2495, 7
    %v2497 = vsub.s32 0, %v2496
    %v2498 = vrot.slane %v2241, %v2497
    %v2499 = vlaneseq
    %v2500 = vshrl.u32 %v2499, 7
    %v2501 = vsub.s32 0, %v2500
    %v2502 = vrot.slane %v2265, %v2501
    %v2503 = vlaneseq
    %v2504 = vshrl.u32 %v2503, 7
    %v2505 = vsub.s32 0, %v2504
    %v2506 = vrot.slane %v2279, %v2505
    %v2507 = vlaneseq
    %v2508 = vshrl.u32 %v2507, 7
    %v2509 = vsub.s32 0, %v2508
    %v2510 = vrot.slane %v2287, %v2509
    %v2511 = vlaneseq
    %v2512 = vshrl.u32 %v2511, 7
    %v2513 = vsub.s32 0, %v2512
    %v2514 = vrot.slane %v2289, %v2513
    %v2515 = vlaneseq
    %v2516 = vshrl.u32 %v2515, 7
    %v2517 = vsub.s32 0, %v2516
    %v2518 = vrot.slane %v2272, %v2517
    %v2519 = vlaneseq
    %v2520 = vshrl.u32 %v2519, 7
    %v2521 = vsub.s32 0, %v2520
    %v2522 = vrot.slane %v2286, %v2521
    %v2523 = vlaneseq
    %v2524 = vshrl.u32 %v2523, 7
    %v2525 = vsub.s32 0, %v2524
    %v2526 = vrot.slane %v2288, %v2525
    %v2527 = vlaneseq
    %v2528 = vshrl.u32 %v2527, 7
    %v2529 = vsub.s32 0, %v2528
    %v2530 = vrot.slane %v2290, %v2529
    %v2547 = vmul.f32 %v2470, %v2297
    %v2548 = vmul.f32 %v2470, %v2301
    %v2549 = vmul.f32 %v2474, %v2308
    %v2550 = vmul.f32 %v2474, %v2312
    %v2551 = vmul.f32 %v2478, %v2319
    %v2552 = vmul.f32 %v2478, %v2323
    %v2553 = vmul.f32 %v2482, %v2330
    %v2554 = vmul.f32 %v2482, %v2334
    %v2555 = vmul.f32 %v2486, %v2341
    %v2556 = vmul.f32 %v2486, %v2345
    %v2557 = vmul.f32 %v2490, %v2352
    %v2558 = vmul.f32 %v2490, %v2356
    %v2559 = vmul.f32 %v2494, %v2363
    %v2560 = vmul.f32 %v2494, %v2367
    %v2561 = vmul.f32 %v2498, %v2374
    %v2562 = vmul.f32 %v2498, %v2378
    %v2563 = vmul.f32 %v2502, %v2385
    %v2564 = vmul.f32 %v2502, %v2389
    %v2565 = vmul.f32 %v2506, %v2396
    %v2566 = vmul.f32 %v2506, %v2400
    %v2567 = vmul.f32 %v2510, %v2407
    %v2568 = vmul.f32 %v2510, %v2411
    %v2569 = vmul.f32 %v2514, %v2418
    %v2570 = vmul.f32 %v2514, %v2422
    %v2571 = vmul.f32 %v2518, %v2429
    %v2572 = vmul.f32 %v2518, %v2433
    %v2573 = vmul.f32 %v2522, %v2440
    %v2574 = vmul.f32 %v2522, %v2444
    %v2575 = vmul.f32 %v2526, %v2451
    %v2576 = vmul.f32 %v2526, %v2455
    %v2577 = vmul.f32 %v2530, %v2462
    %v2578 = vmul.f32 %v2530, %v2466
    %2579 = vst.msk [vmem:[#allocation4] sm:$0xff] %vm606, %v2547
    %2580 = vst.msk [vmem:[#allocation4 + $0x8] sm:$0xff] %vm606, %v2548
    %2581 = vst.msk [vmem:[#allocation4 + $0x10] sm:$0xff] %vm606, %v2549
    %2582 = vst.msk [vmem:[#allocation4 + $0x18] sm:$0xff] %vm606, %v2550
    %2583 = vst.msk [vmem:[#allocation4 + $0x20] sm:$0xff] %vm606, %v2551
    %2584 = vst.msk [vmem:[#allocation4 + $0x28] sm:$0xff] %vm606, %v2552
    %2585 = vst.msk [vmem:[#allocation4 + $0x30] sm:$0xff] %vm606, %v2553
    %2586 = vst.msk [vmem:[#allocation4 + $0x38] sm:$0xff] %vm606, %v2554
    %2587 = vst.msk [vmem:[#allocation4 + $0x40] sm:$0xff] %vm606, %v2555
    %2588 = vst.msk [vmem:[#allocation4 + $0x48] sm:$0xff] %vm606, %v2556
    %2589 = vst.msk [vmem:[#allocation4 + $0x50] sm:$0xff] %vm606, %v2557
    %2590 = vst.msk [vmem:[#allocation4 + $0x58] sm:$0xff] %vm606, %v2558
    %2591 = vst.msk [vmem:[#allocation4 + $0x60] sm:$0xff] %vm606, %v2559
    %2592 = vst.msk [vmem:[#allocation4 + $0x68] sm:$0xff] %vm606, %v2560
    %2593 = vst.msk [vmem:[#allocation4 + $0x70] sm:$0xff] %vm606, %v2561
    %2594 = vst.msk [vmem:[#allocation4 + $0x78] sm:$0xff] %vm606, %v2562
    %2595 = vst.msk [vmem:[#allocation4 + $0x80] sm:$0xff] %vm606, %v2563
    %2596 = vst.msk [vmem:[#allocation4 + $0x88] sm:$0xff] %vm606, %v2564
    %2597 = vst.msk [vmem:[#allocation4 + $0x90] sm:$0xff] %vm606, %v2565
    %2598 = vst.msk [vmem:[#allocation4 + $0x98] sm:$0xff] %vm606, %v2566
    %2599 = vst.msk [vmem:[#allocation4 + $0xa0] sm:$0xff] %vm606, %v2567
    %2600 = vst.msk [vmem:[#allocation4 + $0xa8] sm:$0xff] %vm606, %v2568
    %2601 = vst.msk [vmem:[#allocation4 + $0xb0] sm:$0xff] %vm606, %v2569
    %2602 = vst.msk [vmem:[#allocation4 + $0xb8] sm:$0xff] %vm606, %v2570
    %2603 = vst.msk [vmem:[#allocation4 + $0xc0] sm:$0xff] %vm606, %v2571
    %2604 = vst.msk [vmem:[#allocation4 + $0xc8] sm:$0xff] %vm606, %v2572
    %2605 = vst.msk [vmem:[#allocation4 + $0xd0] sm:$0xff] %vm606, %v2573
    %2606 = vst.msk [vmem:[#allocation4 + $0xd8] sm:$0xff] %vm606, %v2574
    %2607 = vst.msk [vmem:[#allocation4 + $0xe0] sm:$0xff] %vm606, %v2575
    %2608 = vst.msk [vmem:[#allocation4 + $0xe8] sm:$0xff] %vm606, %v2576
    %2609 = vst.msk [vmem:[#allocation4 + $0xf0] sm:$0xff] %vm606, %v2577
    %2610 = vst.msk [vmem:[#allocation4 + $0xf8] sm:$0xff] %vm606, %v2578
    %s2612 = sor.u32 256, 16
    %2613 = vbcast.lane.b32.xlu0 %v2382, %s2612
    %v2614 = vpop.permute.xlu0 %2613
    %s2616 = sor.u32 256, 24
    %2617 = vbcast.lane.b32.xlu0 %v2382, %s2616
    %v2618 = vpop.permute.xlu0 %2617
    %s2620 = sor.u32 256, 16
    %2621 = vbcast.lane.b32.xlu0 %v2393, %s2620
    %v2622 = vpop.permute.xlu0 %2621
    %s2624 = sor.u32 256, 24
    %2625 = vbcast.lane.b32.xlu0 %v2393, %s2624
    %v2626 = vpop.permute.xlu0 %2625
    %s2628 = sor.u32 256, 16
    %2629 = vbcast.lane.b32.xlu0 %v2404, %s2628
    %v2630 = vpop.permute.xlu0 %2629
    %s2632 = sor.u32 256, 24
    %2633 = vbcast.lane.b32.xlu0 %v2404, %s2632
    %v2634 = vpop.permute.xlu0 %2633
    %s2636 = sor.u32 256, 16
    %2637 = vbcast.lane.b32.xlu0 %v2415, %s2636
    %v2638 = vpop.permute.xlu0 %2637
    %s2640 = sor.u32 256, 24
    %2641 = vbcast.lane.b32.xlu0 %v2415, %s2640
    %v2642 = vpop.permute.xlu0 %2641
    %s2644 = sor.u32 256, 16
    %2645 = vbcast.lane.b32.xlu0 %v2426, %s2644
    %v2646 = vpop.permute.xlu0 %2645
    %s2648 = sor.u32 256, 24
    %2649 = vbcast.lane.b32.xlu0 %v2426, %s2648
    %v2650 = vpop.permute.xlu0 %2649
    %s2652 = sor.u32 256, 16
    %2653 = vbcast.lane.b32.xlu0 %v2437, %s2652
    %v2654 = vpop.permute.xlu0 %2653
    %s2656 = sor.u32 256, 24
    %2657 = vbcast.lane.b32.xlu0 %v2437, %s2656
    %v2658 = vpop.permute.xlu0 %2657
    %s2660 = sor.u32 256, 16
    %2661 = vbcast.lane.b32.xlu0 %v2448, %s2660
    %v2662 = vpop.permute.xlu0 %2661
    %s2664 = sor.u32 256, 24
    %2665 = vbcast.lane.b32.xlu0 %v2448, %s2664
    %v2666 = vpop.permute.xlu0 %2665
    %s2668 = sor.u32 256, 16
    %2669 = vbcast.lane.b32.xlu0 %v2459, %s2668
    %v2670 = vpop.permute.xlu0 %2669
    %s2672 = sor.u32 256, 24
    %2673 = vbcast.lane.b32.xlu0 %v2459, %s2672
    %v2674 = vpop.permute.xlu0 %2673
    %2675 = vst.msk [vmem:[#allocation5] sm:$0xff] %vm606, %v2614
    %2676 = vst.msk [vmem:[#allocation5 + $0x8] sm:$0xff] %vm606, %v2618
    %2677 = vst.msk [vmem:[#allocation5 + $0x10] sm:$0xff] %vm606, %v2622
    %2678 = vst.msk [vmem:[#allocation5 + $0x18] sm:$0xff] %vm606, %v2626
    %2679 = vst.msk [vmem:[#allocation5 + $0x20] sm:$0xff] %vm606, %v2630
    %2680 = vst.msk [vmem:[#allocation5 + $0x28] sm:$0xff] %vm606, %v2634
    %2681 = vst.msk [vmem:[#allocation5 + $0x30] sm:$0xff] %vm606, %v2638
    %2682 = vst.msk [vmem:[#allocation5 + $0x38] sm:$0xff] %vm606, %v2642
    %2683 = vst.msk [vmem:[#allocation5 + $0x40] sm:$0xff] %vm606, %v2646
    %2684 = vst.msk [vmem:[#allocation5 + $0x48] sm:$0xff] %vm606, %v2650
    %2685 = vst.msk [vmem:[#allocation5 + $0x50] sm:$0xff] %vm606, %v2654
    %2686 = vst.msk [vmem:[#allocation5 + $0x58] sm:$0xff] %vm606, %v2658
    %2687 = vst.msk [vmem:[#allocation5 + $0x60] sm:$0xff] %vm606, %v2662
    %2688 = vst.msk [vmem:[#allocation5 + $0x68] sm:$0xff] %vm606, %v2666
    %2689 = vst.msk [vmem:[#allocation5 + $0x70] sm:$0xff] %vm606, %v2670
    %2690 = vst.msk [vmem:[#allocation5 + $0x78] sm:$0xff] %vm606, %v2674
    %v2691 = vld [vmem:[#allocation3] sm:$0xff]
    %v2692 = vld [vmem:[#allocation3 + $0x8] sm:$0xff]
    %v2693 = vld [vmem:[#allocation3 + $0x10] sm:$0xff]
    %v2694 = vld [vmem:[#allocation3 + $0x18] sm:$0xff]
    %v2695 = vmul.f32 %v2691, 0.0
    %v2696 = vmul.f32 %v2692, 0.0
    %v2697 = vmul.f32 %v2693, 0.0
    %v2698 = vmul.f32 %v2694, 0.0
    %v2699 = vld [vmem:[#allocation4] sm:$0xff]
    %v2700 = vld [vmem:[#allocation4 + $0x8] sm:$0xff]
    %v2701 = vld [vmem:[#allocation4 + $0x10] sm:$0xff]
    %v2702 = vld [vmem:[#allocation4 + $0x18] sm:$0xff]
    %v2703 = vadd.f32 %v2695, %v2699
    %v2704 = vadd.f32 %v2696, %v2700
    %v2705 = vadd.f32 %v2697, %v2701
    %v2706 = vadd.f32 %v2698, %v2702
    %s2707 = scalar_lea.vmem [#allocation3], 32
    %v2708 = vld [vmem:[%s2707] sm:$0xff]
    %v2709 = vld [vmem:[%s2707 + $0x8] sm:$0xff]
    %v2710 = vld [vmem:[%s2707 + $0x10] sm:$0xff]
    %v2711 = vld [vmem:[%s2707 + $0x18] sm:$0xff]
    %v2712 = vmul.f32 %v2708, %v2703
    %v2713 = vmul.f32 %v2709, %v2704
    %v2714 = vmul.f32 %v2710, %v2705
    %v2715 = vmul.f32 %v2711, %v2706
    %s2716 = scalar_lea.vmem [#allocation4], 32
    %v2717 = vld [vmem:[%s2716] sm:$0xff]
    %v2718 = vld [vmem:[%s2716 + $0x8] sm:$0xff]
    %v2719 = vld [vmem:[%s2716 + $0x10] sm:$0xff]
    %v2720 = vld [vmem:[%s2716 + $0x18] sm:$0xff]
    %v2721 = vadd.f32 %v2712, %v2717
    %v2722 = vadd.f32 %v2713, %v2718
    %v2723 = vadd.f32 %v2714, %v2719
    %v2724 = vadd.f32 %v2715, %v2720
    %s2725 = scalar_lea.vmem [#allocation3], 64
    %v2726 = vld [vmem:[%s2725] sm:$0xff]
    %v2727 = vld [vmem:[%s2725 + $0x8] sm:$0xff]
    %v2728 = vld [vmem:[%s2725 + $0x10] sm:$0xff]
    %v2729 = vld [vmem:[%s2725 + $0x18] sm:$0xff]
    %v2730 = vmul.f32 %v2726, %v2721
    %v2731 = vmul.f32 %v2727, %v2722
    %v2732 = vmul.f32 %v2728, %v2723
    %v2733 = vmul.f32 %v2729, %v2724
    %s2734 = scalar_lea.vmem [#allocation4], 64
    %v2735 = vld [vmem:[%s2734] sm:$0xff]
    %v2736 = vld [vmem:[%s2734 + $0x8] sm:$0xff]
    %v2737 = vld [vmem:[%s2734 + $0x10] sm:$0xff]
    %v2738 = vld [vmem:[%s2734 + $0x18] sm:$0xff]
    %v2739 = vadd.f32 %v2730, %v2735
    %v2740 = vadd.f32 %v2731, %v2736
    %v2741 = vadd.f32 %v2732, %v2737
    %v2742 = vadd.f32 %v2733, %v2738
    %s2743 = scalar_lea.vmem [#allocation3], 96
    %v2744 = vld [vmem:[%s2743] sm:$0xff]
    %v2745 = vld [vmem:[%s2743 + $0x8] sm:$0xff]
    %v2746 = vld [vmem:[%s2743 + $0x10] sm:$0xff]
    %v2747 = vld [vmem:[%s2743 + $0x18] sm:$0xff]
    %v2748 = vmul.f32 %v2744, %v2739
    %v2749 = vmul.f32 %v2745, %v2740
    %v2750 = vmul.f32 %v2746, %v2741
    %v2751 = vmul.f32 %v2747, %v2742
    %s2752 = scalar_lea.vmem [#allocation4], 96
    %v2753 = vld [vmem:[%s2752] sm:$0xff]
    %v2754 = vld [vmem:[%s2752 + $0x8] sm:$0xff]
    %v2755 = vld [vmem:[%s2752 + $0x10] sm:$0xff]
    %v2756 = vld [vmem:[%s2752 + $0x18] sm:$0xff]
    %v2757 = vadd.f32 %v2748, %v2753
    %v2758 = vadd.f32 %v2749, %v2754
    %v2759 = vadd.f32 %v2750, %v2755
    %v2760 = vadd.f32 %v2751, %v2756
    %s2761 = scalar_lea.vmem [#allocation3], 128
    %v2762 = vld [vmem:[%s2761] sm:$0xff]
    %v2763 = vld [vmem:[%s2761 + $0x8] sm:$0xff]
    %v2764 = vld [vmem:[%s2761 + $0x10] sm:$0xff]
    %v2765 = vld [vmem:[%s2761 + $0x18] sm:$0xff]
    %v2766 = vmul.f32 %v2762, %v2757
    %v2767 = vmul.f32 %v2763, %v2758
    %v2768 = vmul.f32 %v2764, %v2759
    %v2769 = vmul.f32 %v2765, %v2760
    %s2770 = scalar_lea.vmem [#allocation4], 128
    %v2771 = vld [vmem:[%s2770] sm:$0xff]
    %v2772 = vld [vmem:[%s2770 + $0x8] sm:$0xff]
    %v2773 = vld [vmem:[%s2770 + $0x10] sm:$0xff]
    %v2774 = vld [vmem:[%s2770 + $0x18] sm:$0xff]
    %v2775 = vadd.f32 %v2766, %v2771
    %v2776 = vadd.f32 %v2767, %v2772
    %v2777 = vadd.f32 %v2768, %v2773
    %v2778 = vadd.f32 %v2769, %v2774
    %v2779 = vld [vmem:[#allocation5] sm:$0xff]
    %v2780 = vld [vmem:[#allocation5 + $0x8] sm:$0xff]
    %v2781 = vld [vmem:[#allocation5 + $0x10] sm:$0xff]
    %v2782 = vld [vmem:[#allocation5 + $0x18] sm:$0xff]
    %v2783 = vmul.f32 %v2775, %v2779
    %v2784 = vmul.f32 %v2776, %v2780
    %v2785 = vmul.f32 %v2777, %v2781
    %v2786 = vmul.f32 %v2778, %v2782
    %v2787 = vsel %vm606, %v2783, 0.0
    %v2788 = vsel %vm606, %v2784, 0.0
    %v2789 = vadd.f32 %v2787, %v2788
    %v2790 = vrot.slane %v2789, 4
    %v2791 = vadd.f32 %v2789, %v2790
    %v2792 = vrot.slane %v2791, 2
    %v2793 = vadd.f32 %v2791, %v2792
    %v2794 = vrot.slane %v2793, 1
    %v2795 = vadd.f32 %v2793, %v2794
    %v2796 = vsel %vm606, %v2785, 0.0
    %v2797 = vsel %vm606, %v2786, 0.0
    %v2798 = vadd.f32 %v2796, %v2797
    %v2799 = vrot.slane %v2798, 4
    %v2800 = vadd.f32 %v2798, %v2799
    %v2801 = vrot.slane %v2800, 2
    %v2802 = vadd.f32 %v2800, %v2801
    %v2803 = vrot.slane %v2802, 1
    %v2804 = vadd.f32 %v2802, %v2803
    %vm2807 = vcmask 1041409
    %v2808 = vsel %vm2807, %v2804, %v2795
    %vm2810 = vcmask 517120
    %2811 = vst.msk [vmem:[#allocation6] sm:$0x3] %vm2810, %v2808
    %s2812 = scalar_lea.vmem [#allocation3], 160
    %v2813 = vld [vmem:[%s2812] sm:$0xff]
    %v2814 = vld [vmem:[%s2812 + $0x8] sm:$0xff]
    %v2815 = vld [vmem:[%s2812 + $0x10] sm:$0xff]
    %v2816 = vld [vmem:[%s2812 + $0x18] sm:$0xff]
    %v2817 = vmul.f32 %v2813, %v2775
    %v2818 = vmul.f32 %v2814, %v2776
    %v2819 = vmul.f32 %v2815, %v2777
    %v2820 = vmul.f32 %v2816, %v2778
    %s2821 = scalar_lea.vmem [#allocation4], 160
    %v2822 = vld [vmem:[%s2821] sm:$0xff]
    %v2823 = vld [vmem:[%s2821 + $0x8] sm:$0xff]
    %v2824 = vld [vmem:[%s2821 + $0x10] sm:$0xff]
    %v2825 = vld [vmem:[%s2821 + $0x18] sm:$0xff]
    %v2826 = vadd.f32 %v2817, %v2822
    %v2827 = vadd.f32 %v2818, %v2823
    %v2828 = vadd.f32 %v2819, %v2824
    %v2829 = vadd.f32 %v2820, %v2825
    %s2830 = scalar_lea.vmem [#allocation5], 32
    %v2831 = vld [vmem:[%s2830] sm:$0xff]
    %v2832 = vld [vmem:[%s2830 + $0x8] sm:$0xff]
    %v2833 = vld [vmem:[%s2830 + $0x10] sm:$0xff]
    %v2834 = vld [vmem:[%s2830 + $0x18] sm:$0xff]
    %v2835 = vmul.f32 %v2826, %v2831
    %v2836 = vmul.f32 %v2827, %v2832
    %v2837 = vmul.f32 %v2828, %v2833
    %v2838 = vmul.f32 %v2829, %v2834
    %v2839 = vsel %vm606, %v2835, 0.0
    %v2840 = vsel %vm606, %v2836, 0.0
    %v2841 = vadd.f32 %v2839, %v2840
    %v2842 = vrot.slane %v2841, 4
    %v2843 = vadd.f32 %v2841, %v2842
    %v2844 = vrot.slane %v2843, 2
    %v2845 = vadd.f32 %v2843, %v2844
    %v2846 = vrot.slane %v2845, 1
    %v2847 = vadd.f32 %v2845, %v2846
    %v2848 = vsel %vm606, %v2837, 0.0
    %v2849 = vsel %vm606, %v2838, 0.0
    %v2850 = vadd.f32 %v2848, %v2849
    %v2851 = vrot.slane %v2850, 4
    %v2852 = vadd.f32 %v2850, %v2851
    %v2853 = vrot.slane %v2852, 2
    %v2854 = vadd.f32 %v2852, %v2853
    %v2855 = vrot.slane %v2854, 1
    %v2856 = vadd.f32 %v2854, %v2855
    %v2859 = vsel %vm2807, %v2856, %v2847
    %s2861 = scalar_lea.vmem [#allocation6], 2
    %2862 = vst.msk [vmem:[%s2861] sm:$0x3] %vm2810, %v2859
    %s2863 = scalar_lea.vmem [#allocation3], 192
    %v2864 = vld [vmem:[%s2863] sm:$0xff]
    %v2865 = vld [vmem:[%s2863 + $0x8] sm:$0xff]
    %v2866 = vld [vmem:[%s2863 + $0x10] sm:$0xff]
    %v2867 = vld [vmem:[%s2863 + $0x18] sm:$0xff]
    %v2868 = vmul.f32 %v2864, %v2826
    %v2869 = vmul.f32 %v2865, %v2827
    %v2870 = vmul.f32 %v2866, %v2828
    %v2871 = vmul.f32 %v2867, %v2829
    %s2872 = scalar_lea.vmem [#allocation4], 192
    %v2873 = vld [vmem:[%s2872] sm:$0xff]
    %v2874 = vld [vmem:[%s2872 + $0x8] sm:$0xff]
    %v2875 = vld [vmem:[%s2872 + $0x10] sm:$0xff]
    %v2876 = vld [vmem:[%s2872 + $0x18] sm:$0xff]
    %v2877 = vadd.f32 %v2868, %v2873
    %v2878 = vadd.f32 %v2869, %v2874
    %v2879 = vadd.f32 %v2870, %v2875
    %v2880 = vadd.f32 %v2871, %v2876
    %s2881 = scalar_lea.vmem [#allocation5], 64
    %v2882 = vld [vmem:[%s2881] sm:$0xff]
    %v2883 = vld [vmem:[%s2881 + $0x8] sm:$0xff]
    %v2884 = vld [vmem:[%s2881 + $0x10] sm:$0xff]
    %v2885 = vld [vmem:[%s2881 + $0x18] sm:$0xff]
    %v2886 = vmul.f32 %v2877, %v2882
    %v2887 = vmul.f32 %v2878, %v2883
    %v2888 = vmul.f32 %v2879, %v2884
    %v2889 = vmul.f32 %v2880, %v2885
    %v2890 = vsel %vm606, %v2886, 0.0
    %v2891 = vsel %vm606, %v2887, 0.0
    %v2892 = vadd.f32 %v2890, %v2891
    %v2893 = vrot.slane %v2892, 4
    %v2894 = vadd.f32 %v2892, %v2893
    %v2895 = vrot.slane %v2894, 2
    %v2896 = vadd.f32 %v2894, %v2895
    %v2897 = vrot.slane %v2896, 1
    %v2898 = vadd.f32 %v2896, %v2897
    %v2899 = vsel %vm606, %v2888, 0.0
    %v2900 = vsel %vm606, %v2889, 0.0
    %v2901 = vadd.f32 %v2899, %v2900
    %v2902 = vrot.slane %v2901, 4
    %v2903 = vadd.f32 %v2901, %v2902
    %v2904 = vrot.slane %v2903, 2
    %v2905 = vadd.f32 %v2903, %v2904
    %v2906 = vrot.slane %v2905, 1
    %v2907 = vadd.f32 %v2905, %v2906
    %v2910 = vsel %vm2807, %v2907, %v2898
    %s2912 = scalar_lea.vmem [#allocation6], 4
    %2913 = vst.msk [vmem:[%s2912] sm:$0x3] %vm2810, %v2910
    %s2914 = scalar_lea.vmem [#allocation3], 224
    %v2915 = vld [vmem:[%s2914] sm:$0xff]
    %v2916 = vld [vmem:[%s2914 + $0x8] sm:$0xff]
    %v2917 = vld [vmem:[%s2914 + $0x10] sm:$0xff]
    %v2918 = vld [vmem:[%s2914 + $0x18] sm:$0xff]
    %v2919 = vmul.f32 %v2915, %v2877
    %v2920 = vmul.f32 %v2916, %v2878
    %v2921 = vmul.f32 %v2917, %v2879
    %v2922 = vmul.f32 %v2918, %v2880
    %s2923 = scalar_lea.vmem [#allocation4], 224
    %v2924 = vld [vmem:[%s2923] sm:$0xff]
    %v2925 = vld [vmem:[%s2923 + $0x8] sm:$0xff]
    %v2926 = vld [vmem:[%s2923 + $0x10] sm:$0xff]
    %v2927 = vld [vmem:[%s2923 + $0x18] sm:$0xff]
    %v2928 = vadd.f32 %v2919, %v2924
    %v2929 = vadd.f32 %v2920, %v2925
    %v2930 = vadd.f32 %v2921, %v2926
    %v2931 = vadd.f32 %v2922, %v2927
    %s2932 = scalar_lea.vmem [#allocation5], 96
    %v2933 = vld [vmem:[%s2932] sm:$0xff]
    %v2934 = vld [vmem:[%s2932 + $0x8] sm:$0xff]
    %v2935 = vld [vmem:[%s2932 + $0x10] sm:$0xff]
    %v2936 = vld [vmem:[%s2932 + $0x18] sm:$0xff]
    %v2937 = vmul.f32 %v2928, %v2933
    %v2938 = vmul.f32 %v2929, %v2934
    %v2939 = vmul.f32 %v2930, %v2935
    %v2940 = vmul.f32 %v2931, %v2936
    %v2941 = vsel %vm606, %v2937, 0.0
    %v2942 = vsel %vm606, %v2938, 0.0
    %v2943 = vadd.f32 %v2941, %v2942
    %v2944 = vrot.slane %v2943, 4
    %v2945 = vadd.f32 %v2943, %v2944
    %v2946 = vrot.slane %v2945, 2
    %v2947 = vadd.f32 %v2945, %v2946
    %v2948 = vrot.slane %v2947, 1
    %v2949 = vadd.f32 %v2947, %v2948
    %v2950 = vsel %vm606, %v2939, 0.0
    %v2951 = vsel %vm606, %v2940, 0.0
    %v2952 = vadd.f32 %v2950, %v2951
    %v2953 = vrot.slane %v2952, 4
    %v2954 = vadd.f32 %v2952, %v2953
    %v2955 = vrot.slane %v2954, 2
    %v2956 = vadd.f32 %v2954, %v2955
    %v2957 = vrot.slane %v2956, 1
    %v2958 = vadd.f32 %v2956, %v2957
    %v2961 = vsel %vm2807, %v2958, %v2949
    %s2963 = scalar_lea.vmem [#allocation6], 6
    %2964 = vst.msk [vmem:[%s2963] sm:$0x3] %vm2810, %v2961
    %v2965 = vld [vmem:[#allocation6] sm:$0x3]
    %v2966 = vld [vmem:[#allocation6 + $0x2] sm:$0x3]
    %v2967 = vld [vmem:[#allocation6 + $0x4] sm:$0x3]
    %v2968 = vld [vmem:[#allocation6 + $0x6] sm:$0x3]
    %v2969 = vlaneseq
    %v2970 = vshrl.u32 %v2969, 7
    %v2971 = vsub.s32 6, %v2970
    %v2972 = vrot.slane %v603, %v2971
    %v2973 = vmul.f32 %v666, %v2972
    %v2975 = vcombine.high %v2973, %v2973
    %v2977 = vunpack.c.l.s4 1983009808
    %v2978 = vunpack.c.0.s8 %v2977
    %v2979 = vlaneseq
    %v2980 = vshrl.u32 %v2979, 7
    %v2981 = vsub.s32 %v2978, %v2980
    %v2982 = vrot.slane %v2973, %v2981
    %v2984 = vunpack.c.l.s4 1983009808
    %v2985 = vunpack.c.0.s8 %v2984
    %v2986 = vlaneseq
    %v2987 = vshrl.u32 %v2986, 7
    %v2988 = vsub.s32 %v2985, %v2987
    %v2989 = vrot.slane %v2975, %v2988
    %v2990 = vcombine.high %v2982, %v2982
    %v2991 = vcombine.high %v2989, %v2989
    %v2996 = vadd.f32 %v2965, %v2982
    %v2997 = vadd.f32 %v2966, %v2990
    %v2998 = vadd.f32 %v2967, %v2989
    %v2999 = vadd.f32 %v2968, %v2991
    %v3000 = vxor.u32 %v600, 2147483648
    %v3001 = vmul.f32 %v3000, 1.442695
    %v3002 = vpow.pop %v3001
    %v3003 = vadd.f32 %v3002, 1.0
    %v3004 = vrcp.pop %v3003
    %v3005 = vmul.f32 1.0, %v3004
    %v3006 = vmul.f32 %v600, %v3005
    %v3008 = vcombine.high %v3006, %v3006
    %v3010 = vunpack.c.l.s4 1983009808
    %v3011 = vunpack.c.0.s8 %v3010
    %v3012 = vlaneseq
    %v3013 = vshrl.u32 %v3012, 7
    %v3014 = vsub.s32 %v3011, %v3013
    %v3015 = vrot.slane %v3006, %v3014
    %v3017 = vunpack.c.l.s4 1983009808
    %v3018 = vunpack.c.0.s8 %v3017
    %v3019 = vlaneseq
    %v3020 = vshrl.u32 %v3019, 7
    %v3021 = vsub.s32 %v3018, %v3020
    %v3022 = vrot.slane %v3008, %v3021
    %v3023 = vcombine.high %v3015, %v3015
    %v3024 = vcombine.high %v3022, %v3022
    %3025 = vrot.lane.b32.xlu0 %v3015, 64
    %v3026 = vpop.permute.xlu0 %3025
    %3027 = vrot.lane.b32.xlu0 %v3023, 64
    %v3028 = vpop.permute.xlu0 %3027
    %3029 = vrot.lane.b32.xlu0 %v3022, 64
    %v3030 = vpop.permute.xlu0 %3029
    %3031 = vrot.lane.b32.xlu0 %v3024, 64
    %v3032 = vpop.permute.xlu0 %3031
    %v3037 = vmul.f32 %v2996, %v3026
    %v3038 = vmul.f32 %v2997, %v3028
    %v3039 = vmul.f32 %v2998, %v3030
    %v3040 = vmul.f32 %v2999, %v3032
    %v3041 = vld [vmem:[%s7] sm:$0xff]
    %v3042 = vld [vmem:[%s7 + $0x8] sm:$0xff]
    %v3043 = vld [vmem:[%s7 + $0x10] sm:$0xff]
    %v3044 = vld [vmem:[%s7 + $0x18] sm:$0xff]
    %v3045 = vld [vmem:[%s7 + $0x20] sm:$0xff]
    %v3046 = vld [vmem:[%s7 + $0x28] sm:$0xff]
    %v3047 = vld [vmem:[%s7 + $0x30] sm:$0xff]
    %v3048 = vld [vmem:[%s7 + $0x38] sm:$0xff]
    %v3049 = vld [vmem:[%s8] sm:$0x1]
    %v3051 = vlaneseq
    %v3052 = vshrl.u32 %v3051, 7
    %v3053 = vsub.s32 0, %v3052
    %v3054 = vrot.slane %v3049, %v3053
    %v3060 = vcombine.low %v3037, %v3038
    %v3061 = vcombine.low %v3039, %v3040
    %v3063 = vunpack.c.l.s4 1983009808
    %v3064 = vunpack.c.0.s8 %v3063
    %v3065 = vlaneseq
    %v3066 = vshrl.u32 %v3065, 7
    %v3067 = vsub.s32 %v3064, %v3066
    %v3068 = vrot.slane %v3060, %v3067
    %v3070 = vunpack.c.l.s4 1983009808
    %v3071 = vunpack.c.0.s8 %v3070
    %v3072 = vlaneseq
    %v3073 = vshrl.u32 %v3072, 7
    %v3074 = vsub.s32 %v3071, %v3073
    %v3075 = vrot.slane %v3061, %v3074
    %v3076 = vcombine.low %v3068, %v3075
    %v3077 = vsel %vm606, %v3076, 0
    %3079 = vmatprep.subr.mxu0 0.0
    %v3080 = vand.u32 %v3041, 4294901760
    %3081 = vmatpush1.msra.mxu0 %v3080
    %3082 = vmatprep.subr.mxu0 0.0
    %v3083 = vand.u32 %v3042, 4294901760
    %3084 = vmatpush1.msra.mxu0 %v3083
    %3085 = vmatprep.subr.mxu0 0.0
    %v3086 = vand.u32 %v3043, 4294901760
    %3087 = vmatpush1.msra.mxu0 %v3086
    %3088 = vmatprep.subr.mxu0 0.0
    %v3089 = vand.u32 %v3044, 4294901760
    %3090 = vmatpush1.msra.mxu0 %v3089
    %3091 = vmatprep.subr.mxu0 0.0
    %v3092 = vand.u32 %v3045, 4294901760
    %3093 = vmatpush1.msra.mxu0 %v3092
    %3094 = vmatprep.subr.mxu0 0.0
    %v3095 = vand.u32 %v3046, 4294901760
    %3096 = vmatpush1.msra.mxu0 %v3095
    %3097 = vmatprep.subr.mxu0 0.0
    %v3098 = vand.u32 %v3047, 4294901760
    %3099 = vmatpush1.msra.mxu0 %v3098
    %3100 = vmatprep.subr.mxu0 0.0
    %v3101 = vand.u32 %v3048, 4294901760
    %3102 = vmatpush1.msra.mxu0 %v3101
    %3103 = vmatprep.subr.mxu0 0.0
    %3104 = vmatpush1.msra.mxu0 0.0
    %3105 = vmatprep.subr.mxu0 0.0
    %3106 = vmatpush1.msra.mxu0 0.0
    %3107 = vmatprep.subr.mxu0 0.0
    %3108 = vmatpush1.msra.mxu0 0.0
    %3109 = vmatprep.subr.mxu0 0.0
    %3110 = vmatpush1.msra.mxu0 0.0
    %3111 = vmatprep.subr.mxu0 0.0
    %3112 = vmatpush1.msra.mxu0 0.0
    %3113 = vmatprep.subr.mxu0 0.0
    %3114 = vmatpush1.msra.mxu0 0.0
    %3115 = vmatprep.subr.mxu0 0.0
    %3116 = vmatpush1.msra.mxu0 0.0
    %3117 = vmatprep.subr.mxu0 0.0
    %3118 = vmatpush1.msra.mxu0 0.0
    %3119 = vmatprep.subr.mxu0 0.0
    %3120 = vmatpush1.msra.mxu0 0.0
    %3121 = vmatprep.subr.mxu0 0.0
    %3122 = vmatpush1.msra.mxu0 0.0
    %3123 = vmatprep.subr.mxu0 0.0
    %3124 = vmatpush1.msra.mxu0 0.0
    %3125 = vmatprep.subr.mxu0 0.0
    %3126 = vmatpush1.msra.mxu0 0.0
    %3127 = vmatprep.subr.mxu0 0.0
    %3128 = vmatpush1.msra.mxu0 0.0
    %3129 = vmatprep.subr.mxu0 0.0
    %3130 = vmatpush1.msra.mxu0 0.0
    %3131 = vmatprep.subr.mxu0 0.0
    %3132 = vmatpush1.msra.mxu0 0.0
    %3133 = vmatprep.subr.mxu0 0.0
    %3134 = vmatpush1.msra.mxu0 0.0
    %3135 = vmatprep.subr.mxu0 0.0
    %3136 = vmatpush1.msra.mxu0 0.0
    %3137 = vmatprep.subr.mxu0 0.0
    %3138 = vmatpush1.msra.mxu0 0.0
    %3139 = vmatprep.subr.mxu0 0.0
    %3140 = vmatpush1.msra.mxu0 0.0
    %3141 = vmatprep.subr.mxu0 0.0
    %3142 = vmatpush1.msra.mxu0 0.0
    %3143 = vmatprep.subr.mxu0 0.0
    %3144 = vmatpush1.msra.mxu0 0.0
    %3145 = vmatprep.subr.mxu0 0.0
    %3146 = vmatpush1.msra.mxu0 0.0
    %3147 = vmatprep.subr.mxu0 0.0
    %3148 = vmatpush1.msra.mxu0 0.0
    %3149 = vmatprep.subr.mxu0 0.0
    %3150 = vmatpush1.msra.mxu0 0.0
    %3151 = vmatprep.mubr.f32.mxu0 0.0
    %v3152 = vand.u32 %v3077, 4294901760
    %v3153 = vsub.f32 %v3077, %v3152
    %v3154 = vand.u32 %v3153, 4294901760
    %v3155 = vsub.f32 %v3153, %v3154
    %v3156 = vand.u32 %v3155, 4294901760
    %3157 = vmatmul.mubr.f32.gmra.mrb[0].mxu0 %v3156
    %v3158 = vpop.f32.mrb[0].mxu0
    %v3159 = vadd.f32 %v3054, %v3158
    %v3160 = vpop.f32.mrb[0].mxu0
    %3161 = vdwg.mxu0
    %3162 = vmatprep.subr.mxu0 0.0
    %v3163 = vand.u32 %v3041, 4294901760
    %v3164 = vsub.f32 %v3041, %v3163
    %v3165 = vand.u32 %v3164, 4294901760
    %v3166 = vsub.f32 %v3164, %v3165
    %v3167 = vand.u32 %v3166, 4294901760
    %3168 = vmatpush1.msra.mxu0 %v3167
    %3169 = vmatprep.subr.mxu0 0.0
    %v3170 = vand.u32 %v3042, 4294901760
    %v3171 = vsub.f32 %v3042, %v3170
    %v3172 = vand.u32 %v3171, 4294901760
    %v3173 = vsub.f32 %v3171, %v3172
    %v3174 = vand.u32 %v3173, 4294901760
    %3175 = vmatpush1.msra.mxu0 %v3174
    %3176 = vmatprep.subr.mxu0 0.0
    %v3177 = vand.u32 %v3043, 4294901760
    %v3178 = vsub.f32 %v3043, %v3177
    %v3179 = vand.u32 %v3178, 4294901760
    %v3180 = vsub.f32 %v3178, %v3179
    %v3181 = vand.u32 %v3180, 4294901760
    %3182 = vmatpush1.msra.mxu0 %v3181
    %3183 = vmatprep.subr.mxu0 0.0
    %v3184 = vand.u32 %v3044, 4294901760
    %v3185 = vsub.f32 %v3044, %v3184
    %v3186 = vand.u32 %v3185, 4294901760
    %v3187 = vsub.f32 %v3185, %v3186
    %v3188 = vand.u32 %v3187, 4294901760
    %3189 = vmatpush1.msra.mxu0 %v3188
    %3190 = vmatprep.subr.mxu0 0.0
    %v3191 = vand.u32 %v3045, 4294901760
    %v3192 = vsub.f32 %v3045, %v3191
    %v3193 = vand.u32 %v3192, 4294901760
    %v3194 = vsub.f32 %v3192, %v3193
    %v3195 = vand.u32 %v3194, 4294901760
    %3196 = vmatpush1.msra.mxu0 %v3195
    %3197 = vmatprep.subr.mxu0 0.0
    %v3198 = vand.u32 %v3046, 4294901760
    %v3199 = vsub.f32 %v3046, %v3198
    %v3200 = vand.u32 %v3199, 4294901760
    %v3201 = vsub.f32 %v3199, %v3200
    %v3202 = vand.u32 %v3201, 4294901760
    %3203 = vmatpush1.msra.mxu0 %v3202
    %3204 = vmatprep.subr.mxu0 0.0
    %v3205 = vand.u32 %v3047, 4294901760
    %v3206 = vsub.f32 %v3047, %v3205
    %v3207 = vand.u32 %v3206, 4294901760
    %v3208 = vsub.f32 %v3206, %v3207
    %v3209 = vand.u32 %v3208, 4294901760
    %3210 = vmatpush1.msra.mxu0 %v3209
    %3211 = vmatprep.subr.mxu0 0.0
    %v3212 = vand.u32 %v3048, 4294901760
    %v3213 = vsub.f32 %v3048, %v3212
    %v3214 = vand.u32 %v3213, 4294901760
    %v3215 = vsub.f32 %v3213, %v3214
    %v3216 = vand.u32 %v3215, 4294901760
    %3217 = vmatpush1.msra.mxu0 %v3216
    %3218 = vmatprep.subr.mxu0 0.0
    %3219 = vmatpush1.msra.mxu0 0.0
    %3220 = vmatprep.subr.mxu0 0.0
    %3221 = vmatpush1.msra.mxu0 0.0
    %3222 = vmatprep.subr.mxu0 0.0
    %3223 = vmatpush1.msra.mxu0 0.0
    %3224 = vmatprep.subr.mxu0 0.0
    %3225 = vmatpush1.msra.mxu0 0.0
    %3226 = vmatprep.subr.mxu0 0.0
    %3227 = vmatpush1.msra.mxu0 0.0
    %3228 = vmatprep.subr.mxu0 0.0
    %3229 = vmatpush1.msra.mxu0 0.0
    %3230 = vmatprep.subr.mxu0 0.0
    %3231 = vmatpush1.msra.mxu0 0.0
    %3232 = vmatprep.subr.mxu0 0.0
    %3233 = vmatpush1.msra.mxu0 0.0
    %3234 = vmatprep.subr.mxu0 0.0
    %3235 = vmatpush1.msra.mxu0 0.0
    %3236 = vmatprep.subr.mxu0 0.0
    %3237 = vmatpush1.msra.mxu0 0.0
    %3238 = vmatprep.subr.mxu0 0.0
    %3239 = vmatpush1.msra.mxu0 0.0
    %3240 = vmatprep.subr.mxu0 0.0
    %3241 = vmatpush1.msra.mxu0 0.0
    %3242 = vmatprep.subr.mxu0 0.0
    %3243 = vmatpush1.msra.mxu0 0.0
    %3244 = vmatprep.subr.mxu0 0.0
    %3245 = vmatpush1.msra.mxu0 0.0
    %3246 = vmatprep.subr.mxu0 0.0
    %3247 = vmatpush1.msra.mxu0 0.0
    %3248 = vmatprep.subr.mxu0 0.0
    %3249 = vmatpush1.msra.mxu0 0.0
    %3250 = vmatprep.subr.mxu0 0.0
    %3251 = vmatpush1.msra.mxu0 0.0
    %3252 = vmatprep.subr.mxu0 0.0
    %3253 = vmatpush1.msra.mxu0 0.0
    %3254 = vmatprep.subr.mxu0 0.0
    %3255 = vmatpush1.msra.mxu0 0.0
    %3256 = vmatprep.subr.mxu0 0.0
    %3257 = vmatpush1.msra.mxu0 0.0
    %3258 = vmatprep.subr.mxu0 0.0
    %3259 = vmatpush1.msra.mxu0 0.0
    %3260 = vmatprep.subr.mxu0 0.0
    %3261 = vmatpush1.msra.mxu0 0.0
    %3262 = vmatprep.subr.mxu0 0.0
    %3263 = vmatpush1.msra.mxu0 0.0
    %3264 = vmatprep.subr.mxu0 0.0
    %3265 = vmatpush1.msra.mxu0 0.0
    %3266 = vmatprep.mubr.f32.mxu0 0.0
    %v3267 = vand.u32 %v3077, 4294901760
    %3268 = vmatmul.mubr.f32.gmra.mrb[0].mxu0 %v3267
    %v3269 = vpop.f32.mrb[0].mxu0
    %v3270 = vadd.f32 %v3159, %v3269
    %v3271 = vpop.f32.mrb[0].mxu0
    %3272 = vdwg.mxu0
    %3273 = vmatprep.subr.mxu0 0.0
    %v3274 = vand.u32 %v3041, 4294901760
    %v3275 = vsub.f32 %v3041, %v3274
    %3276 = vmatpush1.msra.mxu0 %v3275
    %3277 = vmatprep.subr.mxu0 0.0
    %v3278 = vand.u32 %v3042, 4294901760
    %v3279 = vsub.f32 %v3042, %v3278
    %3280 = vmatpush1.msra.mxu0 %v3279
    %3281 = vmatprep.subr.mxu0 0.0
    %v3282 = vand.u32 %v3043, 4294901760
    %v3283 = vsub.f32 %v3043, %v3282
    %3284 = vmatpush1.msra.mxu0 %v3283
    %3285 = vmatprep.subr.mxu0 0.0
    %v3286 = vand.u32 %v3044, 4294901760
    %v3287 = vsub.f32 %v3044, %v3286
    %3288 = vmatpush1.msra.mxu0 %v3287
    %3289 = vmatprep.subr.mxu0 0.0
    %v3290 = vand.u32 %v3045, 4294901760
    %v3291 = vsub.f32 %v3045, %v3290
    %3292 = vmatpush1.msra.mxu0 %v3291
    %3293 = vmatprep.subr.mxu0 0.0
    %v3294 = vand.u32 %v3046, 4294901760
    %v3295 = vsub.f32 %v3046, %v3294
    %3296 = vmatpush1.msra.mxu0 %v3295
    %3297 = vmatprep.subr.mxu0 0.0
    %v3298 = vand.u32 %v3047, 4294901760
    %v3299 = vsub.f32 %v3047, %v3298
    %3300 = vmatpush1.msra.mxu0 %v3299
    %3301 = vmatprep.subr.mxu0 0.0
    %v3302 = vand.u32 %v3048, 4294901760
    %v3303 = vsub.f32 %v3048, %v3302
    %3304 = vmatpush1.msra.mxu0 %v3303
    %3305 = vmatprep.subr.mxu0 0.0
    %3306 = vmatpush1.msra.mxu0 0.0
    %3307 = vmatprep.subr.mxu0 0.0
    %3308 = vmatpush1.msra.mxu0 0.0
    %3309 = vmatprep.subr.mxu0 0.0
    %3310 = vmatpush1.msra.mxu0 0.0
    %3311 = vmatprep.subr.mxu0 0.0
    %3312 = vmatpush1.msra.mxu0 0.0
    %3313 = vmatprep.subr.mxu0 0.0
    %3314 = vmatpush1.msra.mxu0 0.0
    %3315 = vmatprep.subr.mxu0 0.0
    %3316 = vmatpush1.msra.mxu0 0.0
    %3317 = vmatprep.subr.mxu0 0.0
    %3318 = vmatpush1.msra.mxu0 0.0
    %3319 = vmatprep.subr.mxu0 0.0
    %3320 = vmatpush1.msra.mxu0 0.0
    %3321 = vmatprep.subr.mxu0 0.0
    %3322 = vmatpush1.msra.mxu0 0.0
    %3323 = vmatprep.subr.mxu0 0.0
    %3324 = vmatpush1.msra.mxu0 0.0
    %3325 = vmatprep.subr.mxu0 0.0
    %3326 = vmatpush1.msra.mxu0 0.0
    %3327 = vmatprep.subr.mxu0 0.0
    %3328 = vmatpush1.msra.mxu0 0.0
    %3329 = vmatprep.subr.mxu0 0.0
    %3330 = vmatpush1.msra.mxu0 0.0
    %3331 = vmatprep.subr.mxu0 0.0
    %3332 = vmatpush1.msra.mxu0 0.0
    %3333 = vmatprep.subr.mxu0 0.0
    %3334 = vmatpush1.msra.mxu0 0.0
    %3335 = vmatprep.subr.mxu0 0.0
    %3336 = vmatpush1.msra.mxu0 0.0
    %3337 = vmatprep.subr.mxu0 0.0
    %3338 = vmatpush1.msra.mxu0 0.0
    %3339 = vmatprep.subr.mxu0 0.0
    %3340 = vmatpush1.msra.mxu0 0.0
    %3341 = vmatprep.subr.mxu0 0.0
    %3342 = vmatpush1.msra.mxu0 0.0
    %3343 = vmatprep.subr.mxu0 0.0
    %3344 = vmatpush1.msra.mxu0 0.0
    %3345 = vmatprep.subr.mxu0 0.0
    %3346 = vmatpush1.msra.mxu0 0.0
    %3347 = vmatprep.subr.mxu0 0.0
    %3348 = vmatpush1.msra.mxu0 0.0
    %3349 = vmatprep.subr.mxu0 0.0
    %3350 = vmatpush1.msra.mxu0 0.0
    %3351 = vmatprep.subr.mxu0 0.0
    %3352 = vmatpush1.msra.mxu0 0.0
    %3353 = vmatprep.mubr.f32.mxu0 0.0
    %v3354 = vand.u32 %v3077, 4294901760
    %v3355 = vsub.f32 %v3077, %v3354
    %3356 = vmatmul.mubr.f32.gmra.mrb[0].mxu0 %v3355
    %v3357 = vpop.f32.mrb[0].mxu0
    %v3358 = vadd.f32 %v3270, %v3357
    %v3359 = vpop.f32.mrb[0].mxu0
    %3360 = vdwg.mxu0
    %3361 = vmatprep.subr.mxu0 0.0
    %v3362 = vand.u32 %v3041, 4294901760
    %3363 = vmatpush1.msra.mxu0 %v3362
    %3364 = vmatprep.subr.mxu0 0.0
    %v3365 = vand.u32 %v3042, 4294901760
    %3366 = vmatpush1.msra.mxu0 %v3365
    %3367 = vmatprep.subr.mxu0 0.0
    %v3368 = vand.u32 %v3043, 4294901760
    %3369 = vmatpush1.msra.mxu0 %v3368
    %3370 = vmatprep.subr.mxu0 0.0
    %v3371 = vand.u32 %v3044, 4294901760
    %3372 = vmatpush1.msra.mxu0 %v3371
    %3373 = vmatprep.subr.mxu0 0.0
    %v3374 = vand.u32 %v3045, 4294901760
    %3375 = vmatpush1.msra.mxu0 %v3374
    %3376 = vmatprep.subr.mxu0 0.0
    %v3377 = vand.u32 %v3046, 4294901760
    %3378 = vmatpush1.msra.mxu0 %v3377
    %3379 = vmatprep.subr.mxu0 0.0
    %v3380 = vand.u32 %v3047, 4294901760
    %3381 = vmatpush1.msra.mxu0 %v3380
    %3382 = vmatprep.subr.mxu0 0.0
    %v3383 = vand.u32 %v3048, 4294901760
    %3384 = vmatpush1.msra.mxu0 %v3383
    %3385 = vmatprep.subr.mxu0 0.0
    %3386 = vmatpush1.msra.mxu0 0.0
    %3387 = vmatprep.subr.mxu0 0.0
    %3388 = vmatpush1.msra.mxu0 0.0
    %3389 = vmatprep.subr.mxu0 0.0
    %3390 = vmatpush1.msra.mxu0 0.0
    %3391 = vmatprep.subr.mxu0 0.0
    %3392 = vmatpush1.msra.mxu0 0.0
    %3393 = vmatprep.subr.mxu0 0.0
    %3394 = vmatpush1.msra.mxu0 0.0
    %3395 = vmatprep.subr.mxu0 0.0
    %3396 = vmatpush1.msra.mxu0 0.0
    %3397 = vmatprep.subr.mxu0 0.0
    %3398 = vmatpush1.msra.mxu0 0.0
    %3399 = vmatprep.subr.mxu0 0.0
    %3400 = vmatpush1.msra.mxu0 0.0
    %3401 = vmatprep.subr.mxu0 0.0
    %3402 = vmatpush1.msra.mxu0 0.0
    %3403 = vmatprep.subr.mxu0 0.0
    %3404 = vmatpush1.msra.mxu0 0.0
    %3405 = vmatprep.subr.mxu0 0.0
    %3406 = vmatpush1.msra.mxu0 0.0
    %3407 = vmatprep.subr.mxu0 0.0
    %3408 = vmatpush1.msra.mxu0 0.0
    %3409 = vmatprep.subr.mxu0 0.0
    %3410 = vmatpush1.msra.mxu0 0.0
    %3411 = vmatprep.subr.mxu0 0.0
    %3412 = vmatpush1.msra.mxu0 0.0
    %3413 = vmatprep.subr.mxu0 0.0
    %3414 = vmatpush1.msra.mxu0 0.0
    %3415 = vmatprep.subr.mxu0 0.0
    %3416 = vmatpush1.msra.mxu0 0.0
    %3417 = vmatprep.subr.mxu0 0.0
    %3418 = vmatpush1.msra.mxu0 0.0
    %3419 = vmatprep.subr.mxu0 0.0
    %3420 = vmatpush1.msra.mxu0 0.0
    %3421 = vmatprep.subr.mxu0 0.0
    %3422 = vmatpush1.msra.mxu0 0.0
    %3423 = vmatprep.subr.mxu0 0.0
    %3424 = vmatpush1.msra.mxu0 0.0
    %3425 = vmatprep.subr.mxu0 0.0
    %3426 = vmatpush1.msra.mxu0 0.0
    %3427 = vmatprep.subr.mxu0 0.0
    %3428 = vmatpush1.msra.mxu0 0.0
    %3429 = vmatprep.subr.mxu0 0.0
    %3430 = vmatpush1.msra.mxu0 0.0
    %3431 = vmatprep.subr.mxu0 0.0
    %3432 = vmatpush1.msra.mxu0 0.0
    %3433 = vmatprep.mubr.f32.mxu0 0.0
    %v3434 = vand.u32 %v3077, 4294901760
    %v3435 = vsub.f32 %v3077, %v3434
    %v3436 = vand.u32 %v3435, 4294901760
    %3437 = vmatmul.mubr.f32.gmra.mrb[0].mxu0 %v3436
    %v3438 = vpop.f32.mrb[0].mxu0
    %v3439 = vadd.f32 %v3358, %v3438
    %v3440 = vpop.f32.mrb[0].mxu0
    %3441 = vdwg.mxu0
    %3442 = vmatprep.subr.mxu0 0.0
    %v3443 = vand.u32 %v3041, 4294901760
    %v3444 = vsub.f32 %v3041, %v3443
    %v3445 = vand.u32 %v3444, 4294901760
    %3446 = vmatpush1.msra.mxu0 %v3445
    %3447 = vmatprep.subr.mxu0 0.0
    %v3448 = vand.u32 %v3042, 4294901760
    %v3449 = vsub.f32 %v3042, %v3448
    %v3450 = vand.u32 %v3449, 4294901760
    %3451 = vmatpush1.msra.mxu0 %v3450
    %3452 = vmatprep.subr.mxu0 0.0
    %v3453 = vand.u32 %v3043, 4294901760
    %v3454 = vsub.f32 %v3043, %v3453
    %v3455 = vand.u32 %v3454, 4294901760
    %3456 = vmatpush1.msra.mxu0 %v3455
    %3457 = vmatprep.subr.mxu0 0.0
    %v3458 = vand.u32 %v3044, 4294901760
    %v3459 = vsub.f32 %v3044, %v3458
    %v3460 = vand.u32 %v3459, 4294901760
    %3461 = vmatpush1.msra.mxu0 %v3460
    %3462 = vmatprep.subr.mxu0 0.0
    %v3463 = vand.u32 %v3045, 4294901760
    %v3464 = vsub.f32 %v3045, %v3463
    %v3465 = vand.u32 %v3464, 4294901760
    %3466 = vmatpush1.msra.mxu0 %v3465
    %3467 = vmatprep.subr.mxu0 0.0
    %v3468 = vand.u32 %v3046, 4294901760
    %v3469 = vsub.f32 %v3046, %v3468
    %v3470 = vand.u32 %v3469, 4294901760
    %3471 = vmatpush1.msra.mxu0 %v3470
    %3472 = vmatprep.subr.mxu0 0.0
    %v3473 = vand.u32 %v3047, 4294901760
    %v3474 = vsub.f32 %v3047, %v3473
    %v3475 = vand.u32 %v3474, 4294901760
    %3476 = vmatpush1.msra.mxu0 %v3475
    %3477 = vmatprep.subr.mxu0 0.0
    %v3478 = vand.u32 %v3048, 4294901760
    %v3479 = vsub.f32 %v3048, %v3478
    %v3480 = vand.u32 %v3479, 4294901760
    %3481 = vmatpush1.msra.mxu0 %v3480
    %3482 = vmatprep.subr.mxu0 0.0
    %3483 = vmatpush1.msra.mxu0 0.0
    %3484 = vmatprep.subr.mxu0 0.0
    %3485 = vmatpush1.msra.mxu0 0.0
    %3486 = vmatprep.subr.mxu0 0.0
    %3487 = vmatpush1.msra.mxu0 0.0
    %3488 = vmatprep.subr.mxu0 0.0
    %3489 = vmatpush1.msra.mxu0 0.0
    %3490 = vmatprep.subr.mxu0 0.0
    %3491 = vmatpush1.msra.mxu0 0.0
    %3492 = vmatprep.subr.mxu0 0.0
    %3493 = vmatpush1.msra.mxu0 0.0
    %3494 = vmatprep.subr.mxu0 0.0
    %3495 = vmatpush1.msra.mxu0 0.0
    %3496 = vmatprep.subr.mxu0 0.0
    %3497 = vmatpush1.msra.mxu0 0.0
    %3498 = vmatprep.subr.mxu0 0.0
    %3499 = vmatpush1.msra.mxu0 0.0
    %3500 = vmatprep.subr.mxu0 0.0
    %3501 = vmatpush1.msra.mxu0 0.0
    %3502 = vmatprep.subr.mxu0 0.0
    %3503 = vmatpush1.msra.mxu0 0.0
    %3504 = vmatprep.subr.mxu0 0.0
    %3505 = vmatpush1.msra.mxu0 0.0
    %3506 = vmatprep.subr.mxu0 0.0
    %3507 = vmatpush1.msra.mxu0 0.0
    %3508 = vmatprep.subr.mxu0 0.0
    %3509 = vmatpush1.msra.mxu0 0.0
    %3510 = vmatprep.subr.mxu0 0.0
    %3511 = vmatpush1.msra.mxu0 0.0
    %3512 = vmatprep.subr.mxu0 0.0
    %3513 = vmatpush1.msra.mxu0 0.0
    %3514 = vmatprep.subr.mxu0 0.0
    %3515 = vmatpush1.msra.mxu0 0.0
    %3516 = vmatprep.subr.mxu0 0.0
    %3517 = vmatpush1.msra.mxu0 0.0
    %3518 = vmatprep.subr.mxu0 0.0
    %3519 = vmatpush1.msra.mxu0 0.0
    %3520 = vmatprep.subr.mxu0 0.0
    %3521 = vmatpush1.msra.mxu0 0.0
    %3522 = vmatprep.subr.mxu0 0.0
    %3523 = vmatpush1.msra.mxu0 0.0
    %3524 = vmatprep.subr.mxu0 0.0
    %3525 = vmatpush1.msra.mxu0 0.0
    %3526 = vmatprep.subr.mxu0 0.0
    %3527 = vmatpush1.msra.mxu0 0.0
    %3528 = vmatprep.subr.mxu0 0.0
    %3529 = vmatpush1.msra.mxu0 0.0
    %3530 = vmatprep.mubr.f32.mxu0 0.0
    %v3531 = vand.u32 %v3077, 4294901760
    %3532 = vmatmul.mubr.f32.gmra.mrb[0].mxu0 %v3531
    %v3533 = vpop.f32.mrb[0].mxu0
    %v3534 = vadd.f32 %v3439, %v3533
    %v3535 = vpop.f32.mrb[0].mxu0
    %3536 = vdwg.mxu0
    %3537 = vmatprep.subr.mxu0 0.0
    %v3538 = vand.u32 %v3041, 4294901760
    %3539 = vmatpush1.msra.mxu0 %v3538
    %3540 = vmatprep.subr.mxu0 0.0
    %v3541 = vand.u32 %v3042, 4294901760
    %3542 = vmatpush1.msra.mxu0 %v3541
    %3543 = vmatprep.subr.mxu0 0.0
    %v3544 = vand.u32 %v3043, 4294901760
    %3545 = vmatpush1.msra.mxu0 %v3544
    %3546 = vmatprep.subr.mxu0 0.0
    %v3547 = vand.u32 %v3044, 4294901760
    %3548 = vmatpush1.msra.mxu0 %v3547
    %3549 = vmatprep.subr.mxu0 0.0
    %v3550 = vand.u32 %v3045, 4294901760
    %3551 = vmatpush1.msra.mxu0 %v3550
    %3552 = vmatprep.subr.mxu0 0.0
    %v3553 = vand.u32 %v3046, 4294901760
    %3554 = vmatpush1.msra.mxu0 %v3553
    %3555 = vmatprep.subr.mxu0 0.0
    %v3556 = vand.u32 %v3047, 4294901760
    %3557 = vmatpush1.msra.mxu0 %v3556
    %3558 = vmatprep.subr.mxu0 0.0
    %v3559 = vand.u32 %v3048, 4294901760
    %3560 = vmatpush1.msra.mxu0 %v3559
    %3561 = vmatprep.subr.mxu0 0.0
    %3562 = vmatpush1.msra.mxu0 0.0
    %3563 = vmatprep.subr.mxu0 0.0
    %3564 = vmatpush1.msra.mxu0 0.0
    %3565 = vmatprep.subr.mxu0 0.0
    %3566 = vmatpush1.msra.mxu0 0.0
    %3567 = vmatprep.subr.mxu0 0.0
    %3568 = vmatpush1.msra.mxu0 0.0
    %3569 = vmatprep.subr.mxu0 0.0
    %3570 = vmatpush1.msra.mxu0 0.0
    %3571 = vmatprep.subr.mxu0 0.0
    %3572 = vmatpush1.msra.mxu0 0.0
    %3573 = vmatprep.subr.mxu0 0.0
    %3574 = vmatpush1.msra.mxu0 0.0
    %3575 = vmatprep.subr.mxu0 0.0
    %3576 = vmatpush1.msra.mxu0 0.0
    %3577 = vmatprep.subr.mxu0 0.0
    %3578 = vmatpush1.msra.mxu0 0.0
    %3579 = vmatprep.subr.mxu0 0.0
    %3580 = vmatpush1.msra.mxu0 0.0
    %3581 = vmatprep.subr.mxu0 0.0
    %3582 = vmatpush1.msra.mxu0 0.0
    %3583 = vmatprep.subr.mxu0 0.0
    %3584 = vmatpush1.msra.mxu0 0.0
    %3585 = vmatprep.subr.mxu0 0.0
    %3586 = vmatpush1.msra.mxu0 0.0
    %3587 = vmatprep.subr.mxu0 0.0
    %3588 = vmatpush1.msra.mxu0 0.0
    %3589 = vmatprep.subr.mxu0 0.0
    %3590 = vmatpush1.msra.mxu0 0.0
    %3591 = vmatprep.subr.mxu0 0.0
    %3592 = vmatpush1.msra.mxu0 0.0
    %3593 = vmatprep.subr.mxu0 0.0
    %3594 = vmatpush1.msra.mxu0 0.0
    %3595 = vmatprep.subr.mxu0 0.0
    %3596 = vmatpush1.msra.mxu0 0.0
    %3597 = vmatprep.subr.mxu0 0.0
    %3598 = vmatpush1.msra.mxu0 0.0
    %3599 = vmatprep.subr.mxu0 0.0
    %3600 = vmatpush1.msra.mxu0 0.0
    %3601 = vmatprep.subr.mxu0 0.0
    %3602 = vmatpush1.msra.mxu0 0.0
    %3603 = vmatprep.subr.mxu0 0.0
    %3604 = vmatpush1.msra.mxu0 0.0
    %3605 = vmatprep.subr.mxu0 0.0
    %3606 = vmatpush1.msra.mxu0 0.0
    %3607 = vmatprep.subr.mxu0 0.0
    %3608 = vmatpush1.msra.mxu0 0.0
    %3609 = vmatprep.mubr.f32.mxu0 0.0
    %v3610 = vand.u32 %v3077, 4294901760
    %3611 = vmatmul.mubr.f32.gmra.mrb[0].mxu0 %v3610
    %v3612 = vpop.f32.mrb[0].mxu0
    %v3613 = vadd.f32 %v3534, %v3612
    %v3614 = vpop.f32.mrb[0].mxu0
    %3615 = vdwg.mxu0
    %v3617 = vcombine.high %v3613, %v3613
    %v3619 = vunpack.c.l.s4 1983009808
    %v3620 = vunpack.c.0.s8 %v3619
    %v3621 = vlaneseq
    %v3622 = vshrl.u32 %v3621, 7
    %v3623 = vsub.s32 %v3620, %v3622
    %v3624 = vrot.slane %v3613, %v3623
    %v3626 = vunpack.c.l.s4 1983009808
    %v3627 = vunpack.c.0.s8 %v3626
    %v3628 = vlaneseq
    %v3629 = vshrl.u32 %v3628, 7
    %v3630 = vsub.s32 %v3627, %v3629
    %v3631 = vrot.slane %v3617, %v3630
    %v3632 = vcombine.high %v3624, %v3624
    %v3633 = vcombine.high %v3631, %v3631
    %vm3638 = vcmask 25600
    %3639 = vst.msk [vmem:[#allocation7] sm:$0x3] %vm3638, %v3624
    %3640 = vst.msk [vmem:[#allocation7 + $0x2] sm:$0x3] %vm3638, %v3632
    %3641 = vst.msk [vmem:[#allocation7 + $0x4] sm:$0x3] %vm3638, %v3631
    %3642 = vst.msk [vmem:[#allocation7 + $0x6] sm:$0x3] %vm3638, %v3633
    // Predicated region
    $region38: #{tpu_custom_call.1} parent=1 // pred_check
      _
    $region39: #{tpu_custom_call.1} parent=1 // pred_check_branch
      %3644 = sbr.rel (0) target = $region41
    $region40: #{tpu_custom_call.1} parent=1 // pred_region
      %s3646 = ssub.s32 128, 128
      %3647 = vsyncadd [#allocation8], %s3646
      %s3648 = sshll.u32 [#allocation7], 4
      %s3649 = int_to_ptr.vmem [resolvable:$true] %s3648
      %3654 = dma.vmem_to_hbm [thread:$0]  %s3649, 128, %s9, [#allocation8], 32, 32, 2
    $region41: #{tpu_custom_call.1} parent=1 // pred_fallthru
      _
    // Predicated region
    $region42: #{tpu_custom_call.1} parent=1 // pred_check
      _
    $region43: #{tpu_custom_call.1} parent=1 // pred_check_branch
      %3656 = sbr.rel (0) target = $region45
    $region44: #{tpu_custom_call.1} parent=1 // pred_region
      %3657 = dma.done [#allocation8], 128
    $region45: #{tpu_custom_call.1} parent=1 // pred_fallthru
      _
    %3658 = vsyncpa [#allocation8], 1

</llo_original>
